<compile_context>
chip_gen: v5e
topology: v5e:2x2
jax: 0.10.0
libtpu: 0.0.40
codegen_flags: <defaults>
</compile_context>

<pallas_src>
import math
import jax
import jax.numpy as jnp
from jax.experimental import pallas as pl
from jax.experimental.pallas import tpu as pltpu

# ----- model hyper-parameters (small, consistent with the module) -----
N_LAYERS = 2     # N
D_MODEL  = 32    # layer.size
N_HEADS  = 4
D_FF     = 64
EPS      = 1e-6


def _tensorcores_per_chip():
    """Crude generation detection: 2 TCs on v7x / v5p / v4 (megacore), else 1."""
    try:
        kind = jax.devices()[0].device_kind.lower()
    except Exception:
        return 1
    if "v7" in kind or "7x" in kind:
        return 2
    if "v5p" in kind or "v4" in kind:
        return 2
    return 1          # v5e / v6e / v5-lite / v6-lite: single TensorCore


def encoder_kernel(x_ref, mask_ref,
                   wqkv_ref, bqkv_ref, wo_ref, bo_ref,
                   w1_ref, b1_ref, w2_ref, b2_ref,
                   ln_a_ref, ln_b_ref, fin_a_ref, fin_b_ref,
                   out_ref):
    # One grid step processes BG batch elements; everything lives in VMEM.
    BG, S, D = x_ref.shape
    h = N_HEADS
    d_k = D // h
    R = BG * S
    scale = 1.0 / math.sqrt(d_k)

    # Flatten the batch group into one (R, D) slab: all projection / FFN matmuls
    # run with a bigger M-dim (leading-dim merge only -> layout-trivial reshape).
    x = x_ref[...].reshape(R, D)

    # ---- hoisted additive key-padding mask bias (computed once, reused by all
    #      layers and heads): shape (h*BG, 1, S), head-major / batch-minor.
    neg = jnp.where(mask_ref[...] == 0, jnp.float32(-1e9), jnp.float32(0.0))   # (BG,1,S)
    bias = jnp.concatenate([neg] * h, axis=0)                                  # (h*BG,1,S)

    def layernorm(t, a, b):
        # torch: mean over last dim, std with Bessel correction, a*(x-mean)/(std+eps)+b
        mean = jnp.mean(t, axis=-1, keepdims=True)
        var = jnp.sum((t - mean) ** 2, axis=-1, keepdims=True) * (1.0 / (D - 1))
        inv = pl.reciprocal(jnp.sqrt(var) + EPS, approx=False)   # per-row reciprocal
        return a * (t - mean) * inv + b

    def split_heads(t):
        # (R, D) -> (h*BG, S, d_k): one lane slice per head + leading reshape + concat.
        return jnp.concatenate(
            [t[:, i * d_k:(i + 1) * d_k].reshape(BG, S, d_k) for i in range(h)], axis=0)

    def merge_heads(t):
        # (h*BG, S, d_k) -> (R, D): head i goes to lane block [i*d_k, (i+1)*d_k).
        return jnp.concatenate(
            [t[i * BG:(i + 1) * BG].reshape(R, d_k) for i in range(h)], axis=-1)

    for l in range(N_LAYERS):                     # static unrolled layer stack
        # ---- sublayer 0: pre-norm multi-head self-attention + residual ----
        xn = layernorm(x, ln_a_ref[l, 0], ln_b_ref[l, 0])
        # fused QKV projection: one (R, D) x (D, 3D) matmul
        qkv = jnp.dot(xn, wqkv_ref[l], preferred_element_type=jnp.float32) + bqkv_ref[l]
        q3 = split_heads(qkv[:, 0:D])
        k3 = split_heads(qkv[:, D:2 * D])
        v3 = split_heads(qkv[:, 2 * D:3 * D])

        # one batched score matmul + one batched softmax over all (head, batch) pairs
        scores = jnp.einsum('bqd,bkd->bqk', q3, k3,
                            preferred_element_type=jnp.float32) * scale + bias
        m = jnp.max(scores, axis=-1, keepdims=True)
        e = jnp.exp(scores - m)
        p = e * pl.reciprocal(jnp.sum(e, axis=-1, keepdims=True), approx=False)
        ctx = merge_heads(jnp.einsum('bqk,bkd->bqd', p, v3,
                                     preferred_element_type=jnp.float32))

        x = x + jnp.dot(ctx, wo_ref[l], preferred_element_type=jnp.float32) + bo_ref[l]

        # ---- sublayer 1: pre-norm position-wise feed-forward + residual ----
        xn = layernorm(x, ln_a_ref[l, 1], ln_b_ref[l, 1])
        hid = jnp.maximum(
            jnp.dot(xn, w1_ref[l], preferred_element_type=jnp.float32) + b1_ref[l], 0.0)
        x = x + jnp.dot(hid, w2_ref[l], preferred_element_type=jnp.float32) + b2_ref[l]

    # ---- final LayerNorm of the Encoder ----
    y = layernorm(x, fin_a_ref[...], fin_b_ref[...])          # (R, D)

    # Lane-dense store: pack each batch element's (S, D) rows into one 256-lane row
    # (avoids masked 32-lane partial stores on the output).
    y3 = y.reshape(BG, S, D)
    out_ref[0] = jnp.concatenate([y3[:, s, :] for s in range(S)], axis=-1)   # (BG, S*D)

    # TODO(synk): for larger S / D_MODEL, bf16 MXU casts and flash-style score tiling
    # would be needed; unnecessary at S=8, D=32 (everything is a few KiB in VMEM).


def _pack_params(params):
    """Wrapper-side repacking: fuse Wq/Wk/Wv (and biases) into one (D, 3D) projection."""
    (attn_w, attn_b, ffn_w1, ffn_b1, ffn_w2, ffn_b2, ln_a, ln_b, fin_a, fin_b) = params
    w_qkv = jnp.concatenate([attn_w[:, 0], attn_w[:, 1], attn_w[:, 2]], axis=-1)  # (N,D,3D)
    b_qkv = jnp.concatenate([attn_b[:, 0], attn_b[:, 1], attn_b[:, 2]], axis=-1)  # (N,1,3D)
    w_o = attn_w[:, 3]                                                            # (N,D,D)
    b_o = attn_b[:, 3]                                                            # (N,1,D)
    return (w_qkv, b_qkv, w_o, b_o, ffn_w1, ffn_b1, ffn_w2, ffn_b2, ln_a, ln_b, fin_a, fin_b)


def encoder_forward(x, mask, params):
    B, S, D = x.shape
    packed = _pack_params(params)

    # v5e/v6e (1 TC): one grid step with the whole batch (avoids per-step overhead and
    # re-binding weights).  v7x / megacore (2 TCs): grid=(B,) parallel, one core per item.
    n_tc = _tensorcores_per_chip()
    G = n_tc if (n_tc > 1 and B % n_tc == 0) else 1
    BG = B // G

    def full_spec(shape):
        n = len(shape)
        return pl.BlockSpec(shape, lambda g, n=n: (0,) * n)

    in_specs = [
        pl.BlockSpec((BG, S, D), lambda g: (g, 0, 0)),   # x  : one batch group
        pl.BlockSpec((BG, 1, S), lambda g: (g, 0, 0)),   # mask
    ] + [full_spec(p.shape) for p in packed]
    out_specs = pl.BlockSpec((1, BG, S * D), lambda g: (g, 0, 0))   # lane-dense rows

    out = pl.pallas_call(
        encoder_kernel,
        out_shape=jax.ShapeDtypeStruct((G, BG, S * D), jnp.float32),
        grid_spec=pltpu.PrefetchScalarGridSpec(
            num_scalar_prefetch=0,
            grid=(G,),
            in_specs=in_specs,
            out_specs=out_specs,
        ),
        compiler_params=pltpu.CompilerParams(dimension_semantics=("parallel",)),
    )(x, mask, *packed)
    return out.reshape(B, S, D)


# ----- pure-JAX reference (for correctness check) -----
def _layernorm_ref(x, a, b):
    mean = jnp.mean(x, axis=-1, keepdims=True)
    var = jnp.sum((x - mean) ** 2, axis=-1, keepdims=True) / (x.shape[-1] - 1)
    return a * (x - mean) / (jnp.sqrt(var) + EPS) + b


def ref_encoder(x, mask, params):
    (attn_w, attn_b, ffn_w1, ffn_b1, ffn_w2, ffn_b2,
     ln_a, ln_b, fin_a, fin_b) = params
    B, S, D = x.shape
    h, d_k = N_HEADS, D // N_HEADS
    m = mask[:, :, None, :]                      # (B, 1, 1, S)
    for l in range(N_LAYERS):
        xn = _layernorm_ref(x, ln_a[l, 0], ln_b[l, 0])
        q = xn @ attn_w[l, 0] + attn_b[l, 0]
        k = xn @ attn_w[l, 1] + attn_b[l, 1]
        v = xn @ attn_w[l, 2] + attn_b[l, 2]
        q = q.reshape(B, S, h, d_k).transpose(0, 2, 1, 3)
        k = k.reshape(B, S, h, d_k).transpose(0, 2, 1, 3)
        v = v.reshape(B, S, h, d_k).transpose(0, 2, 1, 3)
        sc = (q @ k.transpose(0, 1, 3, 2)) / math.sqrt(d_k)
        sc = jnp.where(m == 0, -1e9, sc)
        p = jax.nn.softmax(sc, axis=-1)
        ctx = (p @ v).transpose(0, 2, 1, 3).reshape(B, S, D)
        x = x + (ctx @ attn_w[l, 3] + attn_b[l, 3])
        xn = _layernorm_ref(x, ln_a[l, 1], ln_b[l, 1])
        x = x + (jnp.maximum(xn @ ffn_w1[l] + ffn_b1[l], 0.0) @ ffn_w2[l] + ffn_b2[l])
    return _layernorm_ref(x, fin_a, fin_b)


def make_params(key):
    ks = jax.random.split(key, 6)
    D, F, N = D_MODEL, D_FF, N_LAYERS
    attn_w = jax.random.normal(ks[0], (N, 4, D, D), jnp.float32) * (1.0 / math.sqrt(D))
    attn_b = jax.random.normal(ks[1], (N, 4, 1, D), jnp.float32) * 0.02
    ffn_w1 = jax.random.normal(ks[2], (N, D, F), jnp.float32) * (1.0 / math.sqrt(D))
    ffn_b1 = jax.random.normal(ks[3], (N, 1, F), jnp.float32) * 0.02
    ffn_w2 = jax.random.normal(ks[4], (N, F, D), jnp.float32) * (1.0 / math.sqrt(F))
    ffn_b2 = jax.random.normal(ks[5], (N, 1, D), jnp.float32) * 0.02
    ln_a = jnp.ones((N, 2, 1, D), jnp.float32)     # LayerNorm.a_2 (per sublayer)
    ln_b = jnp.zeros((N, 2, 1, D), jnp.float32)    # LayerNorm.b_2
    fin_a = jnp.ones((1, D), jnp.float32)          # final Encoder norm
    fin_b = jnp.zeros((1, D), jnp.float32)
    return (attn_w, attn_b, ffn_w1, ffn_b1, ffn_w2, ffn_b2, ln_a, ln_b, fin_a, fin_b)


if __name__ == "__main__":
    key = jax.random.PRNGKey(0)
    kx, kp = jax.random.split(key)

    B, S, D = 2, 8, D_MODEL
    x = jax.random.normal(kx, (B, S, D), jnp.float32)
    # mask: batch 0 attends to all 8 positions, batch 1 to the first 5 (ByteTensor semantics)
    lengths = jnp.array([8, 5], jnp.int32)
    mask = (jnp.arange(S)[None, None, :] < lengths[:, None, None]).astype(jnp.int32)  # (B,1,S)

    params = make_params(kp)

    out = encoder_forward(x, mask, params)
    out = jax.block_until_ready(out)

    ref = ref_encoder(x, mask, params)
    assert out.shape == (B, S, D)
    assert jnp.allclose(out, ref, atol=1e-4, rtol=1e-4), "mismatch vs JAX reference"

    # TODO(synk): dropout layers are identity here (eval mode), so nothing to port.
    print("KERNEL_OK")
</pallas_src>

<mosaic_0001>
module attributes {stable_mosaic.version = 11 : i64} {
  func.func @encoder_kernel(%arg0: i32, %arg1: memref<2x8x32xf32, #tpu.memory_space<vmem>>, %arg2: memref<2x1x8xi32, #tpu.memory_space<vmem>>, %arg3: memref<2x32x96xf32, #tpu.memory_space<vmem>>, %arg4: memref<2x1x96xf32, #tpu.memory_space<vmem>>, %arg5: memref<2x32x32xf32, #tpu.memory_space<vmem>>, %arg6: memref<2x1x32xf32, #tpu.memory_space<vmem>>, %arg7: memref<2x32x64xf32, #tpu.memory_space<vmem>>, %arg8: memref<2x1x64xf32, #tpu.memory_space<vmem>>, %arg9: memref<2x64x32xf32, #tpu.memory_space<vmem>>, %arg10: memref<2x1x32xf32, #tpu.memory_space<vmem>>, %arg11: memref<2x2x1x32xf32, #tpu.memory_space<vmem>>, %arg12: memref<2x2x1x32xf32, #tpu.memory_space<vmem>>, %arg13: memref<1x32xf32, #tpu.memory_space<vmem>>, %arg14: memref<1x32xf32, #tpu.memory_space<vmem>>, %arg15: memref<1x2x256xf32, #tpu.memory_space<vmem>>) attributes {dimension_semantics = [#tpu.dimension_semantics<parallel>], iteration_bounds = array<i64: 1>, scalar_prefetch = 0 : i64, scratch_operands = 0 : i64, tpu.core_type = #tpu.core_type<tc>, window_params = [{transform_indices = @transform_0, window_bounds = array<i64: 2, 8, 32>}, {transform_indices = @transform_1, window_bounds = array<i64: 2, 1, 8>}, {pipeline_mode = #tpu.pipeline_mode<synchronous>, transform_indices = @transform_2, window_bounds = array<i64: 2, 32, 96>}, {pipeline_mode = #tpu.pipeline_mode<synchronous>, transform_indices = @transform_3, window_bounds = array<i64: 2, 1, 96>}, {pipeline_mode = #tpu.pipeline_mode<synchronous>, transform_indices = @transform_4, window_bounds = array<i64: 2, 32, 32>}, {pipeline_mode = #tpu.pipeline_mode<synchronous>, transform_indices = @transform_5, window_bounds = array<i64: 2, 1, 32>}, {pipeline_mode = #tpu.pipeline_mode<synchronous>, transform_indices = @transform_6, window_bounds = array<i64: 2, 32, 64>}, {pipeline_mode = #tpu.pipeline_mode<synchronous>, transform_indices = @transform_7, window_bounds = array<i64: 2, 1, 64>}, {pipeline_mode = #tpu.pipeline_mode<synchronous>, transform_indices = @transform_8, window_bounds = array<i64: 2, 64, 32>}, {pipeline_mode = #tpu.pipeline_mode<synchronous>, transform_indices = @transform_9, window_bounds = array<i64: 2, 1, 32>}, {pipeline_mode = #tpu.pipeline_mode<synchronous>, transform_indices = @transform_10, window_bounds = array<i64: 2, 2, 1, 32>}, {pipeline_mode = #tpu.pipeline_mode<synchronous>, transform_indices = @transform_11, window_bounds = array<i64: 2, 2, 1, 32>}, {pipeline_mode = #tpu.pipeline_mode<synchronous>, transform_indices = @transform_12, window_bounds = array<i64: 1, 32>}, {pipeline_mode = #tpu.pipeline_mode<synchronous>, transform_indices = @transform_13, window_bounds = array<i64: 1, 32>}, {transform_indices = @transform_14, window_bounds = array<i64: 1, 2, 256>}]} {
    %c0 = arith.constant 0 : index
    %c0_0 = arith.constant 0 : index
    %c0_1 = arith.constant 0 : index
    %0 = vector.load %arg1[%c0, %c0_0, %c0_1] : memref<2x8x32xf32, #tpu.memory_space<vmem>>, vector<2x8x32xf32>
    %1 = vector.shape_cast %0 : vector<2x8x32xf32> to vector<16x32xf32>
    %c0_2 = arith.constant 0 : index
    %c0_3 = arith.constant 0 : index
    %c0_4 = arith.constant 0 : index
    %2 = vector.load %arg2[%c0_2, %c0_3, %c0_4] : memref<2x1x8xi32, #tpu.memory_space<vmem>>, vector<2x1x8xi32>
    %c0_i32 = arith.constant 0 : i32
    %3 = vector.broadcast %c0_i32 : i32 to vector<2x1x8xi32>
    %4 = arith.cmpi eq, %2, %3 : vector<2x1x8xi32>
    %cst = arith.constant -1.000000e+09 : f32
    %cst_5 = arith.constant 0.000000e+00 : f32
    %5 = vector.broadcast %cst : f32 to vector<2x1x8xf32>
    %6 = vector.broadcast %cst_5 : f32 to vector<2x1x8xf32>
    %7 = arith.select %4, %5, %6 : vector<2x1x8xi1>, vector<2x1x8xf32>
    %8 = tpu.concatenate %7, %7, %7, %7 in 0 : vector<2x1x8xf32>, vector<2x1x8xf32>, vector<2x1x8xf32>, vector<2x1x8xf32> -> vector<8x1x8xf32>
    %c0_6 = arith.constant 0 : index
    %c0_7 = arith.constant 0 : index
    %c0_8 = arith.constant 0 : index
    %c0_9 = arith.constant 0 : index
    %9 = vector.load %arg11[%c0_6, %c0_7, %c0_8, %c0_9] : memref<2x2x1x32xf32, #tpu.memory_space<vmem>>, vector<1x1x1x32xf32>
    %10 = vector.shape_cast %9 : vector<1x1x1x32xf32> to vector<1x32xf32>
    %c0_10 = arith.constant 0 : index
    %c0_11 = arith.constant 0 : index
    %c0_12 = arith.constant 0 : index
    %c0_13 = arith.constant 0 : index
    %11 = vector.load %arg12[%c0_10, %c0_11, %c0_12, %c0_13] : memref<2x2x1x32xf32, #tpu.memory_space<vmem>>, vector<1x1x1x32xf32>
    %12 = vector.shape_cast %11 : vector<1x1x1x32xf32> to vector<1x32xf32>
    %cst_14 = arith.constant dense<0.000000e+00> : vector<16xf32>
    %13 = vector.multi_reduction <add>, %1, %cst_14 [1] : vector<16x32xf32> to vector<16xf32>
    %14 = vector.shape_cast %13 : vector<16xf32> to vector<16x1xf32>
    %cst_15 = arith.constant 3.200000e+01 : f32
    %15 = vector.broadcast %cst_15 : f32 to vector<16x1xf32>
    %16 = arith.divf %14, %15 : vector<16x1xf32>
    %17 = vector.broadcast %16 : vector<16x1xf32> to vector<16x32xf32>
    %18 = arith.subf %1, %17 : vector<16x32xf32>
    %19 = arith.mulf %18, %18 : vector<16x32xf32>
    %cst_16 = arith.constant dense<0.000000e+00> : vector<16xf32>
    %20 = vector.multi_reduction <add>, %19, %cst_16 [1] : vector<16x32xf32> to vector<16xf32>
    %21 = vector.shape_cast %20 : vector<16xf32> to vector<16x1xf32>
    %cst_17 = arith.constant 0.0322580636 : f32
    %22 = vector.broadcast %cst_17 : f32 to vector<16x1xf32>
    %23 = arith.mulf %21, %22 : vector<16x1xf32>
    %24 = math.sqrt %23 : vector<16x1xf32>
    %cst_18 = arith.constant 9.99999997E-7 : f32
    %25 = vector.broadcast %cst_18 : f32 to vector<16x1xf32>
    %26 = arith.addf %24, %25 : vector<16x1xf32>
    %27 = tpu.reciprocal %26 : vector<16x1xf32> -> vector<16x1xf32>
    %28 = vector.broadcast %16 : vector<16x1xf32> to vector<16x32xf32>
    %29 = arith.subf %1, %28 : vector<16x32xf32>
    %30 = vector.broadcast %10 : vector<1x32xf32> to vector<16x32xf32>
    %31 = arith.mulf %30, %29 : vector<16x32xf32>
    %32 = vector.broadcast %27 : vector<16x1xf32> to vector<16x32xf32>
    %33 = arith.mulf %31, %32 : vector<16x32xf32>
    %34 = vector.broadcast %12 : vector<1x32xf32> to vector<16x32xf32>
    %35 = arith.addf %33, %34 : vector<16x32xf32>
    %c0_19 = arith.constant 0 : index
    %c0_20 = arith.constant 0 : index
    %c0_21 = arith.constant 0 : index
    %36 = vector.load %arg3[%c0_19, %c0_20, %c0_21] : memref<2x32x96xf32, #tpu.memory_space<vmem>>, vector<1x32x96xf32>
    %37 = vector.shape_cast %36 : vector<1x32x96xf32> to vector<32x96xf32>
    %cst_22 = arith.constant dense<0.000000e+00> : vector<16x96xf32>
    %38 = tpu.matmul %35, %37, %cst_22 {dimension_numbers = #tpu.dot_dimension_numbers<[1], [0], [0], [1], [0, 0, 1, 1], [], []>} : vector<16x32xf32>, vector<32x96xf32>, vector<16x96xf32> -> vector<16x96xf32>
    %c0_23 = arith.constant 0 : index
    %c0_24 = arith.constant 0 : index
    %c0_25 = arith.constant 0 : index
    %39 = vector.load %arg4[%c0_23, %c0_24, %c0_25] : memref<2x1x96xf32, #tpu.memory_space<vmem>>, vector<1x1x96xf32>
    %40 = vector.shape_cast %39 : vector<1x1x96xf32> to vector<1x96xf32>
    %41 = vector.broadcast %40 : vector<1x96xf32> to vector<16x96xf32>
    %42 = arith.addf %38, %41 : vector<16x96xf32>
    %43 = vector.extract_strided_slice %42 {offsets = [0, 0], sizes = [16, 32], strides = [1, 1]} : vector<16x96xf32> to vector<16x32xf32>
    %44 = vector.extract_strided_slice %43 {offsets = [0, 0], sizes = [16, 8], strides = [1, 1]} : vector<16x32xf32> to vector<16x8xf32>
    %45 = vector.shape_cast %44 : vector<16x8xf32> to vector<2x8x8xf32>
    %46 = vector.extract_strided_slice %43 {offsets = [0, 8], sizes = [16, 8], strides = [1, 1]} : vector<16x32xf32> to vector<16x8xf32>
    %47 = vector.shape_cast %46 : vector<16x8xf32> to vector<2x8x8xf32>
    %48 = vector.extract_strided_slice %43 {offsets = [0, 16], sizes = [16, 8], strides = [1, 1]} : vector<16x32xf32> to vector<16x8xf32>
    %49 = vector.shape_cast %48 : vector<16x8xf32> to vector<2x8x8xf32>
    %50 = vector.extract_strided_slice %43 {offsets = [0, 24], sizes = [16, 8], strides = [1, 1]} : vector<16x32xf32> to vector<16x8xf32>
    %51 = vector.shape_cast %50 : vector<16x8xf32> to vector<2x8x8xf32>
    %52 = tpu.concatenate %45, %47, %49, %51 in 0 : vector<2x8x8xf32>, vector<2x8x8xf32>, vector<2x8x8xf32>, vector<2x8x8xf32> -> vector<8x8x8xf32>
    %53 = vector.extract_strided_slice %42 {offsets = [0, 32], sizes = [16, 32], strides = [1, 1]} : vector<16x96xf32> to vector<16x32xf32>
    %54 = vector.extract_strided_slice %53 {offsets = [0, 0], sizes = [16, 8], strides = [1, 1]} : vector<16x32xf32> to vector<16x8xf32>
    %55 = vector.shape_cast %54 : vector<16x8xf32> to vector<2x8x8xf32>
    %56 = vector.extract_strided_slice %53 {offsets = [0, 8], sizes = [16, 8], strides = [1, 1]} : vector<16x32xf32> to vector<16x8xf32>
    %57 = vector.shape_cast %56 : vector<16x8xf32> to vector<2x8x8xf32>
    %58 = vector.extract_strided_slice %53 {offsets = [0, 16], sizes = [16, 8], strides = [1, 1]} : vector<16x32xf32> to vector<16x8xf32>
    %59 = vector.shape_cast %58 : vector<16x8xf32> to vector<2x8x8xf32>
    %60 = vector.extract_strided_slice %53 {offsets = [0, 24], sizes = [16, 8], strides = [1, 1]} : vector<16x32xf32> to vector<16x8xf32>
    %61 = vector.shape_cast %60 : vector<16x8xf32> to vector<2x8x8xf32>
    %62 = tpu.concatenate %55, %57, %59, %61 in 0 : vector<2x8x8xf32>, vector<2x8x8xf32>, vector<2x8x8xf32>, vector<2x8x8xf32> -> vector<8x8x8xf32>
    %63 = vector.extract_strided_slice %42 {offsets = [0, 64], sizes = [16, 32], strides = [1, 1]} : vector<16x96xf32> to vector<16x32xf32>
    %64 = vector.extract_strided_slice %63 {offsets = [0, 0], sizes = [16, 8], strides = [1, 1]} : vector<16x32xf32> to vector<16x8xf32>
    %65 = vector.shape_cast %64 : vector<16x8xf32> to vector<2x8x8xf32>
    %66 = vector.extract_strided_slice %63 {offsets = [0, 8], sizes = [16, 8], strides = [1, 1]} : vector<16x32xf32> to vector<16x8xf32>
    %67 = vector.shape_cast %66 : vector<16x8xf32> to vector<2x8x8xf32>
    %68 = vector.extract_strided_slice %63 {offsets = [0, 16], sizes = [16, 8], strides = [1, 1]} : vector<16x32xf32> to vector<16x8xf32>
    %69 = vector.shape_cast %68 : vector<16x8xf32> to vector<2x8x8xf32>
    %70 = vector.extract_strided_slice %63 {offsets = [0, 24], sizes = [16, 8], strides = [1, 1]} : vector<16x32xf32> to vector<16x8xf32>
    %71 = vector.shape_cast %70 : vector<16x8xf32> to vector<2x8x8xf32>
    %72 = tpu.concatenate %65, %67, %69, %71 in 0 : vector<2x8x8xf32>, vector<2x8x8xf32>, vector<2x8x8xf32>, vector<2x8x8xf32> -> vector<8x8x8xf32>
    "tpu.trace_start"() <{level = 10 : i32, message = "bqd,bkd->bqk"}> : () -> ()
    %cst_26 = arith.constant dense<0.000000e+00> : vector<8x8x8xf32>
    %73 = tpu.matmul %52, %62, %cst_26 {dimension_numbers = #tpu.dot_dimension_numbers<[2], [2], [1], [1], [0, 0, 0, 1, 1, 1], [0], [0]>} : vector<8x8x8xf32>, vector<8x8x8xf32>, vector<8x8x8xf32> -> vector<8x8x8xf32>
    "tpu.trace_stop"() : () -> ()
    %cst_27 = arith.constant 0.353553385 : f32
    %74 = vector.broadcast %cst_27 : f32 to vector<8x8x8xf32>
    %75 = arith.mulf %73, %74 : vector<8x8x8xf32>
    %76 = vector.broadcast %8 : vector<8x1x8xf32> to vector<8x8x8xf32>
    %77 = arith.addf %75, %76 : vector<8x8x8xf32>
    %cst_28 = arith.constant dense<0xFF800000> : vector<8x8xf32>
    %78 = vector.multi_reduction <maximumf>, %77, %cst_28 [2] : vector<8x8x8xf32> to vector<8x8xf32>
    %79 = vector.shape_cast %78 : vector<8x8xf32> to vector<8x8x1xf32>
    %80 = vector.broadcast %79 : vector<8x8x1xf32> to vector<8x8x8xf32>
    %81 = arith.subf %77, %80 : vector<8x8x8xf32>
    %82 = math.exp %81 : vector<8x8x8xf32>
    %cst_29 = arith.constant dense<0.000000e+00> : vector<8x8xf32>
    %83 = vector.multi_reduction <add>, %82, %cst_29 [2] : vector<8x8x8xf32> to vector<8x8xf32>
    %84 = vector.shape_cast %83 : vector<8x8xf32> to vector<8x8x1xf32>
    %85 = tpu.reciprocal %84 : vector<8x8x1xf32> -> vector<8x8x1xf32>
    %86 = vector.broadcast %85 : vector<8x8x1xf32> to vector<8x8x8xf32>
    %87 = arith.mulf %82, %86 : vector<8x8x8xf32>
    "tpu.trace_start"() <{level = 10 : i32, message = "bqk,bkd->bqd"}> : () -> ()
    %cst_30 = arith.constant dense<0.000000e+00> : vector<8x8x8xf32>
    %88 = tpu.matmul %87, %72, %cst_30 {dimension_numbers = #tpu.dot_dimension_numbers<[2], [1], [1], [2], [0, 0, 0, 1, 1, 2], [0], [0]>} : vector<8x8x8xf32>, vector<8x8x8xf32>, vector<8x8x8xf32> -> vector<8x8x8xf32>
    "tpu.trace_stop"() : () -> ()
    %89 = vector.extract_strided_slice %88 {offsets = [0, 0, 0], sizes = [2, 8, 8], strides = [1, 1, 1]} : vector<8x8x8xf32> to vector<2x8x8xf32>
    %90 = vector.shape_cast %89 : vector<2x8x8xf32> to vector<16x8xf32>
    %91 = vector.extract_strided_slice %88 {offsets = [2, 0, 0], sizes = [2, 8, 8], strides = [1, 1, 1]} : vector<8x8x8xf32> to vector<2x8x8xf32>
    %92 = vector.shape_cast %91 : vector<2x8x8xf32> to vector<16x8xf32>
    %93 = vector.extract_strided_slice %88 {offsets = [4, 0, 0], sizes = [2, 8, 8], strides = [1, 1, 1]} : vector<8x8x8xf32> to vector<2x8x8xf32>
    %94 = vector.shape_cast %93 : vector<2x8x8xf32> to vector<16x8xf32>
    %95 = vector.extract_strided_slice %88 {offsets = [6, 0, 0], sizes = [2, 8, 8], strides = [1, 1, 1]} : vector<8x8x8xf32> to vector<2x8x8xf32>
    %96 = vector.shape_cast %95 : vector<2x8x8xf32> to vector<16x8xf32>
    %97 = tpu.concatenate %90, %92, %94, %96 in 1 : vector<16x8xf32>, vector<16x8xf32>, vector<16x8xf32>, vector<16x8xf32> -> vector<16x32xf32>
    %c0_31 = arith.constant 0 : index
    %c0_32 = arith.constant 0 : index
    %c0_33 = arith.constant 0 : index
    %98 = vector.load %arg5[%c0_31, %c0_32, %c0_33] : memref<2x32x32xf32, #tpu.memory_space<vmem>>, vector<1x32x32xf32>
    %99 = vector.shape_cast %98 : vector<1x32x32xf32> to vector<32x32xf32>
    %cst_34 = arith.constant dense<0.000000e+00> : vector<16x32xf32>
    %100 = tpu.matmul %97, %99, %cst_34 {dimension_numbers = #tpu.dot_dimension_numbers<[1], [0], [0], [1], [0, 0, 1, 1], [], []>} : vector<16x32xf32>, vector<32x32xf32>, vector<16x32xf32> -> vector<16x32xf32>
    %101 = arith.addf %1, %100 : vector<16x32xf32>
    %c0_35 = arith.constant 0 : index
    %c0_36 = arith.constant 0 : index
    %c0_37 = arith.constant 0 : index
    %102 = vector.load %arg6[%c0_35, %c0_36, %c0_37] : memref<2x1x32xf32, #tpu.memory_space<vmem>>, vector<1x1x32xf32>
    %103 = vector.shape_cast %102 : vector<1x1x32xf32> to vector<1x32xf32>
    %104 = vector.broadcast %103 : vector<1x32xf32> to vector<16x32xf32>
    %105 = arith.addf %101, %104 : vector<16x32xf32>
    %c0_38 = arith.constant 0 : index
    %c1 = arith.constant 1 : index
    %c0_39 = arith.constant 0 : index
    %c0_40 = arith.constant 0 : index
    %106 = vector.load %arg11[%c0_38, %c1, %c0_39, %c0_40] : memref<2x2x1x32xf32, #tpu.memory_space<vmem>>, vector<1x1x1x32xf32>
    %107 = vector.shape_cast %106 : vector<1x1x1x32xf32> to vector<1x32xf32>
    %c0_41 = arith.constant 0 : index
    %c1_42 = arith.constant 1 : index
    %c0_43 = arith.constant 0 : index
    %c0_44 = arith.constant 0 : index
    %108 = vector.load %arg12[%c0_41, %c1_42, %c0_43, %c0_44] : memref<2x2x1x32xf32, #tpu.memory_space<vmem>>, vector<1x1x1x32xf32>
    %109 = vector.shape_cast %108 : vector<1x1x1x32xf32> to vector<1x32xf32>
    %cst_45 = arith.constant dense<0.000000e+00> : vector<16xf32>
    %110 = vector.multi_reduction <add>, %105, %cst_45 [1] : vector<16x32xf32> to vector<16xf32>
    %111 = vector.shape_cast %110 : vector<16xf32> to vector<16x1xf32>
    %cst_46 = arith.constant 3.200000e+01 : f32
    %112 = vector.broadcast %cst_46 : f32 to vector<16x1xf32>
    %113 = arith.divf %111, %112 : vector<16x1xf32>
    %114 = vector.broadcast %113 : vector<16x1xf32> to vector<16x32xf32>
    %115 = arith.subf %105, %114 : vector<16x32xf32>
    %116 = arith.mulf %115, %115 : vector<16x32xf32>
    %cst_47 = arith.constant dense<0.000000e+00> : vector<16xf32>
    %117 = vector.multi_reduction <add>, %116, %cst_47 [1] : vector<16x32xf32> to vector<16xf32>
    %118 = vector.shape_cast %117 : vector<16xf32> to vector<16x1xf32>
    %cst_48 = arith.constant 0.0322580636 : f32
    %119 = vector.broadcast %cst_48 : f32 to vector<16x1xf32>
    %120 = arith.mulf %118, %119 : vector<16x1xf32>
    %121 = math.sqrt %120 : vector<16x1xf32>
    %cst_49 = arith.constant 9.99999997E-7 : f32
    %122 = vector.broadcast %cst_49 : f32 to vector<16x1xf32>
    %123 = arith.addf %121, %122 : vector<16x1xf32>
    %124 = tpu.reciprocal %123 : vector<16x1xf32> -> vector<16x1xf32>
    %125 = vector.broadcast %113 : vector<16x1xf32> to vector<16x32xf32>
    %126 = arith.subf %105, %125 : vector<16x32xf32>
    %127 = vector.broadcast %107 : vector<1x32xf32> to vector<16x32xf32>
    %128 = arith.mulf %127, %126 : vector<16x32xf32>
    %129 = vector.broadcast %124 : vector<16x1xf32> to vector<16x32xf32>
    %130 = arith.mulf %128, %129 : vector<16x32xf32>
    %131 = vector.broadcast %109 : vector<1x32xf32> to vector<16x32xf32>
    %132 = arith.addf %130, %131 : vector<16x32xf32>
    %c0_50 = arith.constant 0 : index
    %c0_51 = arith.constant 0 : index
    %c0_52 = arith.constant 0 : index
    %133 = vector.load %arg7[%c0_50, %c0_51, %c0_52] : memref<2x32x64xf32, #tpu.memory_space<vmem>>, vector<1x32x64xf32>
    %134 = vector.shape_cast %133 : vector<1x32x64xf32> to vector<32x64xf32>
    %cst_53 = arith.constant dense<0.000000e+00> : vector<16x64xf32>
    %135 = tpu.matmul %132, %134, %cst_53 {dimension_numbers = #tpu.dot_dimension_numbers<[1], [0], [0], [1], [0, 0, 1, 1], [], []>} : vector<16x32xf32>, vector<32x64xf32>, vector<16x64xf32> -> vector<16x64xf32>
    %c0_54 = arith.constant 0 : index
    %c0_55 = arith.constant 0 : index
    %c0_56 = arith.constant 0 : index
    %136 = vector.load %arg8[%c0_54, %c0_55, %c0_56] : memref<2x1x64xf32, #tpu.memory_space<vmem>>, vector<1x1x64xf32>
    %137 = vector.shape_cast %136 : vector<1x1x64xf32> to vector<1x64xf32>
    %138 = vector.broadcast %137 : vector<1x64xf32> to vector<16x64xf32>
    %139 = arith.addf %135, %138 : vector<16x64xf32>
    %cst_57 = arith.constant 0.000000e+00 : f32
    %140 = vector.broadcast %cst_57 : f32 to vector<16x64xf32>
    %141 = arith.maximumf %139, %140 : vector<16x64xf32>
    %c0_58 = arith.constant 0 : index
    %c0_59 = arith.constant 0 : index
    %c0_60 = arith.constant 0 : index
    %142 = vector.load %arg9[%c0_58, %c0_59, %c0_60] : memref<2x64x32xf32, #tpu.memory_space<vmem>>, vector<1x64x32xf32>
    %143 = vector.shape_cast %142 : vector<1x64x32xf32> to vector<64x32xf32>
    %cst_61 = arith.constant dense<0.000000e+00> : vector<16x32xf32>
    %144 = tpu.matmul %141, %143, %cst_61 {dimension_numbers = #tpu.dot_dimension_numbers<[1], [0], [0], [1], [0, 0, 1, 1], [], []>} : vector<16x64xf32>, vector<64x32xf32>, vector<16x32xf32> -> vector<16x32xf32>
    %145 = arith.addf %105, %144 : vector<16x32xf32>
    %c0_62 = arith.constant 0 : index
    %c0_63 = arith.constant 0 : index
    %c0_64 = arith.constant 0 : index
    %146 = vector.load %arg10[%c0_62, %c0_63, %c0_64] : memref<2x1x32xf32, #tpu.memory_space<vmem>>, vector<1x1x32xf32>
    %147 = vector.shape_cast %146 : vector<1x1x32xf32> to vector<1x32xf32>
    %148 = vector.broadcast %147 : vector<1x32xf32> to vector<16x32xf32>
    %149 = arith.addf %145, %148 : vector<16x32xf32>
    %c1_65 = arith.constant 1 : index
    %c0_66 = arith.constant 0 : index
    %c0_67 = arith.constant 0 : index
    %c0_68 = arith.constant 0 : index
    %150 = vector.load %arg11[%c1_65, %c0_66, %c0_67, %c0_68] : memref<2x2x1x32xf32, #tpu.memory_space<vmem>>, vector<1x1x1x32xf32>
    %151 = vector.shape_cast %150 : vector<1x1x1x32xf32> to vector<1x32xf32>
    %c1_69 = arith.constant 1 : index
    %c0_70 = arith.constant 0 : index
    %c0_71 = arith.constant 0 : index
    %c0_72 = arith.constant 0 : index
    %152 = vector.load %arg12[%c1_69, %c0_70, %c0_71, %c0_72] : memref<2x2x1x32xf32, #tpu.memory_space<vmem>>, vector<1x1x1x32xf32>
    %153 = vector.shape_cast %152 : vector<1x1x1x32xf32> to vector<1x32xf32>
    %cst_73 = arith.constant dense<0.000000e+00> : vector<16xf32>
    %154 = vector.multi_reduction <add>, %149, %cst_73 [1] : vector<16x32xf32> to vector<16xf32>
    %155 = vector.shape_cast %154 : vector<16xf32> to vector<16x1xf32>
    %cst_74 = arith.constant 3.200000e+01 : f32
    %156 = vector.broadcast %cst_74 : f32 to vector<16x1xf32>
    %157 = arith.divf %155, %156 : vector<16x1xf32>
    %158 = vector.broadcast %157 : vector<16x1xf32> to vector<16x32xf32>
    %159 = arith.subf %149, %158 : vector<16x32xf32>
    %160 = arith.mulf %159, %159 : vector<16x32xf32>
    %cst_75 = arith.constant dense<0.000000e+00> : vector<16xf32>
    %161 = vector.multi_reduction <add>, %160, %cst_75 [1] : vector<16x32xf32> to vector<16xf32>
    %162 = vector.shape_cast %161 : vector<16xf32> to vector<16x1xf32>
    %cst_76 = arith.constant 0.0322580636 : f32
    %163 = vector.broadcast %cst_76 : f32 to vector<16x1xf32>
    %164 = arith.mulf %162, %163 : vector<16x1xf32>
    %165 = math.sqrt %164 : vector<16x1xf32>
    %cst_77 = arith.constant 9.99999997E-7 : f32
    %166 = vector.broadcast %cst_77 : f32 to vector<16x1xf32>
    %167 = arith.addf %165, %166 : vector<16x1xf32>
    %168 = tpu.reciprocal %167 : vector<16x1xf32> -> vector<16x1xf32>
    %169 = vector.broadcast %157 : vector<16x1xf32> to vector<16x32xf32>
    %170 = arith.subf %149, %169 : vector<16x32xf32>
    %171 = vector.broadcast %151 : vector<1x32xf32> to vector<16x32xf32>
    %172 = arith.mulf %171, %170 : vector<16x32xf32>
    %173 = vector.broadcast %168 : vector<16x1xf32> to vector<16x32xf32>
    %174 = arith.mulf %172, %173 : vector<16x32xf32>
    %175 = vector.broadcast %153 : vector<1x32xf32> to vector<16x32xf32>
    %176 = arith.addf %174, %175 : vector<16x32xf32>
    %c1_78 = arith.constant 1 : index
    %c0_79 = arith.constant 0 : index
    %c0_80 = arith.constant 0 : index
    %177 = vector.load %arg3[%c1_78, %c0_79, %c0_80] : memref<2x32x96xf32, #tpu.memory_space<vmem>>, vector<1x32x96xf32>
    %178 = vector.shape_cast %177 : vector<1x32x96xf32> to vector<32x96xf32>
    %cst_81 = arith.constant dense<0.000000e+00> : vector<16x96xf32>
    %179 = tpu.matmul %176, %178, %cst_81 {dimension_numbers = #tpu.dot_dimension_numbers<[1], [0], [0], [1], [0, 0, 1, 1], [], []>} : vector<16x32xf32>, vector<32x96xf32>, vector<16x96xf32> -> vector<16x96xf32>
    %c1_82 = arith.constant 1 : index
    %c0_83 = arith.constant 0 : index
    %c0_84 = arith.constant 0 : index
    %180 = vector.load %arg4[%c1_82, %c0_83, %c0_84] : memref<2x1x96xf32, #tpu.memory_space<vmem>>, vector<1x1x96xf32>
    %181 = vector.shape_cast %180 : vector<1x1x96xf32> to vector<1x96xf32>
    %182 = vector.broadcast %181 : vector<1x96xf32> to vector<16x96xf32>
    %183 = arith.addf %179, %182 : vector<16x96xf32>
    %184 = vector.extract_strided_slice %183 {offsets = [0, 0], sizes = [16, 32], strides = [1, 1]} : vector<16x96xf32> to vector<16x32xf32>
    %185 = vector.extract_strided_slice %184 {offsets = [0, 0], sizes = [16, 8], strides = [1, 1]} : vector<16x32xf32> to vector<16x8xf32>
    %186 = vector.shape_cast %185 : vector<16x8xf32> to vector<2x8x8xf32>
    %187 = vector.extract_strided_slice %184 {offsets = [0, 8], sizes = [16, 8], strides = [1, 1]} : vector<16x32xf32> to vector<16x8xf32>
    %188 = vector.shape_cast %187 : vector<16x8xf32> to vector<2x8x8xf32>
    %189 = vector.extract_strided_slice %184 {offsets = [0, 16], sizes = [16, 8], strides = [1, 1]} : vector<16x32xf32> to vector<16x8xf32>
    %190 = vector.shape_cast %189 : vector<16x8xf32> to vector<2x8x8xf32>
    %191 = vector.extract_strided_slice %184 {offsets = [0, 24], sizes = [16, 8], strides = [1, 1]} : vector<16x32xf32> to vector<16x8xf32>
    %192 = vector.shape_cast %191 : vector<16x8xf32> to vector<2x8x8xf32>
    %193 = tpu.concatenate %186, %188, %190, %192 in 0 : vector<2x8x8xf32>, vector<2x8x8xf32>, vector<2x8x8xf32>, vector<2x8x8xf32> -> vector<8x8x8xf32>
    %194 = vector.extract_strided_slice %183 {offsets = [0, 32], sizes = [16, 32], strides = [1, 1]} : vector<16x96xf32> to vector<16x32xf32>
    %195 = vector.extract_strided_slice %194 {offsets = [0, 0], sizes = [16, 8], strides = [1, 1]} : vector<16x32xf32> to vector<16x8xf32>
    %196 = vector.shape_cast %195 : vector<16x8xf32> to vector<2x8x8xf32>
    %197 = vector.extract_strided_slice %194 {offsets = [0, 8], sizes = [16, 8], strides = [1, 1]} : vector<16x32xf32> to vector<16x8xf32>
    %198 = vector.shape_cast %197 : vector<16x8xf32> to vector<2x8x8xf32>
    %199 = vector.extract_strided_slice %194 {offsets = [0, 16], sizes = [16, 8], strides = [1, 1]} : vector<16x32xf32> to vector<16x8xf32>
    %200 = vector.shape_cast %199 : vector<16x8xf32> to vector<2x8x8xf32>
    %201 = vector.extract_strided_slice %194 {offsets = [0, 24], sizes = [16, 8], strides = [1, 1]} : vector<16x32xf32> to vector<16x8xf32>
    %202 = vector.shape_cast %201 : vector<16x8xf32> to vector<2x8x8xf32>
    %203 = tpu.concatenate %196, %198, %200, %202 in 0 : vector<2x8x8xf32>, vector<2x8x8xf32>, vector<2x8x8xf32>, vector<2x8x8xf32> -> vector<8x8x8xf32>
    %204 = vector.extract_strided_slice %183 {offsets = [0, 64], sizes = [16, 32], strides = [1, 1]} : vector<16x96xf32> to vector<16x32xf32>
    %205 = vector.extract_strided_slice %204 {offsets = [0, 0], sizes = [16, 8], strides = [1, 1]} : vector<16x32xf32> to vector<16x8xf32>
    %206 = vector.shape_cast %205 : vector<16x8xf32> to vector<2x8x8xf32>
    %207 = vector.extract_strided_slice %204 {offsets = [0, 8], sizes = [16, 8], strides = [1, 1]} : vector<16x32xf32> to vector<16x8xf32>
    %208 = vector.shape_cast %207 : vector<16x8xf32> to vector<2x8x8xf32>
    %209 = vector.extract_strided_slice %204 {offsets = [0, 16], sizes = [16, 8], strides = [1, 1]} : vector<16x32xf32> to vector<16x8xf32>
    %210 = vector.shape_cast %209 : vector<16x8xf32> to vector<2x8x8xf32>
    %211 = vector.extract_strided_slice %204 {offsets = [0, 24], sizes = [16, 8], strides = [1, 1]} : vector<16x32xf32> to vector<16x8xf32>
    %212 = vector.shape_cast %211 : vector<16x8xf32> to vector<2x8x8xf32>
    %213 = tpu.concatenate %206, %208, %210, %212 in 0 : vector<2x8x8xf32>, vector<2x8x8xf32>, vector<2x8x8xf32>, vector<2x8x8xf32> -> vector<8x8x8xf32>
    "tpu.trace_start"() <{level = 10 : i32, message = "bqd,bkd->bqk"}> : () -> ()
    %cst_85 = arith.constant dense<0.000000e+00> : vector<8x8x8xf32>
    %214 = tpu.matmul %193, %203, %cst_85 {dimension_numbers = #tpu.dot_dimension_numbers<[2], [2], [1], [1], [0, 0, 0, 1, 1, 1], [0], [0]>} : vector<8x8x8xf32>, vector<8x8x8xf32>, vector<8x8x8xf32> -> vector<8x8x8xf32>
    "tpu.trace_stop"() : () -> ()
    %cst_86 = arith.constant 0.353553385 : f32
    %215 = vector.broadcast %cst_86 : f32 to vector<8x8x8xf32>
    %216 = arith.mulf %214, %215 : vector<8x8x8xf32>
    %217 = vector.broadcast %8 : vector<8x1x8xf32> to vector<8x8x8xf32>
    %218 = arith.addf %216, %217 : vector<8x8x8xf32>
    %cst_87 = arith.constant dense<0xFF800000> : vector<8x8xf32>
    %219 = vector.multi_reduction <maximumf>, %218, %cst_87 [2] : vector<8x8x8xf32> to vector<8x8xf32>
    %220 = vector.shape_cast %219 : vector<8x8xf32> to vector<8x8x1xf32>
    %221 = vector.broadcast %220 : vector<8x8x1xf32> to vector<8x8x8xf32>
    %222 = arith.subf %218, %221 : vector<8x8x8xf32>
    %223 = math.exp %222 : vector<8x8x8xf32>
    %cst_88 = arith.constant dense<0.000000e+00> : vector<8x8xf32>
    %224 = vector.multi_reduction <add>, %223, %cst_88 [2] : vector<8x8x8xf32> to vector<8x8xf32>
    %225 = vector.shape_cast %224 : vector<8x8xf32> to vector<8x8x1xf32>
    %226 = tpu.reciprocal %225 : vector<8x8x1xf32> -> vector<8x8x1xf32>
    %227 = vector.broadcast %226 : vector<8x8x1xf32> to vector<8x8x8xf32>
    %228 = arith.mulf %223, %227 : vector<8x8x8xf32>
    "tpu.trace_start"() <{level = 10 : i32, message = "bqk,bkd->bqd"}> : () -> ()
    %cst_89 = arith.constant dense<0.000000e+00> : vector<8x8x8xf32>
    %229 = tpu.matmul %228, %213, %cst_89 {dimension_numbers = #tpu.dot_dimension_numbers<[2], [1], [1], [2], [0, 0, 0, 1, 1, 2], [0], [0]>} : vector<8x8x8xf32>, vector<8x8x8xf32>, vector<8x8x8xf32> -> vector<8x8x8xf32>
    "tpu.trace_stop"() : () -> ()
    %230 = vector.extract_strided_slice %229 {offsets = [0, 0, 0], sizes = [2, 8, 8], strides = [1, 1, 1]} : vector<8x8x8xf32> to vector<2x8x8xf32>
    %231 = vector.shape_cast %230 : vector<2x8x8xf32> to vector<16x8xf32>
    %232 = vector.extract_strided_slice %229 {offsets = [2, 0, 0], sizes = [2, 8, 8], strides = [1, 1, 1]} : vector<8x8x8xf32> to vector<2x8x8xf32>
    %233 = vector.shape_cast %232 : vector<2x8x8xf32> to vector<16x8xf32>
    %234 = vector.extract_strided_slice %229 {offsets = [4, 0, 0], sizes = [2, 8, 8], strides = [1, 1, 1]} : vector<8x8x8xf32> to vector<2x8x8xf32>
    %235 = vector.shape_cast %234 : vector<2x8x8xf32> to vector<16x8xf32>
    %236 = vector.extract_strided_slice %229 {offsets = [6, 0, 0], sizes = [2, 8, 8], strides = [1, 1, 1]} : vector<8x8x8xf32> to vector<2x8x8xf32>
    %237 = vector.shape_cast %236 : vector<2x8x8xf32> to vector<16x8xf32>
    %238 = tpu.concatenate %231, %233, %235, %237 in 1 : vector<16x8xf32>, vector<16x8xf32>, vector<16x8xf32>, vector<16x8xf32> -> vector<16x32xf32>
    %c1_90 = arith.constant 1 : index
    %c0_91 = arith.constant 0 : index
    %c0_92 = arith.constant 0 : index
    %239 = vector.load %arg5[%c1_90, %c0_91, %c0_92] : memref<2x32x32xf32, #tpu.memory_space<vmem>>, vector<1x32x32xf32>
    %240 = vector.shape_cast %239 : vector<1x32x32xf32> to vector<32x32xf32>
    %cst_93 = arith.constant dense<0.000000e+00> : vector<16x32xf32>
    %241 = tpu.matmul %238, %240, %cst_93 {dimension_numbers = #tpu.dot_dimension_numbers<[1], [0], [0], [1], [0, 0, 1, 1], [], []>} : vector<16x32xf32>, vector<32x32xf32>, vector<16x32xf32> -> vector<16x32xf32>
    %242 = arith.addf %149, %241 : vector<16x32xf32>
    %c1_94 = arith.constant 1 : index
    %c0_95 = arith.constant 0 : index
    %c0_96 = arith.constant 0 : index
    %243 = vector.load %arg6[%c1_94, %c0_95, %c0_96] : memref<2x1x32xf32, #tpu.memory_space<vmem>>, vector<1x1x32xf32>
    %244 = vector.shape_cast %243 : vector<1x1x32xf32> to vector<1x32xf32>
    %245 = vector.broadcast %244 : vector<1x32xf32> to vector<16x32xf32>
    %246 = arith.addf %242, %245 : vector<16x32xf32>
    %c1_97 = arith.constant 1 : index
    %c1_98 = arith.constant 1 : index
    %c0_99 = arith.constant 0 : index
    %c0_100 = arith.constant 0 : index
    %247 = vector.load %arg11[%c1_97, %c1_98, %c0_99, %c0_100] : memref<2x2x1x32xf32, #tpu.memory_space<vmem>>, vector<1x1x1x32xf32>
    %248 = vector.shape_cast %247 : vector<1x1x1x32xf32> to vector<1x32xf32>
    %c1_101 = arith.constant 1 : index
    %c1_102 = arith.constant 1 : index
    %c0_103 = arith.constant 0 : index
    %c0_104 = arith.constant 0 : index
    %249 = vector.load %arg12[%c1_101, %c1_102, %c0_103, %c0_104] : memref<2x2x1x32xf32, #tpu.memory_space<vmem>>, vector<1x1x1x32xf32>
    %250 = vector.shape_cast %249 : vector<1x1x1x32xf32> to vector<1x32xf32>
    %cst_105 = arith.constant dense<0.000000e+00> : vector<16xf32>
    %251 = vector.multi_reduction <add>, %246, %cst_105 [1] : vector<16x32xf32> to vector<16xf32>
    %252 = vector.shape_cast %251 : vector<16xf32> to vector<16x1xf32>
    %cst_106 = arith.constant 3.200000e+01 : f32
    %253 = vector.broadcast %cst_106 : f32 to vector<16x1xf32>
    %254 = arith.divf %252, %253 : vector<16x1xf32>
    %255 = vector.broadcast %254 : vector<16x1xf32> to vector<16x32xf32>
    %256 = arith.subf %246, %255 : vector<16x32xf32>
    %257 = arith.mulf %256, %256 : vector<16x32xf32>
    %cst_107 = arith.constant dense<0.000000e+00> : vector<16xf32>
    %258 = vector.multi_reduction <add>, %257, %cst_107 [1] : vector<16x32xf32> to vector<16xf32>
    %259 = vector.shape_cast %258 : vector<16xf32> to vector<16x1xf32>
    %cst_108 = arith.constant 0.0322580636 : f32
    %260 = vector.broadcast %cst_108 : f32 to vector<16x1xf32>
    %261 = arith.mulf %259, %260 : vector<16x1xf32>
    %262 = math.sqrt %261 : vector<16x1xf32>
    %cst_109 = arith.constant 9.99999997E-7 : f32
    %263 = vector.broadcast %cst_109 : f32 to vector<16x1xf32>
    %264 = arith.addf %262, %263 : vector<16x1xf32>
    %265 = tpu.reciprocal %264 : vector<16x1xf32> -> vector<16x1xf32>
    %266 = vector.broadcast %254 : vector<16x1xf32> to vector<16x32xf32>
    %267 = arith.subf %246, %266 : vector<16x32xf32>
    %268 = vector.broadcast %248 : vector<1x32xf32> to vector<16x32xf32>
    %269 = arith.mulf %268, %267 : vector<16x32xf32>
    %270 = vector.broadcast %265 : vector<16x1xf32> to vector<16x32xf32>
    %271 = arith.mulf %269, %270 : vector<16x32xf32>
    %272 = vector.broadcast %250 : vector<1x32xf32> to vector<16x32xf32>
    %273 = arith.addf %271, %272 : vector<16x32xf32>
    %c1_110 = arith.constant 1 : index
    %c0_111 = arith.constant 0 : index
    %c0_112 = arith.constant 0 : index
    %274 = vector.load %arg7[%c1_110, %c0_111, %c0_112] : memref<2x32x64xf32, #tpu.memory_space<vmem>>, vector<1x32x64xf32>
    %275 = vector.shape_cast %274 : vector<1x32x64xf32> to vector<32x64xf32>
    %cst_113 = arith.constant dense<0.000000e+00> : vector<16x64xf32>
    %276 = tpu.matmul %273, %275, %cst_113 {dimension_numbers = #tpu.dot_dimension_numbers<[1], [0], [0], [1], [0, 0, 1, 1], [], []>} : vector<16x32xf32>, vector<32x64xf32>, vector<16x64xf32> -> vector<16x64xf32>
    %c1_114 = arith.constant 1 : index
    %c0_115 = arith.constant 0 : index
    %c0_116 = arith.constant 0 : index
    %277 = vector.load %arg8[%c1_114, %c0_115, %c0_116] : memref<2x1x64xf32, #tpu.memory_space<vmem>>, vector<1x1x64xf32>
    %278 = vector.shape_cast %277 : vector<1x1x64xf32> to vector<1x64xf32>
    %279 = vector.broadcast %278 : vector<1x64xf32> to vector<16x64xf32>
    %280 = arith.addf %276, %279 : vector<16x64xf32>
    %cst_117 = arith.constant 0.000000e+00 : f32
    %281 = vector.broadcast %cst_117 : f32 to vector<16x64xf32>
    %282 = arith.maximumf %280, %281 : vector<16x64xf32>
    %c1_118 = arith.constant 1 : index
    %c0_119 = arith.constant 0 : index
    %c0_120 = arith.constant 0 : index
    %283 = vector.load %arg9[%c1_118, %c0_119, %c0_120] : memref<2x64x32xf32, #tpu.memory_space<vmem>>, vector<1x64x32xf32>
    %284 = vector.shape_cast %283 : vector<1x64x32xf32> to vector<64x32xf32>
    %cst_121 = arith.constant dense<0.000000e+00> : vector<16x32xf32>
    %285 = tpu.matmul %282, %284, %cst_121 {dimension_numbers = #tpu.dot_dimension_numbers<[1], [0], [0], [1], [0, 0, 1, 1], [], []>} : vector<16x64xf32>, vector<64x32xf32>, vector<16x32xf32> -> vector<16x32xf32>
    %286 = arith.addf %246, %285 : vector<16x32xf32>
    %c1_122 = arith.constant 1 : index
    %c0_123 = arith.constant 0 : index
    %c0_124 = arith.constant 0 : index
    %287 = vector.load %arg10[%c1_122, %c0_123, %c0_124] : memref<2x1x32xf32, #tpu.memory_space<vmem>>, vector<1x1x32xf32>
    %288 = vector.shape_cast %287 : vector<1x1x32xf32> to vector<1x32xf32>
    %289 = vector.broadcast %288 : vector<1x32xf32> to vector<16x32xf32>
    %290 = arith.addf %286, %289 : vector<16x32xf32>
    %c0_125 = arith.constant 0 : index
    %c0_126 = arith.constant 0 : index
    %291 = vector.load %arg13[%c0_125, %c0_126] : memref<1x32xf32, #tpu.memory_space<vmem>>, vector<1x32xf32>
    %c0_127 = arith.constant 0 : index
    %c0_128 = arith.constant 0 : index
    %292 = vector.load %arg14[%c0_127, %c0_128] : memref<1x32xf32, #tpu.memory_space<vmem>>, vector<1x32xf32>
    %cst_129 = arith.constant dense<0.000000e+00> : vector<16xf32>
    %293 = vector.multi_reduction <add>, %290, %cst_129 [1] : vector<16x32xf32> to vector<16xf32>
    %294 = vector.shape_cast %293 : vector<16xf32> to vector<16x1xf32>
    %cst_130 = arith.constant 3.200000e+01 : f32
    %295 = vector.broadcast %cst_130 : f32 to vector<16x1xf32>
    %296 = arith.divf %294, %295 : vector<16x1xf32>
    %297 = vector.broadcast %296 : vector<16x1xf32> to vector<16x32xf32>
    %298 = arith.subf %290, %297 : vector<16x32xf32>
    %299 = arith.mulf %298, %298 : vector<16x32xf32>
    %cst_131 = arith.constant dense<0.000000e+00> : vector<16xf32>
    %300 = vector.multi_reduction <add>, %299, %cst_131 [1] : vector<16x32xf32> to vector<16xf32>
    %301 = vector.shape_cast %300 : vector<16xf32> to vector<16x1xf32>
    %cst_132 = arith.constant 0.0322580636 : f32
    %302 = vector.broadcast %cst_132 : f32 to vector<16x1xf32>
    %303 = arith.mulf %301, %302 : vector<16x1xf32>
    %304 = math.sqrt %303 : vector<16x1xf32>
    %cst_133 = arith.constant 9.99999997E-7 : f32
    %305 = vector.broadcast %cst_133 : f32 to vector<16x1xf32>
    %306 = arith.addf %304, %305 : vector<16x1xf32>
    %307 = tpu.reciprocal %306 : vector<16x1xf32> -> vector<16x1xf32>
    %308 = vector.broadcast %296 : vector<16x1xf32> to vector<16x32xf32>
    %309 = arith.subf %290, %308 : vector<16x32xf32>
    %310 = vector.broadcast %291 : vector<1x32xf32> to vector<16x32xf32>
    %311 = arith.mulf %310, %309 : vector<16x32xf32>
    %312 = vector.broadcast %307 : vector<16x1xf32> to vector<16x32xf32>
    %313 = arith.mulf %311, %312 : vector<16x32xf32>
    %314 = vector.broadcast %292 : vector<1x32xf32> to vector<16x32xf32>
    %315 = arith.addf %313, %314 : vector<16x32xf32>
    %316 = vector.shape_cast %315 : vector<16x32xf32> to vector<2x8x32xf32>
    %317 = vector.extract_strided_slice %316 {offsets = [0, 0, 0], sizes = [2, 1, 32], strides = [1, 1, 1]} : vector<2x8x32xf32> to vector<2x1x32xf32>
    %318 = vector.shape_cast %317 : vector<2x1x32xf32> to vector<2x32xf32>
    %319 = vector.extract_strided_slice %316 {offsets = [0, 1, 0], sizes = [2, 1, 32], strides = [1, 1, 1]} : vector<2x8x32xf32> to vector<2x1x32xf32>
    %320 = vector.shape_cast %319 : vector<2x1x32xf32> to vector<2x32xf32>
    %321 = vector.extract_strided_slice %316 {offsets = [0, 2, 0], sizes = [2, 1, 32], strides = [1, 1, 1]} : vector<2x8x32xf32> to vector<2x1x32xf32>
    %322 = vector.shape_cast %321 : vector<2x1x32xf32> to vector<2x32xf32>
    %323 = vector.extract_strided_slice %316 {offsets = [0, 3, 0], sizes = [2, 1, 32], strides = [1, 1, 1]} : vector<2x8x32xf32> to vector<2x1x32xf32>
    %324 = vector.shape_cast %323 : vector<2x1x32xf32> to vector<2x32xf32>
    %325 = vector.extract_strided_slice %316 {offsets = [0, 4, 0], sizes = [2, 1, 32], strides = [1, 1, 1]} : vector<2x8x32xf32> to vector<2x1x32xf32>
    %326 = vector.shape_cast %325 : vector<2x1x32xf32> to vector<2x32xf32>
    %327 = vector.extract_strided_slice %316 {offsets = [0, 5, 0], sizes = [2, 1, 32], strides = [1, 1, 1]} : vector<2x8x32xf32> to vector<2x1x32xf32>
    %328 = vector.shape_cast %327 : vector<2x1x32xf32> to vector<2x32xf32>
    %329 = vector.extract_strided_slice %316 {offsets = [0, 6, 0], sizes = [2, 1, 32], strides = [1, 1, 1]} : vector<2x8x32xf32> to vector<2x1x32xf32>
    %330 = vector.shape_cast %329 : vector<2x1x32xf32> to vector<2x32xf32>
    %331 = vector.extract_strided_slice %316 {offsets = [0, 7, 0], sizes = [2, 1, 32], strides = [1, 1, 1]} : vector<2x8x32xf32> to vector<2x1x32xf32>
    %332 = vector.shape_cast %331 : vector<2x1x32xf32> to vector<2x32xf32>
    %333 = tpu.concatenate %318, %320, %322, %324, %326, %328, %330, %332 in 1 : vector<2x32xf32>, vector<2x32xf32>, vector<2x32xf32>, vector<2x32xf32>, vector<2x32xf32>, vector<2x32xf32>, vector<2x32xf32>, vector<2x32xf32> -> vector<2x256xf32>
    %c0_134 = arith.constant 0 : index
    %c0_135 = arith.constant 0 : index
    %c0_136 = arith.constant 0 : index
    %334 = vector.load %arg15[%c0_134, %c0_135, %c0_136] : memref<1x2x256xf32, #tpu.memory_space<vmem>>, vector<1x2x256xf32>
    %335 = vector.shape_cast %334 : vector<1x2x256xf32> to vector<2x256xf32>
    %336 = vector.shape_cast %333 : vector<2x256xf32> to vector<1x2x256xf32>
    tpu.vector_store %arg15[%c0_134, %c0_135, %c0_136], %336 {strides = array<i32>} : memref<1x2x256xf32, #tpu.memory_space<vmem>>, vector<1x2x256xf32>,
    return
  }
  func.func @transform_0(%arg0: i32) -> (i32, i32, i32) {
    %c0_i32 = arith.constant 0 : i32
    %c0_i32_0 = arith.constant 0 : i32
    %c0_i32_1 = arith.constant 0 : i32
    return %arg0, %c0_i32, %c0_i32_0 : i32, i32, i32
  }
  func.func @transform_1(%arg0: i32) -> (i32, i32, i32) {
    %c0_i32 = arith.constant 0 : i32
    %c0_i32_0 = arith.constant 0 : i32
    %c0_i32_1 = arith.constant 0 : i32
    return %arg0, %c0_i32, %c0_i32_0 : i32, i32, i32
  }
  func.func @transform_2(%arg0: i32) -> (i32, i32, i32) {
    %c0_i32 = arith.constant 0 : i32
    %c0_i32_0 = arith.constant 0 : i32
    %c0_i32_1 = arith.constant 0 : i32
    %c0_i32_2 = arith.constant 0 : i32
    return %c0_i32, %c0_i32_0, %c0_i32_1 : i32, i32, i32
  }
  func.func @transform_3(%arg0: i32) -> (i32, i32, i32) {
    %c0_i32 = arith.constant 0 : i32
    %c0_i32_0 = arith.constant 0 : i32
    %c0_i32_1 = arith.constant 0 : i32
    %c0_i32_2 = arith.constant 0 : i32
    return %c0_i32, %c0_i32_0, %c0_i32_1 : i32, i32, i32
  }
  func.func @transform_4(%arg0: i32) -> (i32, i32, i32) {
    %c0_i32 = arith.constant 0 : i32
    %c0_i32_0 = arith.constant 0 : i32
    %c0_i32_1 = arith.constant 0 : i32
    %c0_i32_2 = arith.constant 0 : i32
    return %c0_i32, %c0_i32_0, %c0_i32_1 : i32, i32, i32
  }
  func.func @transform_5(%arg0: i32) -> (i32, i32, i32) {
    %c0_i32 = arith.constant 0 : i32
    %c0_i32_0 = arith.constant 0 : i32
    %c0_i32_1 = arith.constant 0 : i32
    %c0_i32_2 = arith.constant 0 : i32
    return %c0_i32, %c0_i32_0, %c0_i32_1 : i32, i32, i32
  }
  func.func @transform_6(%arg0: i32) -> (i32, i32, i32) {
    %c0_i32 = arith.constant 0 : i32
    %c0_i32_0 = arith.constant 0 : i32
    %c0_i32_1 = arith.constant 0 : i32
    %c0_i32_2 = arith.constant 0 : i32
    return %c0_i32, %c0_i32_0, %c0_i32_1 : i32, i32, i32
  }
  func.func @transform_7(%arg0: i32) -> (i32, i32, i32) {
    %c0_i32 = arith.constant 0 : i32
    %c0_i32_0 = arith.constant 0 : i32
    %c0_i32_1 = arith.constant 0 : i32
    %c0_i32_2 = arith.constant 0 : i32
    return %c0_i32, %c0_i32_0, %c0_i32_1 : i32, i32, i32
  }
  func.func @transform_8(%arg0: i32) -> (i32, i32, i32) {
    %c0_i32 = arith.constant 0 : i32
    %c0_i32_0 = arith.constant 0 : i32
    %c0_i32_1 = arith.constant 0 : i32
    %c0_i32_2 = arith.constant 0 : i32
    return %c0_i32, %c0_i32_0, %c0_i32_1 : i32, i32, i32
  }
  func.func @transform_9(%arg0: i32) -> (i32, i32, i32) {
    %c0_i32 = arith.constant 0 : i32
    %c0_i32_0 = arith.constant 0 : i32
    %c0_i32_1 = arith.constant 0 : i32
    %c0_i32_2 = arith.constant 0 : i32
    return %c0_i32, %c0_i32_0, %c0_i32_1 : i32, i32, i32
  }
  func.func @transform_10(%arg0: i32) -> (i32, i32, i32, i32) {
    %c0_i32 = arith.constant 0 : i32
    %c0_i32_0 = arith.constant 0 : i32
    %c0_i32_1 = arith.constant 0 : i32
    %c0_i32_2 = arith.constant 0 : i32
    %c0_i32_3 = arith.constant 0 : i32
    return %c0_i32, %c0_i32_0, %c0_i32_1, %c0_i32_2 : i32, i32, i32, i32
  }
  func.func @transform_11(%arg0: i32) -> (i32, i32, i32, i32) {
    %c0_i32 = arith.constant 0 : i32
    %c0_i32_0 = arith.constant 0 : i32
    %c0_i32_1 = arith.constant 0 : i32
    %c0_i32_2 = arith.constant 0 : i32
    %c0_i32_3 = arith.constant 0 : i32
    return %c0_i32, %c0_i32_0, %c0_i32_1, %c0_i32_2 : i32, i32, i32, i32
  }
  func.func @transform_12(%arg0: i32) -> (i32, i32) {
    %c0_i32 = arith.constant 0 : i32
    %c0_i32_0 = arith.constant 0 : i32
    %c0_i32_1 = arith.constant 0 : i32
    return %c0_i32, %c0_i32_0 : i32, i32
  }
  func.func @transform_13(%arg0: i32) -> (i32, i32) {
    %c0_i32 = arith.constant 0 : i32
    %c0_i32_0 = arith.constant 0 : i32
    %c0_i32_1 = arith.constant 0 : i32
    return %c0_i32, %c0_i32_0 : i32, i32
  }
  func.func @transform_14(%arg0: i32) -> (i32, i32, i32) {
    %c0_i32 = arith.constant 0 : i32
    %c0_i32_0 = arith.constant 0 : i32
    %c0_i32_1 = arith.constant 0 : i32
    return %arg0, %c0_i32, %c0_i32_0 : i32, i32, i32
  }
}

</mosaic_0001>

<llo_original>
// kernel: tpu_custom_call.1
$region0: #{tpu_custom_call.1}
  #allocation0 [shape = 'u32[]', space=smem, size = 0x4, offset = 0x4, fixed_abs, tag = 'smem constant byte address 0x4 - core index']
  #allocation1 [shape = 'u32[72,128]{1,0:T(1,128)}', space=vmem, size = 0x9000, scoped, tag = 'internal scratch']
  %s0 = inlined_call_operand.hbm [shape: f32[2,8,32], index: 0, kind: input, shape index: {}]
  %s1 = inlined_call_operand.hbm [shape: s32[2,1,8], index: 1, kind: input, shape index: {}]
  %s2 = inlined_call_operand.vmem [shape: f32[2,32,96], index: 2, kind: input, shape index: {}]
  %s3 = inlined_call_operand.hbm [shape: f32[2,1,96], index: 3, kind: input, shape index: {}]
  %s4 = inlined_call_operand.vmem [shape: f32[2,32,32], index: 4, kind: input, shape index: {}]
  %s5 = inlined_call_operand.hbm [shape: f32[2,1,32], index: 5, kind: input, shape index: {}]
  %s6 = inlined_call_operand.vmem [shape: f32[2,32,64], index: 6, kind: input, shape index: {}]
  %s7 = inlined_call_operand.hbm [shape: f32[2,1,64], index: 7, kind: input, shape index: {}]
  %s8 = inlined_call_operand.vmem [shape: f32[2,64,32], index: 8, kind: input, shape index: {}]
  %s9 = inlined_call_operand.hbm [shape: f32[2,1,32], index: 9, kind: input, shape index: {}]
  %s10 = inlined_call_operand.vmem [shape: f32[2,2,1,32], index: 10, kind: input, shape index: {}]
  %s11 = inlined_call_operand.vmem [shape: f32[2,2,1,32], index: 11, kind: input, shape index: {}]
  %s12 = inlined_call_operand.vmem [shape: f32[1,32], index: 12, kind: input, shape index: {}]
  %s13 = inlined_call_operand.vmem [shape: f32[1,32], index: 13, kind: input, shape index: {}]
  %s14 = inlined_call_operand.hbm [shape: f32[1,2,256], index: 14, kind: output, shape index: {}]
  %s15 = sld [smem:[#allocation0]]
  $region90: #{tpu_custom_call.1} parent=0
    _
  %s17 = ssub.s32 1, %s15
  %s18 = scalar_select 0, %s17, %s15
  $region1: #{tpu_custom_call.1} parent=0
    #allocation2 [shape = 'u8[8192]{0}', space=vmem, size = 0x2000, scoped, tag = 'input window, operand 0, single buffered']
    #allocation3 [shape = 's32[1]{0}', space=sflag, size = 0x4, scoped, tag = 'scoped memory for tpu_custom_call.1']
    #allocation4 [shape = 's32[1]{0}', space=sflag, size = 0x4, scoped, tag = 'scoped memory for tpu_custom_call.1']
    #allocation5 [shape = 'u8[1024]{0}', space=vmem, size = 0x400, scoped, tag = 'input window, operand 1, single buffered']
    #allocation6 [shape = 's32[1]{0}', space=sflag, size = 0x4, scoped, tag = 'scoped memory for tpu_custom_call.1']
    #allocation7 [shape = 'u8[1024]{0}', space=vmem, size = 0x400, scoped, tag = 'input window, operand 3, single buffered']
    #allocation8 [shape = 'u8[1024]{0}', space=vmem, size = 0x400, scoped, tag = 'input window, operand 5, single buffered']
    #allocation9 [shape = 's32[1]{0}', space=sflag, size = 0x4, scoped, tag = 'scoped memory for tpu_custom_call.1']
    #allocation10 [shape = 'u8[1024]{0}', space=vmem, size = 0x400, scoped, tag = 'input window, operand 7, single buffered']
    #allocation11 [shape = 'u8[1024]{0}', space=vmem, size = 0x400, scoped, tag = 'input window, operand 9, single buffered']
    #allocation12 [shape = 's32[1]{0}', space=sflag, size = 0x4, scoped, tag = 'scoped memory for tpu_custom_call.1']
    #allocation13 [shape = 'u8[2048]{0}', space=vmem, size = 0x800, scoped, tag = 'output window, operand 0, single buffered']
    %19 = vsyncpa [#allocation3], 0
    %20 = vsyncpa [#allocation6], 0
    %21 = vsyncpa [#allocation9], 0
    %22 = vsyncpa [#allocation12], 0
    %23 = vsyncpa [#allocation4], 0
    // Predicated region
    $region2: #{tpu_custom_call.1} parent=1 // pred_check
      _
    $region3: #{tpu_custom_call.1} parent=1 // pred_check_branch
      %25 = sbr.rel (0) target = $region5
    $region4: #{tpu_custom_call.1} parent=1 // pred_region
      %27 = vsyncadd [#allocation3], 0
      %s28 = sshll.u32 %s0, 4
      %s29 = int_to_ptr.hbm [resolvable:$true] %s28
      %s30 = sshll.u32 [#allocation2], 4
      %s31 = int_to_ptr.vmem [resolvable:$true] %s30
      %36 = dma.hbm_to_vmem [thread:$0]  %s29, 256, %s31, [#allocation3], 128, 128, 8
    $region5: #{tpu_custom_call.1} parent=1 // pred_fallthru
      _
    // Predicated region
    $region6: #{tpu_custom_call.1} parent=1 // pred_check
      _
    $region7: #{tpu_custom_call.1} parent=1 // pred_check_branch
      %38 = sbr.rel (0) target = $region9
    $region8: #{tpu_custom_call.1} parent=1 // pred_region
      %40 = vsyncadd [#allocation6], 0
      %s41 = sshll.u32 %s1, 4
      %s42 = int_to_ptr.hbm [resolvable:$true] %s41
      %s43 = sshll.u32 [#allocation5], 4
      %s44 = int_to_ptr.vmem [resolvable:$true] %s43
      %49 = dma.hbm_to_vmem [thread:$0]  %s42, 32, %s44, [#allocation6], 16, 16, 1
    $region9: #{tpu_custom_call.1} parent=1 // pred_fallthru
      _
    // Predicated region
    $region10: #{tpu_custom_call.1} parent=1 // pred_check
      _
    $region11: #{tpu_custom_call.1} parent=1 // pred_check_branch
      %51 = sbr.rel (0) target = $region13
    $region12: #{tpu_custom_call.1} parent=1 // pred_region
      _
    $region13: #{tpu_custom_call.1} parent=1 // pred_fallthru
      _
    // Predicated region
    $region14: #{tpu_custom_call.1} parent=1 // pred_check
      _
    $region15: #{tpu_custom_call.1} parent=1 // pred_check_branch
      %53 = sbr.rel (0) target = $region17
    $region16: #{tpu_custom_call.1} parent=1 // pred_region
      %55 = vsyncadd [#allocation6], 0
      %s56 = sshll.u32 %s3, 4
      %s57 = int_to_ptr.hbm [resolvable:$true] %s56
      %s58 = sshll.u32 [#allocation7], 4
      %s59 = int_to_ptr.vmem [resolvable:$true] %s58
      %64 = dma.hbm_to_vmem [thread:$0]  %s57, 32, %s59, [#allocation6], 16, 16, 1
    $region17: #{tpu_custom_call.1} parent=1 // pred_fallthru
      _
    // Predicated region
    $region18: #{tpu_custom_call.1} parent=1 // pred_check
      _
    $region19: #{tpu_custom_call.1} parent=1 // pred_check_branch
      %66 = sbr.rel (0) target = $region21
    $region20: #{tpu_custom_call.1} parent=1 // pred_region
      _
    $region21: #{tpu_custom_call.1} parent=1 // pred_fallthru
      _
    // Predicated region
    $region22: #{tpu_custom_call.1} parent=1 // pred_check
      _
    $region23: #{tpu_custom_call.1} parent=1 // pred_check_branch
      %68 = sbr.rel (0) target = $region25
    $region24: #{tpu_custom_call.1} parent=1 // pred_region
      %70 = vsyncadd [#allocation9], 0
      %s71 = sshll.u32 %s5, 4
      %s72 = int_to_ptr.hbm [resolvable:$true] %s71
      %s73 = sshll.u32 [#allocation8], 4
      %s74 = int_to_ptr.vmem [resolvable:$true] %s73
      %79 = dma.hbm_to_vmem [thread:$0]  %s72, 32, %s74, [#allocation9], 16, 16, 1
    $region25: #{tpu_custom_call.1} parent=1 // pred_fallthru
      _
    // Predicated region
    $region26: #{tpu_custom_call.1} parent=1 // pred_check
      _
    $region27: #{tpu_custom_call.1} parent=1 // pred_check_branch
      %81 = sbr.rel (0) target = $region29
    $region28: #{tpu_custom_call.1} parent=1 // pred_region
      _
    $region29: #{tpu_custom_call.1} parent=1 // pred_fallthru
      _
    // Predicated region
    $region30: #{tpu_custom_call.1} parent=1 // pred_check
      _
    $region31: #{tpu_custom_call.1} parent=1 // pred_check_branch
      %83 = sbr.rel (0) target = $region33
    $region32: #{tpu_custom_call.1} parent=1 // pred_region
      %85 = vsyncadd [#allocation9], 0
      %s86 = sshll.u32 %s7, 4
      %s87 = int_to_ptr.hbm [resolvable:$true] %s86
      %s88 = sshll.u32 [#allocation10], 4
      %s89 = int_to_ptr.vmem [resolvable:$true] %s88
      %94 = dma.hbm_to_vmem [thread:$0]  %s87, 32, %s89, [#allocation9], 16, 16, 1
    $region33: #{tpu_custom_call.1} parent=1 // pred_fallthru
      _
    // Predicated region
    $region34: #{tpu_custom_call.1} parent=1 // pred_check
      _
    $region35: #{tpu_custom_call.1} parent=1 // pred_check_branch
      %96 = sbr.rel (0) target = $region37
    $region36: #{tpu_custom_call.1} parent=1 // pred_region
      _
    $region37: #{tpu_custom_call.1} parent=1 // pred_fallthru
      _
    // Predicated region
    $region38: #{tpu_custom_call.1} parent=1 // pred_check
      _
    $region39: #{tpu_custom_call.1} parent=1 // pred_check_branch
      %98 = sbr.rel (0) target = $region41
    $region40: #{tpu_custom_call.1} parent=1 // pred_region
      %100 = vsyncadd [#allocation12], 0
      %s101 = sshll.u32 %s9, 4
      %s102 = int_to_ptr.hbm [resolvable:$true] %s101
      %s103 = sshll.u32 [#allocation11], 4
      %s104 = int_to_ptr.vmem [resolvable:$true] %s103
      %109 = dma.hbm_to_vmem [thread:$0]  %s102, 32, %s104, [#allocation12], 16, 16, 1
    $region41: #{tpu_custom_call.1} parent=1 // pred_fallthru
      _
    // Predicated region
    $region42: #{tpu_custom_call.1} parent=1 // pred_check
      _
    $region43: #{tpu_custom_call.1} parent=1 // pred_check_branch
      %111 = sbr.rel (0) target = $region45
    $region44: #{tpu_custom_call.1} parent=1 // pred_region
      _
    $region45: #{tpu_custom_call.1} parent=1 // pred_fallthru
      _
    // Predicated region
    $region46: #{tpu_custom_call.1} parent=1 // pred_check
      _
    $region47: #{tpu_custom_call.1} parent=1 // pred_check_branch
      %113 = sbr.rel (0) target = $region49
    $region48: #{tpu_custom_call.1} parent=1 // pred_region
      _
    $region49: #{tpu_custom_call.1} parent=1 // pred_fallthru
      _
    // Predicated region
    $region50: #{tpu_custom_call.1} parent=1 // pred_check
      _
    $region51: #{tpu_custom_call.1} parent=1 // pred_check_branch
      %115 = sbr.rel (0) target = $region53
    $region52: #{tpu_custom_call.1} parent=1 // pred_region
      _
    $region53: #{tpu_custom_call.1} parent=1 // pred_fallthru
      _
    // Predicated region
    $region54: #{tpu_custom_call.1} parent=1 // pred_check
      _
    $region55: #{tpu_custom_call.1} parent=1 // pred_check_branch
      %117 = sbr.rel (0) target = $region57
    $region56: #{tpu_custom_call.1} parent=1 // pred_region
      _
    $region57: #{tpu_custom_call.1} parent=1 // pred_fallthru
      _
    // Predicated region
    $region58: #{tpu_custom_call.1} parent=1 // pred_check
      _
    $region59: #{tpu_custom_call.1} parent=1 // pred_check_branch
      %119 = sbr.rel (0) target = $region61
    $region60: #{tpu_custom_call.1} parent=1 // pred_region
      %121 = dma.done [#allocation3], 256
    $region61: #{tpu_custom_call.1} parent=1 // pred_fallthru
      _
    // Predicated region
    $region62: #{tpu_custom_call.1} parent=1 // pred_check
      _
    $region63: #{tpu_custom_call.1} parent=1 // pred_check_branch
      %123 = sbr.rel (0) target = $region65
    $region64: #{tpu_custom_call.1} parent=1 // pred_region
      %125 = dma.done [#allocation6], 32
    $region65: #{tpu_custom_call.1} parent=1 // pred_fallthru
      _
    // Predicated region
    $region66: #{tpu_custom_call.1} parent=1 // pred_check
      _
    $region67: #{tpu_custom_call.1} parent=1 // pred_check_branch
      %127 = sbr.rel (0) target = $region69
    $region68: #{tpu_custom_call.1} parent=1 // pred_region
      %129 = dma.done [#allocation6], 32
    $region69: #{tpu_custom_call.1} parent=1 // pred_fallthru
      _
    // Predicated region
    $region70: #{tpu_custom_call.1} parent=1 // pred_check
      _
    $region71: #{tpu_custom_call.1} parent=1 // pred_check_branch
      %131 = sbr.rel (0) target = $region73
    $region72: #{tpu_custom_call.1} parent=1 // pred_region
      %133 = dma.done [#allocation9], 32
    $region73: #{tpu_custom_call.1} parent=1 // pred_fallthru
      _
    // Predicated region
    $region74: #{tpu_custom_call.1} parent=1 // pred_check
      _
    $region75: #{tpu_custom_call.1} parent=1 // pred_check_branch
      %135 = sbr.rel (0) target = $region77
    $region76: #{tpu_custom_call.1} parent=1 // pred_region
      %137 = dma.done [#allocation9], 32
    $region77: #{tpu_custom_call.1} parent=1 // pred_fallthru
      _
    // Predicated region
    $region78: #{tpu_custom_call.1} parent=1 // pred_check
      _
    $region79: #{tpu_custom_call.1} parent=1 // pred_check_branch
      %139 = sbr.rel (0) target = $region81
    $region80: #{tpu_custom_call.1} parent=1 // pred_region
      %141 = dma.done [#allocation12], 32
    $region81: #{tpu_custom_call.1} parent=1 // pred_fallthru
      _
    %v142 = vld [vmem:[#allocation2] sm:$0xff]
    %v143 = vld [vmem:[#allocation2 + $0x8] sm:$0xff]
    %v144 = vld [vmem:[#allocation5] sm:$0x1]
    %v145 = vld [vmem:[#allocation5 + $0x1] sm:$0x1]
    %vm146 = vcmp.eq.s32.totalorder %v144, 0
    %vm147 = vcmp.eq.s32.totalorder %v145, 0
    %v148 = vsel %vm146, -1e+09, 0.0
    %v149 = vsel %vm147, -1e+09, 0.0
    %v150 = vld [vmem:[%s10] sm:$0x1]
    %v151 = vld [vmem:[%s11] sm:$0x1]
    %vm152 = vcmask 261120
    %v153 = vsel %vm152, %v142, 0.0
    %154 = vadd.xlane.f32.xlu0 %v153
    %v155 = vpop.xlane.xlu0 %154
    %v156 = vsel %vm152, %v143, 0.0
    %157 = vadd.xlane.f32.xlu0 %v156
    %v158 = vpop.xlane.xlu0 %157
    %v159 = vrcp.pop 32.0
    %v160 = vmul.f32 32.0, %v159
    %v161 = vsub.f32 1.0, %v160
    %v162 = vmul.f32 %v159, %v161
    %v163 = vadd.f32 %v159, %v162
    %vm164 = vweird.f32 %v159
    %v165 = vsel %vm164, %v159, %v163
    %v166 = vmul.f32 %v155, %v165
    %v167 = vmul.f32 %v158, %v165
    %v168 = vsub.f32 %v142, %v166
    %v169 = vsub.f32 %v143, %v167
    %v170 = vmul.f32 %v168, %v168
    %v171 = vmul.f32 %v169, %v169
    %v172 = vsel %vm152, %v170, 0.0
    %173 = vadd.xlane.f32.xlu0 %v172
    %v174 = vpop.xlane.xlu0 %173
    %v175 = vsel %vm152, %v171, 0.0
    %176 = vadd.xlane.f32.xlu0 %v175
    %v177 = vpop.xlane.xlu0 %176
    %v178 = vmul.f32 %v174, 0.032258064
    %v179 = vmul.f32 %v177, 0.032258064
    %v180 = vrsqrt.pop %v178
    %v181 = vmul.f32 %v180, %v178
    %v182 = vmul.f32 %v181, %v180
    %v183 = vmul.f32 0.5, %v182
    %v184 = vsub.f32 1.5, %v183
    %v185 = vmul.f32 %v180, %v184
    %v186 = vmul.f32 %v178, %v185
    %vm187 = vcmp.eq.f32.partialorder %v178, inf
    %v188 = vsel %vm187, %v178, %v186
    %vm189 = vcmp.eq.f32.partialorder %v178, 0.0
    %v190 = vand.u32 %v178, 2147483648
    %v191 = vsel %vm189, %v190, %v188
    %v192 = vrsqrt.pop %v179
    %v193 = vmul.f32 %v192, %v179
    %v194 = vmul.f32 %v193, %v192
    %v195 = vmul.f32 0.5, %v194
    %v196 = vsub.f32 1.5, %v195
    %v197 = vmul.f32 %v192, %v196
    %v198 = vmul.f32 %v179, %v197
    %vm199 = vcmp.eq.f32.partialorder %v179, inf
    %v200 = vsel %vm199, %v179, %v198
    %vm201 = vcmp.eq.f32.partialorder %v179, 0.0
    %v202 = vand.u32 %v179, 2147483648
    %v203 = vsel %vm201, %v202, %v200
    %v204 = vadd.f32 %v191, 1e-06
    %v205 = vadd.f32 %v203, 1e-06
    %v206 = vrcp.pop %v204
    %v207 = vmul.f32 %v204, %v206
    %v208 = vsub.f32 1.0, %v207
    %v209 = vmul.f32 %v206, %v208
    %v210 = vadd.f32 %v206, %v209
    %vm211 = vweird.f32 %v204
    %vm212 = vweird.f32 %v206
    %vm213 = vmor %vm211, %vm212
    %v214 = vsel %vm213, %v206, %v210
    %v215 = vand.u32 2147483647, %v204
    %vm216 = vcmp.eq.f32.partialorder %v215, 8.507059e+37
    %v217 = vand.u32 %v204, 2147483648
    %v218 = vor.u32 1.1754944e-38, %v217
    %v219 = vsel %vm216, %v218, %v214
    %v220 = vrcp.pop %v205
    %v221 = vmul.f32 %v205, %v220
    %v222 = vsub.f32 1.0, %v221
    %v223 = vmul.f32 %v220, %v222
    %v224 = vadd.f32 %v220, %v223
    %vm225 = vweird.f32 %v205
    %vm226 = vweird.f32 %v220
    %vm227 = vmor %vm225, %vm226
    %v228 = vsel %vm227, %v220, %v224
    %v229 = vand.u32 2147483647, %v205
    %vm230 = vcmp.eq.f32.partialorder %v229, 8.507059e+37
    %v231 = vand.u32 %v205, 2147483648
    %v232 = vor.u32 1.1754944e-38, %v231
    %v233 = vsel %vm230, %v232, %v228
    %v235 = vperm.slane %v150, 0
    %v237 = vmul.f32 %v235, %v168
    %v238 = vmul.f32 %v235, %v169
    %v239 = vmul.f32 %v237, %v219
    %v240 = vmul.f32 %v238, %v233
    %v242 = vperm.slane %v151, 0
    %v244 = vadd.f32 %v239, %v242
    %v245 = vadd.f32 %v240, %v242
    %v246 = vld [vmem:[%s2] sm:$0xff]
    %v247 = vld [vmem:[%s2 + $0x8] sm:$0xff]
    %v248 = vld [vmem:[%s2 + $0x10] sm:$0xff]
    %v249 = vld [vmem:[%s2 + $0x18] sm:$0xff]
    %v250 = vld [vmem:[#allocation7] sm:$0x1]
    %v252 = vperm.slane %v250, 0
    %v255 = vsel %vm152, %v244, 0
    %v258 = vsel %vm152, %v245, 0
    %260 = vmatpush.msra.mxu0 0.0
    %261 = vmatpush.msra.mxu0 0.0
    %262 = vmatpush.msra.mxu0 0.0
    %263 = vmatpush.msra.mxu0 0.0
    %264 = vmatpush.msra.mxu0 0.0
    %265 = vmatpush.msra.mxu0 0.0
    %266 = vmatpush.msra.mxu0 0.0
    %267 = vmatpush.msra.mxu0 0.0
    %268 = vmatpush.msra.mxu0 0.0
    %269 = vmatpush.msra.mxu0 0.0
    %270 = vmatpush.msra.mxu0 0.0
    %271 = vmatpush.msra.mxu0 0.0
    %272 = vmatpush.msra.mxu0 %v249
    %273 = vmatpush.msra.mxu0 %v248
    %274 = vmatpush.msra.mxu0 %v247
    %275 = vmatpush.msra.mxu0 %v246
    %276 = vmatmul.f32.gmra.mxu0 %v255
    %v277 = vpop.f32.mrf.mxu0
    %v278 = vadd.f32 %v252, %v277
    %279 = vmatmul.f32.gmra.mxu0 %v258
    %v280 = vpop.f32.mrf.mxu0
    %v281 = vadd.f32 %v252, %v280
    %282 = vdwg.mxu0
    %285 = vrot.lane.b32.xlu0 %v278, 120
    %v286 = vpop.permute.xlu0 %285
    %287 = vrot.lane.b32.xlu0 %v281, 120
    %v288 = vpop.permute.xlu0 %287
    %289 = vrot.lane.b32.xlu0 %v278, 112
    %v290 = vpop.permute.xlu0 %289
    %291 = vrot.lane.b32.xlu0 %v281, 112
    %v292 = vpop.permute.xlu0 %291
    %293 = vrot.lane.b32.xlu0 %v278, 104
    %v294 = vpop.permute.xlu0 %293
    %295 = vrot.lane.b32.xlu0 %v281, 104
    %v296 = vpop.permute.xlu0 %295
    %297 = vrot.lane.b32.xlu0 %v278, 96
    %v298 = vpop.permute.xlu0 %297
    %vm299 = vcmask 64512
    %v300 = vsel %vm299, %v278, 0
    %v302 = vsel %vm299, %v298, 0
    %304 = vmatpush.xpose.msra.mxu0 0.0
    %305 = vmatpush.xpose.msra.mxu0 0.0
    %306 = vmatpush.xpose.msra.mxu0 0.0
    %307 = vmatpush.xpose.msra.mxu0 0.0
    %308 = vmatpush.xpose.msra.mxu0 0.0
    %309 = vmatpush.xpose.msra.mxu0 0.0
    %310 = vmatpush.xpose.msra.mxu0 0.0
    %311 = vmatpush.xpose.msra.mxu0 0.0
    %312 = vmatpush.xpose.msra.mxu0 0.0
    %313 = vmatpush.xpose.msra.mxu0 0.0
    %314 = vmatpush.xpose.msra.mxu0 0.0
    %315 = vmatpush.xpose.msra.mxu0 0.0
    %316 = vmatpush.xpose.msra.mxu0 0.0
    %317 = vmatpush.xpose.msra.mxu0 0.0
    %318 = vmatpush.xpose.msra.mxu0 0.0
    %319 = vmatpush.xpose.msra.mxu0 %v302
    %320 = vmatmul.f32.gmra.mxu0 %v300
    %v321 = vpop.f32.mrf.mxu0
    %v322 = vadd.f32 0.0, %v321
    %323 = vdwg.mxu0
    %324 = vrot.lane.b32.xlu0 %v281, 96
    %v325 = vpop.permute.xlu0 %324
    %v326 = vsel %vm299, %v281, 0
    %v328 = vsel %vm299, %v325, 0
    %330 = vmatpush.xpose.msra.mxu0 0.0
    %331 = vmatpush.xpose.msra.mxu0 0.0
    %332 = vmatpush.xpose.msra.mxu0 0.0
    %333 = vmatpush.xpose.msra.mxu0 0.0
    %334 = vmatpush.xpose.msra.mxu0 0.0
    %335 = vmatpush.xpose.msra.mxu0 0.0
    %336 = vmatpush.xpose.msra.mxu0 0.0
    %337 = vmatpush.xpose.msra.mxu0 0.0
    %338 = vmatpush.xpose.msra.mxu0 0.0
    %339 = vmatpush.xpose.msra.mxu0 0.0
    %340 = vmatpush.xpose.msra.mxu0 0.0
    %341 = vmatpush.xpose.msra.mxu0 0.0
    %342 = vmatpush.xpose.msra.mxu0 0.0
    %343 = vmatpush.xpose.msra.mxu0 0.0
    %344 = vmatpush.xpose.msra.mxu0 0.0
    %345 = vmatpush.xpose.msra.mxu0 %v328
    %346 = vmatmul.f32.gmra.mxu0 %v326
    %v347 = vpop.f32.mrf.mxu0
    %v348 = vadd.f32 0.0, %v347
    %349 = vdwg.mxu0
    %350 = vrot.lane.b32.xlu0 %v286, 96
    %v351 = vpop.permute.xlu0 %350
    %v352 = vsel %vm299, %v286, 0
    %v354 = vsel %vm299, %v351, 0
    %356 = vmatpush.xpose.msra.mxu0 0.0
    %357 = vmatpush.xpose.msra.mxu0 0.0
    %358 = vmatpush.xpose.msra.mxu0 0.0
    %359 = vmatpush.xpose.msra.mxu0 0.0
    %360 = vmatpush.xpose.msra.mxu0 0.0
    %361 = vmatpush.xpose.msra.mxu0 0.0
    %362 = vmatpush.xpose.msra.mxu0 0.0
    %363 = vmatpush.xpose.msra.mxu0 0.0
    %364 = vmatpush.xpose.msra.mxu0 0.0
    %365 = vmatpush.xpose.msra.mxu0 0.0
    %366 = vmatpush.xpose.msra.mxu0 0.0
    %367 = vmatpush.xpose.msra.mxu0 0.0
    %368 = vmatpush.xpose.msra.mxu0 0.0
    %369 = vmatpush.xpose.msra.mxu0 0.0
    %370 = vmatpush.xpose.msra.mxu0 0.0
    %371 = vmatpush.xpose.msra.mxu0 %v354
    %372 = vmatmul.f32.gmra.mxu0 %v352
    %v373 = vpop.f32.mrf.mxu0
    %v374 = vadd.f32 0.0, %v373
    %375 = vdwg.mxu0
    %376 = vrot.lane.b32.xlu0 %v288, 96
    %v377 = vpop.permute.xlu0 %376
    %v378 = vsel %vm299, %v288, 0
    %v380 = vsel %vm299, %v377, 0
    %382 = vmatpush.xpose.msra.mxu0 0.0
    %383 = vmatpush.xpose.msra.mxu0 0.0
    %384 = vmatpush.xpose.msra.mxu0 0.0
    %385 = vmatpush.xpose.msra.mxu0 0.0
    %386 = vmatpush.xpose.msra.mxu0 0.0
    %387 = vmatpush.xpose.msra.mxu0 0.0
    %388 = vmatpush.xpose.msra.mxu0 0.0
    %389 = vmatpush.xpose.msra.mxu0 0.0
    %390 = vmatpush.xpose.msra.mxu0 0.0
    %391 = vmatpush.xpose.msra.mxu0 0.0
    %392 = vmatpush.xpose.msra.mxu0 0.0
    %393 = vmatpush.xpose.msra.mxu0 0.0
    %394 = vmatpush.xpose.msra.mxu0 0.0
    %395 = vmatpush.xpose.msra.mxu0 0.0
    %396 = vmatpush.xpose.msra.mxu0 0.0
    %397 = vmatpush.xpose.msra.mxu0 %v380
    %398 = vmatmul.f32.gmra.mxu0 %v378
    %v399 = vpop.f32.mrf.mxu0
    %v400 = vadd.f32 0.0, %v399
    %401 = vdwg.mxu0
    %402 = vrot.lane.b32.xlu0 %v290, 96
    %v403 = vpop.permute.xlu0 %402
    %v404 = vsel %vm299, %v290, 0
    %v406 = vsel %vm299, %v403, 0
    %408 = vmatpush.xpose.msra.mxu0 0.0
    %409 = vmatpush.xpose.msra.mxu0 0.0
    %410 = vmatpush.xpose.msra.mxu0 0.0
    %411 = vmatpush.xpose.msra.mxu0 0.0
    %412 = vmatpush.xpose.msra.mxu0 0.0
    %413 = vmatpush.xpose.msra.mxu0 0.0
    %414 = vmatpush.xpose.msra.mxu0 0.0
    %415 = vmatpush.xpose.msra.mxu0 0.0
    %416 = vmatpush.xpose.msra.mxu0 0.0
    %417 = vmatpush.xpose.msra.mxu0 0.0
    %418 = vmatpush.xpose.msra.mxu0 0.0
    %419 = vmatpush.xpose.msra.mxu0 0.0
    %420 = vmatpush.xpose.msra.mxu0 0.0
    %421 = vmatpush.xpose.msra.mxu0 0.0
    %422 = vmatpush.xpose.msra.mxu0 0.0
    %423 = vmatpush.xpose.msra.mxu0 %v406
    %424 = vmatmul.f32.gmra.mxu0 %v404
    %v425 = vpop.f32.mrf.mxu0
    %v426 = vadd.f32 0.0, %v425
    %427 = vdwg.mxu0
    %428 = vrot.lane.b32.xlu0 %v292, 96
    %v429 = vpop.permute.xlu0 %428
    %v430 = vsel %vm299, %v292, 0
    %v432 = vsel %vm299, %v429, 0
    %434 = vmatpush.xpose.msra.mxu0 0.0
    %435 = vmatpush.xpose.msra.mxu0 0.0
    %436 = vmatpush.xpose.msra.mxu0 0.0
    %437 = vmatpush.xpose.msra.mxu0 0.0
    %438 = vmatpush.xpose.msra.mxu0 0.0
    %439 = vmatpush.xpose.msra.mxu0 0.0
    %440 = vmatpush.xpose.msra.mxu0 0.0
    %441 = vmatpush.xpose.msra.mxu0 0.0
    %442 = vmatpush.xpose.msra.mxu0 0.0
    %443 = vmatpush.xpose.msra.mxu0 0.0
    %444 = vmatpush.xpose.msra.mxu0 0.0
    %445 = vmatpush.xpose.msra.mxu0 0.0
    %446 = vmatpush.xpose.msra.mxu0 0.0
    %447 = vmatpush.xpose.msra.mxu0 0.0
    %448 = vmatpush.xpose.msra.mxu0 0.0
    %449 = vmatpush.xpose.msra.mxu0 %v432
    %450 = vmatmul.f32.gmra.mxu0 %v430
    %v451 = vpop.f32.mrf.mxu0
    %v452 = vadd.f32 0.0, %v451
    %453 = vdwg.mxu0
    %454 = vrot.lane.b32.xlu0 %v294, 96
    %v455 = vpop.permute.xlu0 %454
    %v456 = vsel %vm299, %v294, 0
    %v458 = vsel %vm299, %v455, 0
    %460 = vmatpush.xpose.msra.mxu0 0.0
    %461 = vmatpush.xpose.msra.mxu0 0.0
    %462 = vmatpush.xpose.msra.mxu0 0.0
    %463 = vmatpush.xpose.msra.mxu0 0.0
    %464 = vmatpush.xpose.msra.mxu0 0.0
    %465 = vmatpush.xpose.msra.mxu0 0.0
    %466 = vmatpush.xpose.msra.mxu0 0.0
    %467 = vmatpush.xpose.msra.mxu0 0.0
    %468 = vmatpush.xpose.msra.mxu0 0.0
    %469 = vmatpush.xpose.msra.mxu0 0.0
    %470 = vmatpush.xpose.msra.mxu0 0.0
    %471 = vmatpush.xpose.msra.mxu0 0.0
    %472 = vmatpush.xpose.msra.mxu0 0.0
    %473 = vmatpush.xpose.msra.mxu0 0.0
    %474 = vmatpush.xpose.msra.mxu0 0.0
    %475 = vmatpush.xpose.msra.mxu0 %v458
    %476 = vmatmul.f32.gmra.mxu0 %v456
    %v477 = vpop.f32.mrf.mxu0
    %v478 = vadd.f32 0.0, %v477
    %479 = vdwg.mxu0
    %480 = vrot.lane.b32.xlu0 %v296, 96
    %v481 = vpop.permute.xlu0 %480
    %v482 = vsel %vm299, %v296, 0
    %v484 = vsel %vm299, %v481, 0
    %486 = vmatpush.xpose.msra.mxu0 0.0
    %487 = vmatpush.xpose.msra.mxu0 0.0
    %488 = vmatpush.xpose.msra.mxu0 0.0
    %489 = vmatpush.xpose.msra.mxu0 0.0
    %490 = vmatpush.xpose.msra.mxu0 0.0
    %491 = vmatpush.xpose.msra.mxu0 0.0
    %492 = vmatpush.xpose.msra.mxu0 0.0
    %493 = vmatpush.xpose.msra.mxu0 0.0
    %494 = vmatpush.xpose.msra.mxu0 0.0
    %495 = vmatpush.xpose.msra.mxu0 0.0
    %496 = vmatpush.xpose.msra.mxu0 0.0
    %497 = vmatpush.xpose.msra.mxu0 0.0
    %498 = vmatpush.xpose.msra.mxu0 0.0
    %499 = vmatpush.xpose.msra.mxu0 0.0
    %500 = vmatpush.xpose.msra.mxu0 0.0
    %501 = vmatpush.xpose.msra.mxu0 %v484
    %502 = vmatmul.f32.gmra.mxu0 %v482
    %v503 = vpop.f32.mrf.mxu0
    %v504 = vadd.f32 0.0, %v503
    %505 = vdwg.mxu0
    %v506 = vmul.f32 %v322, 0.35355338
    %v507 = vmul.f32 %v348, 0.35355338
    %v508 = vmul.f32 %v374, 0.35355338
    %v509 = vmul.f32 %v400, 0.35355338
    %v510 = vmul.f32 %v426, 0.35355338
    %v511 = vmul.f32 %v452, 0.35355338
    %v512 = vmul.f32 %v478, 0.35355338
    %v513 = vmul.f32 %v504, 0.35355338
    %v516 = vperm.slane %v148, 0
    %v517 = vperm.slane %v149, 0
    %v520 = vadd.f32 %v506, %v516
    %v521 = vadd.f32 %v507, %v517
    %v522 = vadd.f32 %v508, %v516
    %v523 = vadd.f32 %v509, %v517
    %v524 = vadd.f32 %v510, %v516
    %v525 = vadd.f32 %v511, %v517
    %v526 = vadd.f32 %v512, %v516
    %v527 = vadd.f32 %v513, %v517
    %v528 = vsel %vm299, %v520, -inf
    %529 = vmax.xlane.f32.xlu0 %v528
    %v530 = vpop.xlane.xlu0 %529
    %v531 = vsel %vm299, %v521, -inf
    %532 = vmax.xlane.f32.xlu0 %v531
    %v533 = vpop.xlane.xlu0 %532
    %v534 = vsel %vm299, %v522, -inf
    %535 = vmax.xlane.f32.xlu0 %v534
    %v536 = vpop.xlane.xlu0 %535
    %v537 = vsel %vm299, %v523, -inf
    %538 = vmax.xlane.f32.xlu0 %v537
    %v539 = vpop.xlane.xlu0 %538
    %v540 = vsel %vm299, %v524, -inf
    %541 = vmax.xlane.f32.xlu0 %v540
    %v542 = vpop.xlane.xlu0 %541
    %v543 = vsel %vm299, %v525, -inf
    %544 = vmax.xlane.f32.xlu0 %v543
    %v545 = vpop.xlane.xlu0 %544
    %v546 = vsel %vm299, %v526, -inf
    %547 = vmax.xlane.f32.xlu0 %v546
    %v548 = vpop.xlane.xlu0 %547
    %v549 = vsel %vm299, %v527, -inf
    %550 = vmax.xlane.f32.xlu0 %v549
    %v551 = vpop.xlane.xlu0 %550
    %v552 = vsub.f32 %v520, %v530
    %v553 = vsub.f32 %v521, %v533
    %v554 = vsub.f32 %v522, %v536
    %v555 = vsub.f32 %v523, %v539
    %v556 = vsub.f32 %v524, %v542
    %v557 = vsub.f32 %v525, %v545
    %v558 = vsub.f32 %v526, %v548
    %v559 = vsub.f32 %v527, %v551
    %v560 = vmul.f32 %v552, 1.442695
    %v561 = vpow.pop %v560
    %v562 = vmul.f32 %v553, 1.442695
    %v563 = vpow.pop %v562
    %v564 = vmul.f32 %v554, 1.442695
    %v565 = vpow.pop %v564
    %v566 = vmul.f32 %v555, 1.442695
    %v567 = vpow.pop %v566
    %v568 = vmul.f32 %v556, 1.442695
    %v569 = vpow.pop %v568
    %v570 = vmul.f32 %v557, 1.442695
    %v571 = vpow.pop %v570
    %v572 = vmul.f32 %v558, 1.442695
    %v573 = vpow.pop %v572
    %v574 = vmul.f32 %v559, 1.442695
    %v575 = vpow.pop %v574
    %v576 = vsel %vm299, %v561, 0.0
    %577 = vadd.xlane.f32.xlu0 %v576
    %v578 = vpop.xlane.xlu0 %577
    %v579 = vsel %vm299, %v563, 0.0
    %580 = vadd.xlane.f32.xlu0 %v579
    %v581 = vpop.xlane.xlu0 %580
    %v582 = vsel %vm299, %v565, 0.0
    %583 = vadd.xlane.f32.xlu0 %v582
    %v584 = vpop.xlane.xlu0 %583
    %v585 = vsel %vm299, %v567, 0.0
    %586 = vadd.xlane.f32.xlu0 %v585
    %v587 = vpop.xlane.xlu0 %586
    %v588 = vsel %vm299, %v569, 0.0
    %589 = vadd.xlane.f32.xlu0 %v588
    %v590 = vpop.xlane.xlu0 %589
    %v591 = vsel %vm299, %v571, 0.0
    %592 = vadd.xlane.f32.xlu0 %v591
    %v593 = vpop.xlane.xlu0 %592
    %v594 = vsel %vm299, %v573, 0.0
    %595 = vadd.xlane.f32.xlu0 %v594
    %v596 = vpop.xlane.xlu0 %595
    %v597 = vsel %vm299, %v575, 0.0
    %598 = vadd.xlane.f32.xlu0 %v597
    %v599 = vpop.xlane.xlu0 %598
    %v600 = vrcp.pop %v578
    %v601 = vmul.f32 %v578, %v600
    %v602 = vsub.f32 1.0, %v601
    %v603 = vmul.f32 %v600, %v602
    %v604 = vadd.f32 %v600, %v603
    %vm605 = vweird.f32 %v578
    %vm606 = vweird.f32 %v600
    %vm607 = vmor %vm605, %vm606
    %v608 = vsel %vm607, %v600, %v604
    %v609 = vand.u32 2147483647, %v578
    %vm610 = vcmp.eq.f32.partialorder %v609, 8.507059e+37
    %v611 = vand.u32 %v578, 2147483648
    %v612 = vor.u32 1.1754944e-38, %v611
    %v613 = vsel %vm610, %v612, %v608
    %v614 = vrcp.pop %v581
    %v615 = vmul.f32 %v581, %v614
    %v616 = vsub.f32 1.0, %v615
    %v617 = vmul.f32 %v614, %v616
    %v618 = vadd.f32 %v614, %v617
    %vm619 = vweird.f32 %v581
    %vm620 = vweird.f32 %v614
    %vm621 = vmor %vm619, %vm620
    %v622 = vsel %vm621, %v614, %v618
    %v623 = vand.u32 2147483647, %v581
    %vm624 = vcmp.eq.f32.partialorder %v623, 8.507059e+37
    %v625 = vand.u32 %v581, 2147483648
    %v626 = vor.u32 1.1754944e-38, %v625
    %v627 = vsel %vm624, %v626, %v622
    %v628 = vrcp.pop %v584
    %v629 = vmul.f32 %v584, %v628
    %v630 = vsub.f32 1.0, %v629
    %v631 = vmul.f32 %v628, %v630
    %v632 = vadd.f32 %v628, %v631
    %vm633 = vweird.f32 %v584
    %vm634 = vweird.f32 %v628
    %vm635 = vmor %vm633, %vm634
    %v636 = vsel %vm635, %v628, %v632
    %v637 = vand.u32 2147483647, %v584
    %vm638 = vcmp.eq.f32.partialorder %v637, 8.507059e+37
    %v639 = vand.u32 %v584, 2147483648
    %v640 = vor.u32 1.1754944e-38, %v639
    %v641 = vsel %vm638, %v640, %v636
    %v642 = vrcp.pop %v587
    %v643 = vmul.f32 %v587, %v642
    %v644 = vsub.f32 1.0, %v643
    %v645 = vmul.f32 %v642, %v644
    %v646 = vadd.f32 %v642, %v645
    %vm647 = vweird.f32 %v587
    %vm648 = vweird.f32 %v642
    %vm649 = vmor %vm647, %vm648
    %v650 = vsel %vm649, %v642, %v646
    %v651 = vand.u32 2147483647, %v587
    %vm652 = vcmp.eq.f32.partialorder %v651, 8.507059e+37
    %v653 = vand.u32 %v587, 2147483648
    %v654 = vor.u32 1.1754944e-38, %v653
    %v655 = vsel %vm652, %v654, %v650
    %v656 = vrcp.pop %v590
    %v657 = vmul.f32 %v590, %v656
    %v658 = vsub.f32 1.0, %v657
    %v659 = vmul.f32 %v656, %v658
    %v660 = vadd.f32 %v656, %v659
    %vm661 = vweird.f32 %v590
    %vm662 = vweird.f32 %v656
    %vm663 = vmor %vm661, %vm662
    %v664 = vsel %vm663, %v656, %v660
    %v665 = vand.u32 2147483647, %v590
    %vm666 = vcmp.eq.f32.partialorder %v665, 8.507059e+37
    %v667 = vand.u32 %v590, 2147483648
    %v668 = vor.u32 1.1754944e-38, %v667
    %v669 = vsel %vm666, %v668, %v664
    %v670 = vrcp.pop %v593
    %v671 = vmul.f32 %v593, %v670
    %v672 = vsub.f32 1.0, %v671
    %v673 = vmul.f32 %v670, %v672
    %v674 = vadd.f32 %v670, %v673
    %vm675 = vweird.f32 %v593
    %vm676 = vweird.f32 %v670
    %vm677 = vmor %vm675, %vm676
    %v678 = vsel %vm677, %v670, %v674
    %v679 = vand.u32 2147483647, %v593
    %vm680 = vcmp.eq.f32.partialorder %v679, 8.507059e+37
    %v681 = vand.u32 %v593, 2147483648
    %v682 = vor.u32 1.1754944e-38, %v681
    %v683 = vsel %vm680, %v682, %v678
    %v684 = vrcp.pop %v596
    %v685 = vmul.f32 %v596, %v684
    %v686 = vsub.f32 1.0, %v685
    %v687 = vmul.f32 %v684, %v686
    %v688 = vadd.f32 %v684, %v687
    %vm689 = vweird.f32 %v596
    %vm690 = vweird.f32 %v684
    %vm691 = vmor %vm689, %vm690
    %v692 = vsel %vm691, %v684, %v688
    %v693 = vand.u32 2147483647, %v596
    %vm694 = vcmp.eq.f32.partialorder %v693, 8.507059e+37
    %v695 = vand.u32 %v596, 2147483648
    %v696 = vor.u32 1.1754944e-38, %v695
    %v697 = vsel %vm694, %v696, %v692
    %v698 = vrcp.pop %v599
    %v699 = vmul.f32 %v599, %v698
    %v700 = vsub.f32 1.0, %v699
    %v701 = vmul.f32 %v698, %v700
    %v702 = vadd.f32 %v698, %v701
    %vm703 = vweird.f32 %v599
    %vm704 = vweird.f32 %v698
    %vm705 = vmor %vm703, %vm704
    %v706 = vsel %vm705, %v698, %v702
    %v707 = vand.u32 2147483647, %v599
    %vm708 = vcmp.eq.f32.partialorder %v707, 8.507059e+37
    %v709 = vand.u32 %v599, 2147483648
    %v710 = vor.u32 1.1754944e-38, %v709
    %v711 = vsel %vm708, %v710, %v706
    %v712 = vmul.f32 %v561, %v613
    %v713 = vmul.f32 %v563, %v627
    %v714 = vmul.f32 %v565, %v641
    %v715 = vmul.f32 %v567, %v655
    %v716 = vmul.f32 %v569, %v669
    %v717 = vmul.f32 %v571, %v683
    %v718 = vmul.f32 %v573, %v697
    %v719 = vmul.f32 %v575, %v711
    %720 = vrot.lane.b32.xlu0 %v278, 64
    %v721 = vpop.permute.xlu0 %720
    %v724 = vsel %vm299, %v712, 0
    %726 = vmatpush.msra.mxu0 0.0
    %727 = vmatpush.msra.mxu0 0.0
    %728 = vmatpush.msra.mxu0 0.0
    %729 = vmatpush.msra.mxu0 0.0
    %730 = vmatpush.msra.mxu0 0.0
    %731 = vmatpush.msra.mxu0 0.0
    %732 = vmatpush.msra.mxu0 0.0
    %733 = vmatpush.msra.mxu0 0.0
    %734 = vmatpush.msra.mxu0 0.0
    %735 = vmatpush.msra.mxu0 0.0
    %736 = vmatpush.msra.mxu0 0.0
    %737 = vmatpush.msra.mxu0 0.0
    %738 = vmatpush.msra.mxu0 0.0
    %739 = vmatpush.msra.mxu0 0.0
    %740 = vmatpush.msra.mxu0 0.0
    %741 = vmatpush.msra.mxu0 %v721
    %742 = vmatmul.f32.gmra.mxu0 %v724
    %v743 = vpop.f32.mrf.mxu0
    %v744 = vadd.f32 0.0, %v743
    %745 = vdwg.mxu0
    %746 = vrot.lane.b32.xlu0 %v281, 64
    %v747 = vpop.permute.xlu0 %746
    %v750 = vsel %vm299, %v713, 0
    %752 = vmatpush.msra.mxu0 0.0
    %753 = vmatpush.msra.mxu0 0.0
    %754 = vmatpush.msra.mxu0 0.0
    %755 = vmatpush.msra.mxu0 0.0
    %756 = vmatpush.msra.mxu0 0.0
    %757 = vmatpush.msra.mxu0 0.0
    %758 = vmatpush.msra.mxu0 0.0
    %759 = vmatpush.msra.mxu0 0.0
    %760 = vmatpush.msra.mxu0 0.0
    %761 = vmatpush.msra.mxu0 0.0
    %762 = vmatpush.msra.mxu0 0.0
    %763 = vmatpush.msra.mxu0 0.0
    %764 = vmatpush.msra.mxu0 0.0
    %765 = vmatpush.msra.mxu0 0.0
    %766 = vmatpush.msra.mxu0 0.0
    %767 = vmatpush.msra.mxu0 %v747
    %768 = vmatmul.f32.gmra.mxu0 %v750
    %v769 = vpop.f32.mrf.mxu0
    %v770 = vadd.f32 0.0, %v769
    %771 = vdwg.mxu0
    %772 = vrot.lane.b32.xlu0 %v286, 64
    %v773 = vpop.permute.xlu0 %772
    %v776 = vsel %vm299, %v714, 0
    %778 = vmatpush.msra.mxu0 0.0
    %779 = vmatpush.msra.mxu0 0.0
    %780 = vmatpush.msra.mxu0 0.0
    %781 = vmatpush.msra.mxu0 0.0
    %782 = vmatpush.msra.mxu0 0.0
    %783 = vmatpush.msra.mxu0 0.0
    %784 = vmatpush.msra.mxu0 0.0
    %785 = vmatpush.msra.mxu0 0.0
    %786 = vmatpush.msra.mxu0 0.0
    %787 = vmatpush.msra.mxu0 0.0
    %788 = vmatpush.msra.mxu0 0.0
    %789 = vmatpush.msra.mxu0 0.0
    %790 = vmatpush.msra.mxu0 0.0
    %791 = vmatpush.msra.mxu0 0.0
    %792 = vmatpush.msra.mxu0 0.0
    %793 = vmatpush.msra.mxu0 %v773
    %794 = vmatmul.f32.gmra.mxu0 %v776
    %v795 = vpop.f32.mrf.mxu0
    %v796 = vadd.f32 0.0, %v795
    %797 = vdwg.mxu0
    %798 = vrot.lane.b32.xlu0 %v288, 64
    %v799 = vpop.permute.xlu0 %798
    %v802 = vsel %vm299, %v715, 0
    %804 = vmatpush.msra.mxu0 0.0
    %805 = vmatpush.msra.mxu0 0.0
    %806 = vmatpush.msra.mxu0 0.0
    %807 = vmatpush.msra.mxu0 0.0
    %808 = vmatpush.msra.mxu0 0.0
    %809 = vmatpush.msra.mxu0 0.0
    %810 = vmatpush.msra.mxu0 0.0
    %811 = vmatpush.msra.mxu0 0.0
    %812 = vmatpush.msra.mxu0 0.0
    %813 = vmatpush.msra.mxu0 0.0
    %814 = vmatpush.msra.mxu0 0.0
    %815 = vmatpush.msra.mxu0 0.0
    %816 = vmatpush.msra.mxu0 0.0
    %817 = vmatpush.msra.mxu0 0.0
    %818 = vmatpush.msra.mxu0 0.0
    %819 = vmatpush.msra.mxu0 %v799
    %820 = vmatmul.f32.gmra.mxu0 %v802
    %v821 = vpop.f32.mrf.mxu0
    %v822 = vadd.f32 0.0, %v821
    %823 = vdwg.mxu0
    %824 = vrot.lane.b32.xlu0 %v290, 64
    %v825 = vpop.permute.xlu0 %824
    %v828 = vsel %vm299, %v716, 0
    %830 = vmatpush.msra.mxu0 0.0
    %831 = vmatpush.msra.mxu0 0.0
    %832 = vmatpush.msra.mxu0 0.0
    %833 = vmatpush.msra.mxu0 0.0
    %834 = vmatpush.msra.mxu0 0.0
    %835 = vmatpush.msra.mxu0 0.0
    %836 = vmatpush.msra.mxu0 0.0
    %837 = vmatpush.msra.mxu0 0.0
    %838 = vmatpush.msra.mxu0 0.0
    %839 = vmatpush.msra.mxu0 0.0
    %840 = vmatpush.msra.mxu0 0.0
    %841 = vmatpush.msra.mxu0 0.0
    %842 = vmatpush.msra.mxu0 0.0
    %843 = vmatpush.msra.mxu0 0.0
    %844 = vmatpush.msra.mxu0 0.0
    %845 = vmatpush.msra.mxu0 %v825
    %846 = vmatmul.f32.gmra.mxu0 %v828
    %v847 = vpop.f32.mrf.mxu0
    %v848 = vadd.f32 0.0, %v847
    %849 = vdwg.mxu0
    %850 = vrot.lane.b32.xlu0 %v292, 64
    %v851 = vpop.permute.xlu0 %850
    %v854 = vsel %vm299, %v717, 0
    %856 = vmatpush.msra.mxu0 0.0
    %857 = vmatpush.msra.mxu0 0.0
    %858 = vmatpush.msra.mxu0 0.0
    %859 = vmatpush.msra.mxu0 0.0
    %860 = vmatpush.msra.mxu0 0.0
    %861 = vmatpush.msra.mxu0 0.0
    %862 = vmatpush.msra.mxu0 0.0
    %863 = vmatpush.msra.mxu0 0.0
    %864 = vmatpush.msra.mxu0 0.0
    %865 = vmatpush.msra.mxu0 0.0
    %866 = vmatpush.msra.mxu0 0.0
    %867 = vmatpush.msra.mxu0 0.0
    %868 = vmatpush.msra.mxu0 0.0
    %869 = vmatpush.msra.mxu0 0.0
    %870 = vmatpush.msra.mxu0 0.0
    %871 = vmatpush.msra.mxu0 %v851
    %872 = vmatmul.f32.gmra.mxu0 %v854
    %v873 = vpop.f32.mrf.mxu0
    %v874 = vadd.f32 0.0, %v873
    %875 = vdwg.mxu0
    %876 = vrot.lane.b32.xlu0 %v294, 64
    %v877 = vpop.permute.xlu0 %876
    %v880 = vsel %vm299, %v718, 0
    %882 = vmatpush.msra.mxu0 0.0
    %883 = vmatpush.msra.mxu0 0.0
    %884 = vmatpush.msra.mxu0 0.0
    %885 = vmatpush.msra.mxu0 0.0
    %886 = vmatpush.msra.mxu0 0.0
    %887 = vmatpush.msra.mxu0 0.0
    %888 = vmatpush.msra.mxu0 0.0
    %889 = vmatpush.msra.mxu0 0.0
    %890 = vmatpush.msra.mxu0 0.0
    %891 = vmatpush.msra.mxu0 0.0
    %892 = vmatpush.msra.mxu0 0.0
    %893 = vmatpush.msra.mxu0 0.0
    %894 = vmatpush.msra.mxu0 0.0
    %895 = vmatpush.msra.mxu0 0.0
    %896 = vmatpush.msra.mxu0 0.0
    %897 = vmatpush.msra.mxu0 %v877
    %898 = vmatmul.f32.gmra.mxu0 %v880
    %v899 = vpop.f32.mrf.mxu0
    %v900 = vadd.f32 0.0, %v899
    %901 = vdwg.mxu0
    %902 = vrot.lane.b32.xlu0 %v296, 64
    %v903 = vpop.permute.xlu0 %902
    %v906 = vsel %vm299, %v719, 0
    %908 = vmatpush.msra.mxu0 0.0
    %909 = vmatpush.msra.mxu0 0.0
    %910 = vmatpush.msra.mxu0 0.0
    %911 = vmatpush.msra.mxu0 0.0
    %912 = vmatpush.msra.mxu0 0.0
    %913 = vmatpush.msra.mxu0 0.0
    %914 = vmatpush.msra.mxu0 0.0
    %915 = vmatpush.msra.mxu0 0.0
    %916 = vmatpush.msra.mxu0 0.0
    %917 = vmatpush.msra.mxu0 0.0
    %918 = vmatpush.msra.mxu0 0.0
    %919 = vmatpush.msra.mxu0 0.0
    %920 = vmatpush.msra.mxu0 0.0
    %921 = vmatpush.msra.mxu0 0.0
    %922 = vmatpush.msra.mxu0 0.0
    %923 = vmatpush.msra.mxu0 %v903
    %924 = vmatmul.f32.gmra.mxu0 %v906
    %v925 = vpop.f32.mrf.mxu0
    %v926 = vadd.f32 0.0, %v925
    %927 = vdwg.mxu0
    %930 = vrot.lane.b32.xlu0 %v796, 8
    %v931 = vpop.permute.xlu0 %930
    %932 = vrot.lane.b32.xlu0 %v822, 8
    %v933 = vpop.permute.xlu0 %932
    %938 = vrot.lane.b32.xlu0 %v848, 16
    %v939 = vpop.permute.xlu0 %938
    %940 = vrot.lane.b32.xlu0 %v874, 16
    %v941 = vpop.permute.xlu0 %940
    %946 = vrot.lane.b32.xlu0 %v900, 24
    %v947 = vpop.permute.xlu0 %946
    %948 = vrot.lane.b32.xlu0 %v926, 24
    %v949 = vpop.permute.xlu0 %948
    %v952 = vsel %vm299, %v744, %v931
    %v953 = vsel %vm299, %v770, %v933
    %vm954 = vcmask 130048
    %v955 = vsel %vm954, %v952, %v939
    %v956 = vsel %vm954, %v953, %v941
    %vm957 = vcmask 195584
    %v958 = vsel %vm957, %v955, %v947
    %v959 = vsel %vm957, %v956, %v949
    %v960 = vld [vmem:[%s4] sm:$0xff]
    %v961 = vld [vmem:[%s4 + $0x8] sm:$0xff]
    %v962 = vld [vmem:[%s4 + $0x10] sm:$0xff]
    %v963 = vld [vmem:[%s4 + $0x18] sm:$0xff]
    %v965 = vsel %vm152, %v958, 0
    %v968 = vsel %vm152, %v959, 0
    %970 = vmatpush.msra.mxu0 0.0
    %971 = vmatpush.msra.mxu0 0.0
    %972 = vmatpush.msra.mxu0 0.0
    %973 = vmatpush.msra.mxu0 0.0
    %974 = vmatpush.msra.mxu0 0.0
    %975 = vmatpush.msra.mxu0 0.0
    %976 = vmatpush.msra.mxu0 0.0
    %977 = vmatpush.msra.mxu0 0.0
    %978 = vmatpush.msra.mxu0 0.0
    %979 = vmatpush.msra.mxu0 0.0
    %980 = vmatpush.msra.mxu0 0.0
    %981 = vmatpush.msra.mxu0 0.0
    %982 = vmatpush.msra.mxu0 %v963
    %983 = vmatpush.msra.mxu0 %v962
    %984 = vmatpush.msra.mxu0 %v961
    %985 = vmatpush.msra.mxu0 %v960
    %986 = vmatmul.f32.gmra.mxu0 %v965
    %v987 = vpop.f32.mrf.mxu0
    %v988 = vadd.f32 0.0, %v987
    %989 = vmatmul.f32.gmra.mxu0 %v968
    %v990 = vpop.f32.mrf.mxu0
    %v991 = vadd.f32 0.0, %v990
    %992 = vdwg.mxu0
    %v993 = vadd.f32 %v142, %v988
    %v994 = vadd.f32 %v143, %v991
    %v995 = vld [vmem:[#allocation8] sm:$0x1]
    %v997 = vperm.slane %v995, 0
    %v999 = vadd.f32 %v993, %v997
    %v1000 = vadd.f32 %v994, %v997
    %s1001 = scalar_lea.vmem %s10, 1
    %v1002 = vld [vmem:[%s1001] sm:$0x1]
    %s1003 = scalar_lea.vmem %s11, 1
    %v1004 = vld [vmem:[%s1003] sm:$0x1]
    %v1005 = vsel %vm152, %v999, 0.0
    %1006 = vadd.xlane.f32.xlu0 %v1005
    %v1007 = vpop.xlane.xlu0 %1006
    %v1008 = vsel %vm152, %v1000, 0.0
    %1009 = vadd.xlane.f32.xlu0 %v1008
    %v1010 = vpop.xlane.xlu0 %1009
    %v1011 = vmul.f32 %v1007, %v165
    %v1012 = vmul.f32 %v1010, %v165
    %v1013 = vsub.f32 %v999, %v1011
    %v1014 = vsub.f32 %v1000, %v1012
    %v1015 = vmul.f32 %v1013, %v1013
    %v1016 = vmul.f32 %v1014, %v1014
    %v1017 = vsel %vm152, %v1015, 0.0
    %1018 = vadd.xlane.f32.xlu0 %v1017
    %v1019 = vpop.xlane.xlu0 %1018
    %v1020 = vsel %vm152, %v1016, 0.0
    %1021 = vadd.xlane.f32.xlu0 %v1020
    %v1022 = vpop.xlane.xlu0 %1021
    %v1023 = vmul.f32 %v1019, 0.032258064
    %v1024 = vmul.f32 %v1022, 0.032258064
    %v1025 = vrsqrt.pop %v1023
    %v1026 = vmul.f32 %v1025, %v1023
    %v1027 = vmul.f32 %v1026, %v1025
    %v1028 = vmul.f32 0.5, %v1027
    %v1029 = vsub.f32 1.5, %v1028
    %v1030 = vmul.f32 %v1025, %v1029
    %v1031 = vmul.f32 %v1023, %v1030
    %vm1032 = vcmp.eq.f32.partialorder %v1023, inf
    %v1033 = vsel %vm1032, %v1023, %v1031
    %vm1034 = vcmp.eq.f32.partialorder %v1023, 0.0
    %v1035 = vand.u32 %v1023, 2147483648
    %v1036 = vsel %vm1034, %v1035, %v1033
    %v1037 = vrsqrt.pop %v1024
    %v1038 = vmul.f32 %v1037, %v1024
    %v1039 = vmul.f32 %v1038, %v1037
    %v1040 = vmul.f32 0.5, %v1039
    %v1041 = vsub.f32 1.5, %v1040
    %v1042 = vmul.f32 %v1037, %v1041
    %v1043 = vmul.f32 %v1024, %v1042
    %vm1044 = vcmp.eq.f32.partialorder %v1024, inf
    %v1045 = vsel %vm1044, %v1024, %v1043
    %vm1046 = vcmp.eq.f32.partialorder %v1024, 0.0
    %v1047 = vand.u32 %v1024, 2147483648
    %v1048 = vsel %vm1046, %v1047, %v1045
    %v1049 = vadd.f32 %v1036, 1e-06
    %v1050 = vadd.f32 %v1048, 1e-06
    %v1051 = vrcp.pop %v1049
    %v1052 = vmul.f32 %v1049, %v1051
    %v1053 = vsub.f32 1.0, %v1052
    %v1054 = vmul.f32 %v1051, %v1053
    %v1055 = vadd.f32 %v1051, %v1054
    %vm1056 = vweird.f32 %v1049
    %vm1057 = vweird.f32 %v1051
    %vm1058 = vmor %vm1056, %vm1057
    %v1059 = vsel %vm1058, %v1051, %v1055
    %v1060 = vand.u32 2147483647, %v1049
    %vm1061 = vcmp.eq.f32.partialorder %v1060, 8.507059e+37
    %v1062 = vand.u32 %v1049, 2147483648
    %v1063 = vor.u32 1.1754944e-38, %v1062
    %v1064 = vsel %vm1061, %v1063, %v1059
    %v1065 = vrcp.pop %v1050
    %v1066 = vmul.f32 %v1050, %v1065
    %v1067 = vsub.f32 1.0, %v1066
    %v1068 = vmul.f32 %v1065, %v1067
    %v1069 = vadd.f32 %v1065, %v1068
    %vm1070 = vweird.f32 %v1050
    %vm1071 = vweird.f32 %v1065
    %vm1072 = vmor %vm1070, %vm1071
    %v1073 = vsel %vm1072, %v1065, %v1069
    %v1074 = vand.u32 2147483647, %v1050
    %vm1075 = vcmp.eq.f32.partialorder %v1074, 8.507059e+37
    %v1076 = vand.u32 %v1050, 2147483648
    %v1077 = vor.u32 1.1754944e-38, %v1076
    %v1078 = vsel %vm1075, %v1077, %v1073
    %v1080 = vperm.slane %v1002, 0
    %v1082 = vmul.f32 %v1080, %v1013
    %v1083 = vmul.f32 %v1080, %v1014
    %v1084 = vmul.f32 %v1082, %v1064
    %v1085 = vmul.f32 %v1083, %v1078
    %v1087 = vperm.slane %v1004, 0
    %v1089 = vadd.f32 %v1084, %v1087
    %v1090 = vadd.f32 %v1085, %v1087
    %v1091 = vld [vmem:[%s6] sm:$0xff]
    %v1092 = vld [vmem:[%s6 + $0x8] sm:$0xff]
    %v1093 = vld [vmem:[%s6 + $0x10] sm:$0xff]
    %v1094 = vld [vmem:[%s6 + $0x18] sm:$0xff]
    %v1095 = vld [vmem:[#allocation10] sm:$0x1]
    %v1097 = vperm.slane %v1095, 0
    %v1100 = vsel %vm152, %v1089, 0
    %v1103 = vsel %vm152, %v1090, 0
    %1105 = vmatpush.msra.mxu0 0.0
    %1106 = vmatpush.msra.mxu0 0.0
    %1107 = vmatpush.msra.mxu0 0.0
    %1108 = vmatpush.msra.mxu0 0.0
    %1109 = vmatpush.msra.mxu0 0.0
    %1110 = vmatpush.msra.mxu0 0.0
    %1111 = vmatpush.msra.mxu0 0.0
    %1112 = vmatpush.msra.mxu0 0.0
    %1113 = vmatpush.msra.mxu0 0.0
    %1114 = vmatpush.msra.mxu0 0.0
    %1115 = vmatpush.msra.mxu0 0.0
    %1116 = vmatpush.msra.mxu0 0.0
    %1117 = vmatpush.msra.mxu0 %v1094
    %1118 = vmatpush.msra.mxu0 %v1093
    %1119 = vmatpush.msra.mxu0 %v1092
    %1120 = vmatpush.msra.mxu0 %v1091
    %1121 = vmatmul.f32.gmra.mxu0 %v1100
    %v1122 = vpop.f32.mrf.mxu0
    %v1123 = vadd.f32 %v1097, %v1122
    %1124 = vmatmul.f32.gmra.mxu0 %v1103
    %v1125 = vpop.f32.mrf.mxu0
    %v1126 = vadd.f32 %v1097, %v1125
    %1127 = vdwg.mxu0
    %v1128 = vmax.f32 %v1123, 0.0
    %v1129 = vmax.f32 %v1126, 0.0
    %v1130 = vld [vmem:[%s8] sm:$0xff]
    %v1131 = vld [vmem:[%s8 + $0x8] sm:$0xff]
    %v1132 = vld [vmem:[%s8 + $0x10] sm:$0xff]
    %v1133 = vld [vmem:[%s8 + $0x18] sm:$0xff]
    %v1134 = vld [vmem:[%s8 + $0x20] sm:$0xff]
    %v1135 = vld [vmem:[%s8 + $0x28] sm:$0xff]
    %v1136 = vld [vmem:[%s8 + $0x30] sm:$0xff]
    %v1137 = vld [vmem:[%s8 + $0x38] sm:$0xff]
    %vm1138 = vcmask 523264
    %v1140 = vsel %vm1138, %v1128, 0
    %v1143 = vsel %vm1138, %v1129, 0
    %1145 = vmatpush.msra.mxu0 0.0
    %1146 = vmatpush.msra.mxu0 0.0
    %1147 = vmatpush.msra.mxu0 0.0
    %1148 = vmatpush.msra.mxu0 0.0
    %1149 = vmatpush.msra.mxu0 0.0
    %1150 = vmatpush.msra.mxu0 0.0
    %1151 = vmatpush.msra.mxu0 0.0
    %1152 = vmatpush.msra.mxu0 0.0
    %1153 = vmatpush.msra.mxu0 %v1137
    %1154 = vmatpush.msra.mxu0 %v1136
    %1155 = vmatpush.msra.mxu0 %v1135
    %1156 = vmatpush.msra.mxu0 %v1134
    %1157 = vmatpush.msra.mxu0 %v1133
    %1158 = vmatpush.msra.mxu0 %v1132
    %1159 = vmatpush.msra.mxu0 %v1131
    %1160 = vmatpush.msra.mxu0 %v1130
    %1161 = vmatmul.f32.gmra.mxu0 %v1140
    %v1162 = vpop.f32.mrf.mxu0
    %v1163 = vadd.f32 0.0, %v1162
    %1164 = vmatmul.f32.gmra.mxu0 %v1143
    %v1165 = vpop.f32.mrf.mxu0
    %v1166 = vadd.f32 0.0, %v1165
    %1167 = vdwg.mxu0
    %v1168 = vadd.f32 %v999, %v1163
    %v1169 = vadd.f32 %v1000, %v1166
    %v1170 = vld [vmem:[#allocation11] sm:$0x1]
    %v1172 = vperm.slane %v1170, 0
    %v1174 = vadd.f32 %v1168, %v1172
    %v1175 = vadd.f32 %v1169, %v1172
    %s1176 = scalar_lea.vmem %s10, 2
    %v1177 = vld [vmem:[%s1176] sm:$0x1]
    %s1178 = scalar_lea.vmem %s11, 2
    %v1179 = vld [vmem:[%s1178] sm:$0x1]
    %v1180 = vsel %vm152, %v1174, 0.0
    %1181 = vadd.xlane.f32.xlu0 %v1180
    %v1182 = vpop.xlane.xlu0 %1181
    %v1183 = vsel %vm152, %v1175, 0.0
    %1184 = vadd.xlane.f32.xlu0 %v1183
    %v1185 = vpop.xlane.xlu0 %1184
    %v1186 = vmul.f32 %v1182, %v165
    %v1187 = vmul.f32 %v1185, %v165
    %v1188 = vsub.f32 %v1174, %v1186
    %v1189 = vsub.f32 %v1175, %v1187
    %v1190 = vmul.f32 %v1188, %v1188
    %v1191 = vmul.f32 %v1189, %v1189
    %v1192 = vsel %vm152, %v1190, 0.0
    %1193 = vadd.xlane.f32.xlu0 %v1192
    %v1194 = vpop.xlane.xlu0 %1193
    %v1195 = vsel %vm152, %v1191, 0.0
    %1196 = vadd.xlane.f32.xlu0 %v1195
    %v1197 = vpop.xlane.xlu0 %1196
    %v1198 = vmul.f32 %v1194, 0.032258064
    %v1199 = vmul.f32 %v1197, 0.032258064
    %v1200 = vrsqrt.pop %v1198
    %v1201 = vmul.f32 %v1200, %v1198
    %v1202 = vmul.f32 %v1201, %v1200
    %v1203 = vmul.f32 0.5, %v1202
    %v1204 = vsub.f32 1.5, %v1203
    %v1205 = vmul.f32 %v1200, %v1204
    %v1206 = vmul.f32 %v1198, %v1205
    %vm1207 = vcmp.eq.f32.partialorder %v1198, inf
    %v1208 = vsel %vm1207, %v1198, %v1206
    %vm1209 = vcmp.eq.f32.partialorder %v1198, 0.0
    %v1210 = vand.u32 %v1198, 2147483648
    %v1211 = vsel %vm1209, %v1210, %v1208
    %v1212 = vrsqrt.pop %v1199
    %v1213 = vmul.f32 %v1212, %v1199
    %v1214 = vmul.f32 %v1213, %v1212
    %v1215 = vmul.f32 0.5, %v1214
    %v1216 = vsub.f32 1.5, %v1215
    %v1217 = vmul.f32 %v1212, %v1216
    %v1218 = vmul.f32 %v1199, %v1217
    %vm1219 = vcmp.eq.f32.partialorder %v1199, inf
    %v1220 = vsel %vm1219, %v1199, %v1218
    %vm1221 = vcmp.eq.f32.partialorder %v1199, 0.0
    %v1222 = vand.u32 %v1199, 2147483648
    %v1223 = vsel %vm1221, %v1222, %v1220
    %v1224 = vadd.f32 %v1211, 1e-06
    %v1225 = vadd.f32 %v1223, 1e-06
    %v1226 = vrcp.pop %v1224
    %v1227 = vmul.f32 %v1224, %v1226
    %v1228 = vsub.f32 1.0, %v1227
    %v1229 = vmul.f32 %v1226, %v1228
    %v1230 = vadd.f32 %v1226, %v1229
    %vm1231 = vweird.f32 %v1224
    %vm1232 = vweird.f32 %v1226
    %vm1233 = vmor %vm1231, %vm1232
    %v1234 = vsel %vm1233, %v1226, %v1230
    %v1235 = vand.u32 2147483647, %v1224
    %vm1236 = vcmp.eq.f32.partialorder %v1235, 8.507059e+37
    %v1237 = vand.u32 %v1224, 2147483648
    %v1238 = vor.u32 1.1754944e-38, %v1237
    %v1239 = vsel %vm1236, %v1238, %v1234
    %v1240 = vrcp.pop %v1225
    %v1241 = vmul.f32 %v1225, %v1240
    %v1242 = vsub.f32 1.0, %v1241
    %v1243 = vmul.f32 %v1240, %v1242
    %v1244 = vadd.f32 %v1240, %v1243
    %vm1245 = vweird.f32 %v1225
    %vm1246 = vweird.f32 %v1240
    %vm1247 = vmor %vm1245, %vm1246
    %v1248 = vsel %vm1247, %v1240, %v1244
    %v1249 = vand.u32 2147483647, %v1225
    %vm1250 = vcmp.eq.f32.partialorder %v1249, 8.507059e+37
    %v1251 = vand.u32 %v1225, 2147483648
    %v1252 = vor.u32 1.1754944e-38, %v1251
    %v1253 = vsel %vm1250, %v1252, %v1248
    %v1255 = vperm.slane %v1177, 0
    %v1257 = vmul.f32 %v1255, %v1188
    %v1258 = vmul.f32 %v1255, %v1189
    %v1259 = vmul.f32 %v1257, %v1239
    %v1260 = vmul.f32 %v1258, %v1253
    %v1262 = vperm.slane %v1179, 0
    %v1264 = vadd.f32 %v1259, %v1262
    %v1265 = vadd.f32 %v1260, %v1262
    %s1266 = scalar_lea.vmem %s2, 32
    %v1267 = vld [vmem:[%s1266] sm:$0xff]
    %v1268 = vld [vmem:[%s1266 + $0x8] sm:$0xff]
    %v1269 = vld [vmem:[%s1266 + $0x10] sm:$0xff]
    %v1270 = vld [vmem:[%s1266 + $0x18] sm:$0xff]
    %s1271 = scalar_lea.vmem [#allocation7], 1
    %v1272 = vld [vmem:[%s1271] sm:$0x1]
    %v1274 = vperm.slane %v1272, 0
    %v1277 = vsel %vm152, %v1264, 0
    %v1280 = vsel %vm152, %v1265, 0
    %1282 = vmatpush.msra.mxu0 0.0
    %1283 = vmatpush.msra.mxu0 0.0
    %1284 = vmatpush.msra.mxu0 0.0
    %1285 = vmatpush.msra.mxu0 0.0
    %1286 = vmatpush.msra.mxu0 0.0
    %1287 = vmatpush.msra.mxu0 0.0
    %1288 = vmatpush.msra.mxu0 0.0
    %1289 = vmatpush.msra.mxu0 0.0
    %1290 = vmatpush.msra.mxu0 0.0
    %1291 = vmatpush.msra.mxu0 0.0
    %1292 = vmatpush.msra.mxu0 0.0
    %1293 = vmatpush.msra.mxu0 0.0
    %1294 = vmatpush.msra.mxu0 %v1270
    %1295 = vmatpush.msra.mxu0 %v1269
    %1296 = vmatpush.msra.mxu0 %v1268
    %1297 = vmatpush.msra.mxu0 %v1267
    %1298 = vmatmul.f32.gmra.mxu0 %v1277
    %v1299 = vpop.f32.mrf.mxu0
    %v1300 = vadd.f32 %v1274, %v1299
    %1301 = vmatmul.f32.gmra.mxu0 %v1280
    %v1302 = vpop.f32.mrf.mxu0
    %v1303 = vadd.f32 %v1274, %v1302
    %1304 = vdwg.mxu0
    %1307 = vrot.lane.b32.xlu0 %v1300, 120
    %v1308 = vpop.permute.xlu0 %1307
    %1309 = vrot.lane.b32.xlu0 %v1303, 120
    %v1310 = vpop.permute.xlu0 %1309
    %1311 = vrot.lane.b32.xlu0 %v1300, 112
    %v1312 = vpop.permute.xlu0 %1311
    %1313 = vrot.lane.b32.xlu0 %v1303, 112
    %v1314 = vpop.permute.xlu0 %1313
    %1315 = vrot.lane.b32.xlu0 %v1300, 104
    %v1316 = vpop.permute.xlu0 %1315
    %1317 = vrot.lane.b32.xlu0 %v1303, 104
    %v1318 = vpop.permute.xlu0 %1317
    %1319 = vrot.lane.b32.xlu0 %v1300, 96
    %v1320 = vpop.permute.xlu0 %1319
    %v1321 = vsel %vm299, %v1300, 0
    %v1323 = vsel %vm299, %v1320, 0
    %1325 = vmatpush.xpose.msra.mxu0 0.0
    %1326 = vmatpush.xpose.msra.mxu0 0.0
    %1327 = vmatpush.xpose.msra.mxu0 0.0
    %1328 = vmatpush.xpose.msra.mxu0 0.0
    %1329 = vmatpush.xpose.msra.mxu0 0.0
    %1330 = vmatpush.xpose.msra.mxu0 0.0
    %1331 = vmatpush.xpose.msra.mxu0 0.0
    %1332 = vmatpush.xpose.msra.mxu0 0.0
    %1333 = vmatpush.xpose.msra.mxu0 0.0
    %1334 = vmatpush.xpose.msra.mxu0 0.0
    %1335 = vmatpush.xpose.msra.mxu0 0.0
    %1336 = vmatpush.xpose.msra.mxu0 0.0
    %1337 = vmatpush.xpose.msra.mxu0 0.0
    %1338 = vmatpush.xpose.msra.mxu0 0.0
    %1339 = vmatpush.xpose.msra.mxu0 0.0
    %1340 = vmatpush.xpose.msra.mxu0 %v1323
    %1341 = vmatmul.f32.gmra.mxu0 %v1321
    %v1342 = vpop.f32.mrf.mxu0
    %v1343 = vadd.f32 0.0, %v1342
    %1344 = vdwg.mxu0
    %1345 = vrot.lane.b32.xlu0 %v1303, 96
    %v1346 = vpop.permute.xlu0 %1345
    %v1347 = vsel %vm299, %v1303, 0
    %v1349 = vsel %vm299, %v1346, 0
    %1351 = vmatpush.xpose.msra.mxu0 0.0
    %1352 = vmatpush.xpose.msra.mxu0 0.0
    %1353 = vmatpush.xpose.msra.mxu0 0.0
    %1354 = vmatpush.xpose.msra.mxu0 0.0
    %1355 = vmatpush.xpose.msra.mxu0 0.0
    %1356 = vmatpush.xpose.msra.mxu0 0.0
    %1357 = vmatpush.xpose.msra.mxu0 0.0
    %1358 = vmatpush.xpose.msra.mxu0 0.0
    %1359 = vmatpush.xpose.msra.mxu0 0.0
    %1360 = vmatpush.xpose.msra.mxu0 0.0
    %1361 = vmatpush.xpose.msra.mxu0 0.0
    %1362 = vmatpush.xpose.msra.mxu0 0.0
    %1363 = vmatpush.xpose.msra.mxu0 0.0
    %1364 = vmatpush.xpose.msra.mxu0 0.0
    %1365 = vmatpush.xpose.msra.mxu0 0.0
    %1366 = vmatpush.xpose.msra.mxu0 %v1349
    %1367 = vmatmul.f32.gmra.mxu0 %v1347
    %v1368 = vpop.f32.mrf.mxu0
    %v1369 = vadd.f32 0.0, %v1368
    %1370 = vdwg.mxu0
    %1371 = vrot.lane.b32.xlu0 %v1308, 96
    %v1372 = vpop.permute.xlu0 %1371
    %v1373 = vsel %vm299, %v1308, 0
    %v1375 = vsel %vm299, %v1372, 0
    %1377 = vmatpush.xpose.msra.mxu0 0.0
    %1378 = vmatpush.xpose.msra.mxu0 0.0
    %1379 = vmatpush.xpose.msra.mxu0 0.0
    %1380 = vmatpush.xpose.msra.mxu0 0.0
    %1381 = vmatpush.xpose.msra.mxu0 0.0
    %1382 = vmatpush.xpose.msra.mxu0 0.0
    %1383 = vmatpush.xpose.msra.mxu0 0.0
    %1384 = vmatpush.xpose.msra.mxu0 0.0
    %1385 = vmatpush.xpose.msra.mxu0 0.0
    %1386 = vmatpush.xpose.msra.mxu0 0.0
    %1387 = vmatpush.xpose.msra.mxu0 0.0
    %1388 = vmatpush.xpose.msra.mxu0 0.0
    %1389 = vmatpush.xpose.msra.mxu0 0.0
    %1390 = vmatpush.xpose.msra.mxu0 0.0
    %1391 = vmatpush.xpose.msra.mxu0 0.0
    %1392 = vmatpush.xpose.msra.mxu0 %v1375
    %1393 = vmatmul.f32.gmra.mxu0 %v1373
    %v1394 = vpop.f32.mrf.mxu0
    %v1395 = vadd.f32 0.0, %v1394
    %1396 = vdwg.mxu0
    %1397 = vrot.lane.b32.xlu0 %v1310, 96
    %v1398 = vpop.permute.xlu0 %1397
    %v1399 = vsel %vm299, %v1310, 0
    %v1401 = vsel %vm299, %v1398, 0
    %1403 = vmatpush.xpose.msra.mxu0 0.0
    %1404 = vmatpush.xpose.msra.mxu0 0.0
    %1405 = vmatpush.xpose.msra.mxu0 0.0
    %1406 = vmatpush.xpose.msra.mxu0 0.0
    %1407 = vmatpush.xpose.msra.mxu0 0.0
    %1408 = vmatpush.xpose.msra.mxu0 0.0
    %1409 = vmatpush.xpose.msra.mxu0 0.0
    %1410 = vmatpush.xpose.msra.mxu0 0.0
    %1411 = vmatpush.xpose.msra.mxu0 0.0
    %1412 = vmatpush.xpose.msra.mxu0 0.0
    %1413 = vmatpush.xpose.msra.mxu0 0.0
    %1414 = vmatpush.xpose.msra.mxu0 0.0
    %1415 = vmatpush.xpose.msra.mxu0 0.0
    %1416 = vmatpush.xpose.msra.mxu0 0.0
    %1417 = vmatpush.xpose.msra.mxu0 0.0
    %1418 = vmatpush.xpose.msra.mxu0 %v1401
    %1419 = vmatmul.f32.gmra.mxu0 %v1399
    %v1420 = vpop.f32.mrf.mxu0
    %v1421 = vadd.f32 0.0, %v1420
    %1422 = vdwg.mxu0
    %1423 = vrot.lane.b32.xlu0 %v1312, 96
    %v1424 = vpop.permute.xlu0 %1423
    %v1425 = vsel %vm299, %v1312, 0
    %v1427 = vsel %vm299, %v1424, 0
    %1429 = vmatpush.xpose.msra.mxu0 0.0
    %1430 = vmatpush.xpose.msra.mxu0 0.0
    %1431 = vmatpush.xpose.msra.mxu0 0.0
    %1432 = vmatpush.xpose.msra.mxu0 0.0
    %1433 = vmatpush.xpose.msra.mxu0 0.0
    %1434 = vmatpush.xpose.msra.mxu0 0.0
    %1435 = vmatpush.xpose.msra.mxu0 0.0
    %1436 = vmatpush.xpose.msra.mxu0 0.0
    %1437 = vmatpush.xpose.msra.mxu0 0.0
    %1438 = vmatpush.xpose.msra.mxu0 0.0
    %1439 = vmatpush.xpose.msra.mxu0 0.0
    %1440 = vmatpush.xpose.msra.mxu0 0.0
    %1441 = vmatpush.xpose.msra.mxu0 0.0
    %1442 = vmatpush.xpose.msra.mxu0 0.0
    %1443 = vmatpush.xpose.msra.mxu0 0.0
    %1444 = vmatpush.xpose.msra.mxu0 %v1427
    %1445 = vmatmul.f32.gmra.mxu0 %v1425
    %v1446 = vpop.f32.mrf.mxu0
    %v1447 = vadd.f32 0.0, %v1446
    %1448 = vdwg.mxu0
    %1449 = vrot.lane.b32.xlu0 %v1314, 96
    %v1450 = vpop.permute.xlu0 %1449
    %v1451 = vsel %vm299, %v1314, 0
    %v1453 = vsel %vm299, %v1450, 0
    %1455 = vmatpush.xpose.msra.mxu0 0.0
    %1456 = vmatpush.xpose.msra.mxu0 0.0
    %1457 = vmatpush.xpose.msra.mxu0 0.0
    %1458 = vmatpush.xpose.msra.mxu0 0.0
    %1459 = vmatpush.xpose.msra.mxu0 0.0
    %1460 = vmatpush.xpose.msra.mxu0 0.0
    %1461 = vmatpush.xpose.msra.mxu0 0.0
    %1462 = vmatpush.xpose.msra.mxu0 0.0
    %1463 = vmatpush.xpose.msra.mxu0 0.0
    %1464 = vmatpush.xpose.msra.mxu0 0.0
    %1465 = vmatpush.xpose.msra.mxu0 0.0
    %1466 = vmatpush.xpose.msra.mxu0 0.0
    %1467 = vmatpush.xpose.msra.mxu0 0.0
    %1468 = vmatpush.xpose.msra.mxu0 0.0
    %1469 = vmatpush.xpose.msra.mxu0 0.0
    %1470 = vmatpush.xpose.msra.mxu0 %v1453
    %1471 = vmatmul.f32.gmra.mxu0 %v1451
    %v1472 = vpop.f32.mrf.mxu0
    %v1473 = vadd.f32 0.0, %v1472
    %1474 = vdwg.mxu0
    %1475 = vrot.lane.b32.xlu0 %v1316, 96
    %v1476 = vpop.permute.xlu0 %1475
    %v1477 = vsel %vm299, %v1316, 0
    %v1479 = vsel %vm299, %v1476, 0
    %1481 = vmatpush.xpose.msra.mxu0 0.0
    %1482 = vmatpush.xpose.msra.mxu0 0.0
    %1483 = vmatpush.xpose.msra.mxu0 0.0
    %1484 = vmatpush.xpose.msra.mxu0 0.0
    %1485 = vmatpush.xpose.msra.mxu0 0.0
    %1486 = vmatpush.xpose.msra.mxu0 0.0
    %1487 = vmatpush.xpose.msra.mxu0 0.0
    %1488 = vmatpush.xpose.msra.mxu0 0.0
    %1489 = vmatpush.xpose.msra.mxu0 0.0
    %1490 = vmatpush.xpose.msra.mxu0 0.0
    %1491 = vmatpush.xpose.msra.mxu0 0.0
    %1492 = vmatpush.xpose.msra.mxu0 0.0
    %1493 = vmatpush.xpose.msra.mxu0 0.0
    %1494 = vmatpush.xpose.msra.mxu0 0.0
    %1495 = vmatpush.xpose.msra.mxu0 0.0
    %1496 = vmatpush.xpose.msra.mxu0 %v1479
    %1497 = vmatmul.f32.gmra.mxu0 %v1477
    %v1498 = vpop.f32.mrf.mxu0
    %v1499 = vadd.f32 0.0, %v1498
    %1500 = vdwg.mxu0
    %1501 = vrot.lane.b32.xlu0 %v1318, 96
    %v1502 = vpop.permute.xlu0 %1501
    %v1503 = vsel %vm299, %v1318, 0
    %v1505 = vsel %vm299, %v1502, 0
    %1507 = vmatpush.xpose.msra.mxu0 0.0
    %1508 = vmatpush.xpose.msra.mxu0 0.0
    %1509 = vmatpush.xpose.msra.mxu0 0.0
    %1510 = vmatpush.xpose.msra.mxu0 0.0
    %1511 = vmatpush.xpose.msra.mxu0 0.0
    %1512 = vmatpush.xpose.msra.mxu0 0.0
    %1513 = vmatpush.xpose.msra.mxu0 0.0
    %1514 = vmatpush.xpose.msra.mxu0 0.0
    %1515 = vmatpush.xpose.msra.mxu0 0.0
    %1516 = vmatpush.xpose.msra.mxu0 0.0
    %1517 = vmatpush.xpose.msra.mxu0 0.0
    %1518 = vmatpush.xpose.msra.mxu0 0.0
    %1519 = vmatpush.xpose.msra.mxu0 0.0
    %1520 = vmatpush.xpose.msra.mxu0 0.0
    %1521 = vmatpush.xpose.msra.mxu0 0.0
    %1522 = vmatpush.xpose.msra.mxu0 %v1505
    %1523 = vmatmul.f32.gmra.mxu0 %v1503
    %v1524 = vpop.f32.mrf.mxu0
    %v1525 = vadd.f32 0.0, %v1524
    %1526 = vdwg.mxu0
    %v1527 = vmul.f32 %v1343, 0.35355338
    %v1528 = vmul.f32 %v1369, 0.35355338
    %v1529 = vmul.f32 %v1395, 0.35355338
    %v1530 = vmul.f32 %v1421, 0.35355338
    %v1531 = vmul.f32 %v1447, 0.35355338
    %v1532 = vmul.f32 %v1473, 0.35355338
    %v1533 = vmul.f32 %v1499, 0.35355338
    %v1534 = vmul.f32 %v1525, 0.35355338
    %v1535 = vadd.f32 %v1527, %v516
    %v1536 = vadd.f32 %v1528, %v517
    %v1537 = vadd.f32 %v1529, %v516
    %v1538 = vadd.f32 %v1530, %v517
    %v1539 = vadd.f32 %v1531, %v516
    %v1540 = vadd.f32 %v1532, %v517
    %v1541 = vadd.f32 %v1533, %v516
    %v1542 = vadd.f32 %v1534, %v517
    %v1543 = vsel %vm299, %v1535, -inf
    %1544 = vmax.xlane.f32.xlu0 %v1543
    %v1545 = vpop.xlane.xlu0 %1544
    %v1546 = vsel %vm299, %v1536, -inf
    %1547 = vmax.xlane.f32.xlu0 %v1546
    %v1548 = vpop.xlane.xlu0 %1547
    %v1549 = vsel %vm299, %v1537, -inf
    %1550 = vmax.xlane.f32.xlu0 %v1549
    %v1551 = vpop.xlane.xlu0 %1550
    %v1552 = vsel %vm299, %v1538, -inf
    %1553 = vmax.xlane.f32.xlu0 %v1552
    %v1554 = vpop.xlane.xlu0 %1553
    %v1555 = vsel %vm299, %v1539, -inf
    %1556 = vmax.xlane.f32.xlu0 %v1555
    %v1557 = vpop.xlane.xlu0 %1556
    %v1558 = vsel %vm299, %v1540, -inf
    %1559 = vmax.xlane.f32.xlu0 %v1558
    %v1560 = vpop.xlane.xlu0 %1559
    %v1561 = vsel %vm299, %v1541, -inf
    %1562 = vmax.xlane.f32.xlu0 %v1561
    %v1563 = vpop.xlane.xlu0 %1562
    %v1564 = vsel %vm299, %v1542, -inf
    %1565 = vmax.xlane.f32.xlu0 %v1564
    %v1566 = vpop.xlane.xlu0 %1565
    %v1567 = vsub.f32 %v1535, %v1545
    %v1568 = vsub.f32 %v1536, %v1548
    %v1569 = vsub.f32 %v1537, %v1551
    %v1570 = vsub.f32 %v1538, %v1554
    %v1571 = vsub.f32 %v1539, %v1557
    %v1572 = vsub.f32 %v1540, %v1560
    %v1573 = vsub.f32 %v1541, %v1563
    %v1574 = vsub.f32 %v1542, %v1566
    %v1575 = vmul.f32 %v1567, 1.442695
    %v1576 = vpow.pop %v1575
    %v1577 = vmul.f32 %v1568, 1.442695
    %v1578 = vpow.pop %v1577
    %v1579 = vmul.f32 %v1569, 1.442695
    %v1580 = vpow.pop %v1579
    %v1581 = vmul.f32 %v1570, 1.442695
    %v1582 = vpow.pop %v1581
    %v1583 = vmul.f32 %v1571, 1.442695
    %v1584 = vpow.pop %v1583
    %v1585 = vmul.f32 %v1572, 1.442695
    %v1586 = vpow.pop %v1585
    %v1587 = vmul.f32 %v1573, 1.442695
    %v1588 = vpow.pop %v1587
    %v1589 = vmul.f32 %v1574, 1.442695
    %v1590 = vpow.pop %v1589
    %v1591 = vsel %vm299, %v1576, 0.0
    %1592 = vadd.xlane.f32.xlu0 %v1591
    %v1593 = vpop.xlane.xlu0 %1592
    %v1594 = vsel %vm299, %v1578, 0.0
    %1595 = vadd.xlane.f32.xlu0 %v1594
    %v1596 = vpop.xlane.xlu0 %1595
    %v1597 = vsel %vm299, %v1580, 0.0
    %1598 = vadd.xlane.f32.xlu0 %v1597
    %v1599 = vpop.xlane.xlu0 %1598
    %v1600 = vsel %vm299, %v1582, 0.0
    %1601 = vadd.xlane.f32.xlu0 %v1600
    %v1602 = vpop.xlane.xlu0 %1601
    %v1603 = vsel %vm299, %v1584, 0.0
    %1604 = vadd.xlane.f32.xlu0 %v1603
    %v1605 = vpop.xlane.xlu0 %1604
    %v1606 = vsel %vm299, %v1586, 0.0
    %1607 = vadd.xlane.f32.xlu0 %v1606
    %v1608 = vpop.xlane.xlu0 %1607
    %v1609 = vsel %vm299, %v1588, 0.0
    %1610 = vadd.xlane.f32.xlu0 %v1609
    %v1611 = vpop.xlane.xlu0 %1610
    %v1612 = vsel %vm299, %v1590, 0.0
    %1613 = vadd.xlane.f32.xlu0 %v1612
    %v1614 = vpop.xlane.xlu0 %1613
    %v1615 = vrcp.pop %v1593
    %v1616 = vmul.f32 %v1593, %v1615
    %v1617 = vsub.f32 1.0, %v1616
    %v1618 = vmul.f32 %v1615, %v1617
    %v1619 = vadd.f32 %v1615, %v1618
    %vm1620 = vweird.f32 %v1593
    %vm1621 = vweird.f32 %v1615
    %vm1622 = vmor %vm1620, %vm1621
    %v1623 = vsel %vm1622, %v1615, %v1619
    %v1624 = vand.u32 2147483647, %v1593
    %vm1625 = vcmp.eq.f32.partialorder %v1624, 8.507059e+37
    %v1626 = vand.u32 %v1593, 2147483648
    %v1627 = vor.u32 1.1754944e-38, %v1626
    %v1628 = vsel %vm1625, %v1627, %v1623
    %v1629 = vrcp.pop %v1596
    %v1630 = vmul.f32 %v1596, %v1629
    %v1631 = vsub.f32 1.0, %v1630
    %v1632 = vmul.f32 %v1629, %v1631
    %v1633 = vadd.f32 %v1629, %v1632
    %vm1634 = vweird.f32 %v1596
    %vm1635 = vweird.f32 %v1629
    %vm1636 = vmor %vm1634, %vm1635
    %v1637 = vsel %vm1636, %v1629, %v1633
    %v1638 = vand.u32 2147483647, %v1596
    %vm1639 = vcmp.eq.f32.partialorder %v1638, 8.507059e+37
    %v1640 = vand.u32 %v1596, 2147483648
    %v1641 = vor.u32 1.1754944e-38, %v1640
    %v1642 = vsel %vm1639, %v1641, %v1637
    %v1643 = vrcp.pop %v1599
    %v1644 = vmul.f32 %v1599, %v1643
    %v1645 = vsub.f32 1.0, %v1644
    %v1646 = vmul.f32 %v1643, %v1645
    %v1647 = vadd.f32 %v1643, %v1646
    %vm1648 = vweird.f32 %v1599
    %vm1649 = vweird.f32 %v1643
    %vm1650 = vmor %vm1648, %vm1649
    %v1651 = vsel %vm1650, %v1643, %v1647
    %v1652 = vand.u32 2147483647, %v1599
    %vm1653 = vcmp.eq.f32.partialorder %v1652, 8.507059e+37
    %v1654 = vand.u32 %v1599, 2147483648
    %v1655 = vor.u32 1.1754944e-38, %v1654
    %v1656 = vsel %vm1653, %v1655, %v1651
    %v1657 = vrcp.pop %v1602
    %v1658 = vmul.f32 %v1602, %v1657
    %v1659 = vsub.f32 1.0, %v1658
    %v1660 = vmul.f32 %v1657, %v1659
    %v1661 = vadd.f32 %v1657, %v1660
    %vm1662 = vweird.f32 %v1602
    %vm1663 = vweird.f32 %v1657
    %vm1664 = vmor %vm1662, %vm1663
    %v1665 = vsel %vm1664, %v1657, %v1661
    %v1666 = vand.u32 2147483647, %v1602
    %vm1667 = vcmp.eq.f32.partialorder %v1666, 8.507059e+37
    %v1668 = vand.u32 %v1602, 2147483648
    %v1669 = vor.u32 1.1754944e-38, %v1668
    %v1670 = vsel %vm1667, %v1669, %v1665
    %v1671 = vrcp.pop %v1605
    %v1672 = vmul.f32 %v1605, %v1671
    %v1673 = vsub.f32 1.0, %v1672
    %v1674 = vmul.f32 %v1671, %v1673
    %v1675 = vadd.f32 %v1671, %v1674
    %vm1676 = vweird.f32 %v1605
    %vm1677 = vweird.f32 %v1671
    %vm1678 = vmor %vm1676, %vm1677
    %v1679 = vsel %vm1678, %v1671, %v1675
    %v1680 = vand.u32 2147483647, %v1605
    %vm1681 = vcmp.eq.f32.partialorder %v1680, 8.507059e+37
    %v1682 = vand.u32 %v1605, 2147483648
    %v1683 = vor.u32 1.1754944e-38, %v1682
    %v1684 = vsel %vm1681, %v1683, %v1679
    %v1685 = vrcp.pop %v1608
    %v1686 = vmul.f32 %v1608, %v1685
    %v1687 = vsub.f32 1.0, %v1686
    %v1688 = vmul.f32 %v1685, %v1687
    %v1689 = vadd.f32 %v1685, %v1688
    %vm1690 = vweird.f32 %v1608
    %vm1691 = vweird.f32 %v1685
    %vm1692 = vmor %vm1690, %vm1691
    %v1693 = vsel %vm1692, %v1685, %v1689
    %v1694 = vand.u32 2147483647, %v1608
    %vm1695 = vcmp.eq.f32.partialorder %v1694, 8.507059e+37
    %v1696 = vand.u32 %v1608, 2147483648
    %v1697 = vor.u32 1.1754944e-38, %v1696
    %v1698 = vsel %vm1695, %v1697, %v1693
    %v1699 = vrcp.pop %v1611
    %v1700 = vmul.f32 %v1611, %v1699
    %v1701 = vsub.f32 1.0, %v1700
    %v1702 = vmul.f32 %v1699, %v1701
    %v1703 = vadd.f32 %v1699, %v1702
    %vm1704 = vweird.f32 %v1611
    %vm1705 = vweird.f32 %v1699
    %vm1706 = vmor %vm1704, %vm1705
    %v1707 = vsel %vm1706, %v1699, %v1703
    %v1708 = vand.u32 2147483647, %v1611
    %vm1709 = vcmp.eq.f32.partialorder %v1708, 8.507059e+37
    %v1710 = vand.u32 %v1611, 2147483648
    %v1711 = vor.u32 1.1754944e-38, %v1710
    %v1712 = vsel %vm1709, %v1711, %v1707
    %v1713 = vrcp.pop %v1614
    %v1714 = vmul.f32 %v1614, %v1713
    %v1715 = vsub.f32 1.0, %v1714
    %v1716 = vmul.f32 %v1713, %v1715
    %v1717 = vadd.f32 %v1713, %v1716
    %vm1718 = vweird.f32 %v1614
    %vm1719 = vweird.f32 %v1713
    %vm1720 = vmor %vm1718, %vm1719
    %v1721 = vsel %vm1720, %v1713, %v1717
    %v1722 = vand.u32 2147483647, %v1614
    %vm1723 = vcmp.eq.f32.partialorder %v1722, 8.507059e+37
    %v1724 = vand.u32 %v1614, 2147483648
    %v1725 = vor.u32 1.1754944e-38, %v1724
    %v1726 = vsel %vm1723, %v1725, %v1721
    %v1727 = vmul.f32 %v1576, %v1628
    %v1728 = vmul.f32 %v1578, %v1642
    %v1729 = vmul.f32 %v1580, %v1656
    %v1730 = vmul.f32 %v1582, %v1670
    %v1731 = vmul.f32 %v1584, %v1684
    %v1732 = vmul.f32 %v1586, %v1698
    %v1733 = vmul.f32 %v1588, %v1712
    %v1734 = vmul.f32 %v1590, %v1726
    %1735 = vrot.lane.b32.xlu0 %v1300, 64
    %v1736 = vpop.permute.xlu0 %1735
    %v1739 = vsel %vm299, %v1727, 0
    %1741 = vmatpush.msra.mxu0 0.0
    %1742 = vmatpush.msra.mxu0 0.0
    %1743 = vmatpush.msra.mxu0 0.0
    %1744 = vmatpush.msra.mxu0 0.0
    %1745 = vmatpush.msra.mxu0 0.0
    %1746 = vmatpush.msra.mxu0 0.0
    %1747 = vmatpush.msra.mxu0 0.0
    %1748 = vmatpush.msra.mxu0 0.0
    %1749 = vmatpush.msra.mxu0 0.0
    %1750 = vmatpush.msra.mxu0 0.0
    %1751 = vmatpush.msra.mxu0 0.0
    %1752 = vmatpush.msra.mxu0 0.0
    %1753 = vmatpush.msra.mxu0 0.0
    %1754 = vmatpush.msra.mxu0 0.0
    %1755 = vmatpush.msra.mxu0 0.0
    %1756 = vmatpush.msra.mxu0 %v1736
    %1757 = vmatmul.f32.gmra.mxu0 %v1739
    %v1758 = vpop.f32.mrf.mxu0
    %v1759 = vadd.f32 0.0, %v1758
    %1760 = vdwg.mxu0
    %1761 = vrot.lane.b32.xlu0 %v1303, 64
    %v1762 = vpop.permute.xlu0 %1761
    %v1765 = vsel %vm299, %v1728, 0
    %1767 = vmatpush.msra.mxu0 0.0
    %1768 = vmatpush.msra.mxu0 0.0
    %1769 = vmatpush.msra.mxu0 0.0
    %1770 = vmatpush.msra.mxu0 0.0
    %1771 = vmatpush.msra.mxu0 0.0
    %1772 = vmatpush.msra.mxu0 0.0
    %1773 = vmatpush.msra.mxu0 0.0
    %1774 = vmatpush.msra.mxu0 0.0
    %1775 = vmatpush.msra.mxu0 0.0
    %1776 = vmatpush.msra.mxu0 0.0
    %1777 = vmatpush.msra.mxu0 0.0
    %1778 = vmatpush.msra.mxu0 0.0
    %1779 = vmatpush.msra.mxu0 0.0
    %1780 = vmatpush.msra.mxu0 0.0
    %1781 = vmatpush.msra.mxu0 0.0
    %1782 = vmatpush.msra.mxu0 %v1762
    %1783 = vmatmul.f32.gmra.mxu0 %v1765
    %v1784 = vpop.f32.mrf.mxu0
    %v1785 = vadd.f32 0.0, %v1784
    %1786 = vdwg.mxu0
    %1787 = vrot.lane.b32.xlu0 %v1308, 64
    %v1788 = vpop.permute.xlu0 %1787
    %v1791 = vsel %vm299, %v1729, 0
    %1793 = vmatpush.msra.mxu0 0.0
    %1794 = vmatpush.msra.mxu0 0.0
    %1795 = vmatpush.msra.mxu0 0.0
    %1796 = vmatpush.msra.mxu0 0.0
    %1797 = vmatpush.msra.mxu0 0.0
    %1798 = vmatpush.msra.mxu0 0.0
    %1799 = vmatpush.msra.mxu0 0.0
    %1800 = vmatpush.msra.mxu0 0.0
    %1801 = vmatpush.msra.mxu0 0.0
    %1802 = vmatpush.msra.mxu0 0.0
    %1803 = vmatpush.msra.mxu0 0.0
    %1804 = vmatpush.msra.mxu0 0.0
    %1805 = vmatpush.msra.mxu0 0.0
    %1806 = vmatpush.msra.mxu0 0.0
    %1807 = vmatpush.msra.mxu0 0.0
    %1808 = vmatpush.msra.mxu0 %v1788
    %1809 = vmatmul.f32.gmra.mxu0 %v1791
    %v1810 = vpop.f32.mrf.mxu0
    %v1811 = vadd.f32 0.0, %v1810
    %1812 = vdwg.mxu0
    %1813 = vrot.lane.b32.xlu0 %v1310, 64
    %v1814 = vpop.permute.xlu0 %1813
    %v1817 = vsel %vm299, %v1730, 0
    %1819 = vmatpush.msra.mxu0 0.0
    %1820 = vmatpush.msra.mxu0 0.0
    %1821 = vmatpush.msra.mxu0 0.0
    %1822 = vmatpush.msra.mxu0 0.0
    %1823 = vmatpush.msra.mxu0 0.0
    %1824 = vmatpush.msra.mxu0 0.0
    %1825 = vmatpush.msra.mxu0 0.0
    %1826 = vmatpush.msra.mxu0 0.0
    %1827 = vmatpush.msra.mxu0 0.0
    %1828 = vmatpush.msra.mxu0 0.0
    %1829 = vmatpush.msra.mxu0 0.0
    %1830 = vmatpush.msra.mxu0 0.0
    %1831 = vmatpush.msra.mxu0 0.0
    %1832 = vmatpush.msra.mxu0 0.0
    %1833 = vmatpush.msra.mxu0 0.0
    %1834 = vmatpush.msra.mxu0 %v1814
    %1835 = vmatmul.f32.gmra.mxu0 %v1817
    %v1836 = vpop.f32.mrf.mxu0
    %v1837 = vadd.f32 0.0, %v1836
    %1838 = vdwg.mxu0
    %1839 = vrot.lane.b32.xlu0 %v1312, 64
    %v1840 = vpop.permute.xlu0 %1839
    %v1843 = vsel %vm299, %v1731, 0
    %1845 = vmatpush.msra.mxu0 0.0
    %1846 = vmatpush.msra.mxu0 0.0
    %1847 = vmatpush.msra.mxu0 0.0
    %1848 = vmatpush.msra.mxu0 0.0
    %1849 = vmatpush.msra.mxu0 0.0
    %1850 = vmatpush.msra.mxu0 0.0
    %1851 = vmatpush.msra.mxu0 0.0
    %1852 = vmatpush.msra.mxu0 0.0
    %1853 = vmatpush.msra.mxu0 0.0
    %1854 = vmatpush.msra.mxu0 0.0
    %1855 = vmatpush.msra.mxu0 0.0
    %1856 = vmatpush.msra.mxu0 0.0
    %1857 = vmatpush.msra.mxu0 0.0
    %1858 = vmatpush.msra.mxu0 0.0
    %1859 = vmatpush.msra.mxu0 0.0
    %1860 = vmatpush.msra.mxu0 %v1840
    %1861 = vmatmul.f32.gmra.mxu0 %v1843
    %v1862 = vpop.f32.mrf.mxu0
    %v1863 = vadd.f32 0.0, %v1862
    %1864 = vdwg.mxu0
    %1865 = vrot.lane.b32.xlu0 %v1314, 64
    %v1866 = vpop.permute.xlu0 %1865
    %v1869 = vsel %vm299, %v1732, 0
    %1871 = vmatpush.msra.mxu0 0.0
    %1872 = vmatpush.msra.mxu0 0.0
    %1873 = vmatpush.msra.mxu0 0.0
    %1874 = vmatpush.msra.mxu0 0.0
    %1875 = vmatpush.msra.mxu0 0.0
    %1876 = vmatpush.msra.mxu0 0.0
    %1877 = vmatpush.msra.mxu0 0.0
    %1878 = vmatpush.msra.mxu0 0.0
    %1879 = vmatpush.msra.mxu0 0.0
    %1880 = vmatpush.msra.mxu0 0.0
    %1881 = vmatpush.msra.mxu0 0.0
    %1882 = vmatpush.msra.mxu0 0.0
    %1883 = vmatpush.msra.mxu0 0.0
    %1884 = vmatpush.msra.mxu0 0.0
    %1885 = vmatpush.msra.mxu0 0.0
    %1886 = vmatpush.msra.mxu0 %v1866
    %1887 = vmatmul.f32.gmra.mxu0 %v1869
    %v1888 = vpop.f32.mrf.mxu0
    %v1889 = vadd.f32 0.0, %v1888
    %1890 = vdwg.mxu0
    %1891 = vrot.lane.b32.xlu0 %v1316, 64
    %v1892 = vpop.permute.xlu0 %1891
    %v1895 = vsel %vm299, %v1733, 0
    %1897 = vmatpush.msra.mxu0 0.0
    %1898 = vmatpush.msra.mxu0 0.0
    %1899 = vmatpush.msra.mxu0 0.0
    %1900 = vmatpush.msra.mxu0 0.0
    %1901 = vmatpush.msra.mxu0 0.0
    %1902 = vmatpush.msra.mxu0 0.0
    %1903 = vmatpush.msra.mxu0 0.0
    %1904 = vmatpush.msra.mxu0 0.0
    %1905 = vmatpush.msra.mxu0 0.0
    %1906 = vmatpush.msra.mxu0 0.0
    %1907 = vmatpush.msra.mxu0 0.0
    %1908 = vmatpush.msra.mxu0 0.0
    %1909 = vmatpush.msra.mxu0 0.0
    %1910 = vmatpush.msra.mxu0 0.0
    %1911 = vmatpush.msra.mxu0 0.0
    %1912 = vmatpush.msra.mxu0 %v1892
    %1913 = vmatmul.f32.gmra.mxu0 %v1895
    %v1914 = vpop.f32.mrf.mxu0
    %v1915 = vadd.f32 0.0, %v1914
    %1916 = vdwg.mxu0
    %1917 = vrot.lane.b32.xlu0 %v1318, 64
    %v1918 = vpop.permute.xlu0 %1917
    %v1921 = vsel %vm299, %v1734, 0
    %1923 = vmatpush.msra.mxu0 0.0
    %1924 = vmatpush.msra.mxu0 0.0
    %1925 = vmatpush.msra.mxu0 0.0
    %1926 = vmatpush.msra.mxu0 0.0
    %1927 = vmatpush.msra.mxu0 0.0
    %1928 = vmatpush.msra.mxu0 0.0
    %1929 = vmatpush.msra.mxu0 0.0
    %1930 = vmatpush.msra.mxu0 0.0
    %1931 = vmatpush.msra.mxu0 0.0
    %1932 = vmatpush.msra.mxu0 0.0
    %1933 = vmatpush.msra.mxu0 0.0
    %1934 = vmatpush.msra.mxu0 0.0
    %1935 = vmatpush.msra.mxu0 0.0
    %1936 = vmatpush.msra.mxu0 0.0
    %1937 = vmatpush.msra.mxu0 0.0
    %1938 = vmatpush.msra.mxu0 %v1918
    %1939 = vmatmul.f32.gmra.mxu0 %v1921
    %v1940 = vpop.f32.mrf.mxu0
    %v1941 = vadd.f32 0.0, %v1940
    %1942 = vdwg.mxu0
    %1945 = vrot.lane.b32.xlu0 %v1811, 8
    %v1946 = vpop.permute.xlu0 %1945
    %1947 = vrot.lane.b32.xlu0 %v1837, 8
    %v1948 = vpop.permute.xlu0 %1947
    %1953 = vrot.lane.b32.xlu0 %v1863, 16
    %v1954 = vpop.permute.xlu0 %1953
    %1955 = vrot.lane.b32.xlu0 %v1889, 16
    %v1956 = vpop.permute.xlu0 %1955
    %1961 = vrot.lane.b32.xlu0 %v1915, 24
    %v1962 = vpop.permute.xlu0 %1961
    %1963 = vrot.lane.b32.xlu0 %v1941, 24
    %v1964 = vpop.permute.xlu0 %1963
    %v1967 = vsel %vm299, %v1759, %v1946
    %v1968 = vsel %vm299, %v1785, %v1948
    %v1969 = vsel %vm954, %v1967, %v1954
    %v1970 = vsel %vm954, %v1968, %v1956
    %v1971 = vsel %vm957, %v1969, %v1962
    %v1972 = vsel %vm957, %v1970, %v1964
    %s1973 = scalar_lea.vmem %s4, 32
    %v1974 = vld [vmem:[%s1973] sm:$0xff]
    %v1975 = vld [vmem:[%s1973 + $0x8] sm:$0xff]
    %v1976 = vld [vmem:[%s1973 + $0x10] sm:$0xff]
    %v1977 = vld [vmem:[%s1973 + $0x18] sm:$0xff]
    %v1979 = vsel %vm152, %v1971, 0
    %v1982 = vsel %vm152, %v1972, 0
    %1984 = vmatpush.msra.mxu0 0.0
    %1985 = vmatpush.msra.mxu0 0.0
    %1986 = vmatpush.msra.mxu0 0.0
    %1987 = vmatpush.msra.mxu0 0.0
    %1988 = vmatpush.msra.mxu0 0.0
    %1989 = vmatpush.msra.mxu0 0.0
    %1990 = vmatpush.msra.mxu0 0.0
    %1991 = vmatpush.msra.mxu0 0.0
    %1992 = vmatpush.msra.mxu0 0.0
    %1993 = vmatpush.msra.mxu0 0.0
    %1994 = vmatpush.msra.mxu0 0.0
    %1995 = vmatpush.msra.mxu0 0.0
    %1996 = vmatpush.msra.mxu0 %v1977
    %1997 = vmatpush.msra.mxu0 %v1976
    %1998 = vmatpush.msra.mxu0 %v1975
    %1999 = vmatpush.msra.mxu0 %v1974
    %2000 = vmatmul.f32.gmra.mxu0 %v1979
    %v2001 = vpop.f32.mrf.mxu0
    %v2002 = vadd.f32 0.0, %v2001
    %2003 = vmatmul.f32.gmra.mxu0 %v1982
    %v2004 = vpop.f32.mrf.mxu0
    %v2005 = vadd.f32 0.0, %v2004
    %2006 = vdwg.mxu0
    %v2007 = vadd.f32 %v1174, %v2002
    %v2008 = vadd.f32 %v1175, %v2005
    %s2009 = scalar_lea.vmem [#allocation8], 1
    %v2010 = vld [vmem:[%s2009] sm:$0x1]
    %v2012 = vperm.slane %v2010, 0
    %v2014 = vadd.f32 %v2007, %v2012
    %v2015 = vadd.f32 %v2008, %v2012
    %s2016 = scalar_lea.vmem %s10, 3
    %v2017 = vld [vmem:[%s2016] sm:$0x1]
    %s2018 = scalar_lea.vmem %s11, 3
    %v2019 = vld [vmem:[%s2018] sm:$0x1]
    %v2020 = vsel %vm152, %v2014, 0.0
    %2021 = vadd.xlane.f32.xlu0 %v2020
    %v2022 = vpop.xlane.xlu0 %2021
    %v2023 = vsel %vm152, %v2015, 0.0
    %2024 = vadd.xlane.f32.xlu0 %v2023
    %v2025 = vpop.xlane.xlu0 %2024
    %v2026 = vmul.f32 %v2022, %v165
    %v2027 = vmul.f32 %v2025, %v165
    %v2028 = vsub.f32 %v2014, %v2026
    %v2029 = vsub.f32 %v2015, %v2027
    %v2030 = vmul.f32 %v2028, %v2028
    %v2031 = vmul.f32 %v2029, %v2029
    %v2032 = vsel %vm152, %v2030, 0.0
    %2033 = vadd.xlane.f32.xlu0 %v2032
    %v2034 = vpop.xlane.xlu0 %2033
    %v2035 = vsel %vm152, %v2031, 0.0
    %2036 = vadd.xlane.f32.xlu0 %v2035
    %v2037 = vpop.xlane.xlu0 %2036
    %v2038 = vmul.f32 %v2034, 0.032258064
    %v2039 = vmul.f32 %v2037, 0.032258064
    %v2040 = vrsqrt.pop %v2038
    %v2041 = vmul.f32 %v2040, %v2038
    %v2042 = vmul.f32 %v2041, %v2040
    %v2043 = vmul.f32 0.5, %v2042
    %v2044 = vsub.f32 1.5, %v2043
    %v2045 = vmul.f32 %v2040, %v2044
    %v2046 = vmul.f32 %v2038, %v2045
    %vm2047 = vcmp.eq.f32.partialorder %v2038, inf
    %v2048 = vsel %vm2047, %v2038, %v2046
    %vm2049 = vcmp.eq.f32.partialorder %v2038, 0.0
    %v2050 = vand.u32 %v2038, 2147483648
    %v2051 = vsel %vm2049, %v2050, %v2048
    %v2052 = vrsqrt.pop %v2039
    %v2053 = vmul.f32 %v2052, %v2039
    %v2054 = vmul.f32 %v2053, %v2052
    %v2055 = vmul.f32 0.5, %v2054
    %v2056 = vsub.f32 1.5, %v2055
    %v2057 = vmul.f32 %v2052, %v2056
    %v2058 = vmul.f32 %v2039, %v2057
    %vm2059 = vcmp.eq.f32.partialorder %v2039, inf
    %v2060 = vsel %vm2059, %v2039, %v2058
    %vm2061 = vcmp.eq.f32.partialorder %v2039, 0.0
    %v2062 = vand.u32 %v2039, 2147483648
    %v2063 = vsel %vm2061, %v2062, %v2060
    %v2064 = vadd.f32 %v2051, 1e-06
    %v2065 = vadd.f32 %v2063, 1e-06
    %v2066 = vrcp.pop %v2064
    %v2067 = vmul.f32 %v2064, %v2066
    %v2068 = vsub.f32 1.0, %v2067
    %v2069 = vmul.f32 %v2066, %v2068
    %v2070 = vadd.f32 %v2066, %v2069
    %vm2071 = vweird.f32 %v2064
    %vm2072 = vweird.f32 %v2066
    %vm2073 = vmor %vm2071, %vm2072
    %v2074 = vsel %vm2073, %v2066, %v2070
    %v2075 = vand.u32 2147483647, %v2064
    %vm2076 = vcmp.eq.f32.partialorder %v2075, 8.507059e+37
    %v2077 = vand.u32 %v2064, 2147483648
    %v2078 = vor.u32 1.1754944e-38, %v2077
    %v2079 = vsel %vm2076, %v2078, %v2074
    %v2080 = vrcp.pop %v2065
    %v2081 = vmul.f32 %v2065, %v2080
    %v2082 = vsub.f32 1.0, %v2081
    %v2083 = vmul.f32 %v2080, %v2082
    %v2084 = vadd.f32 %v2080, %v2083
    %vm2085 = vweird.f32 %v2065
    %vm2086 = vweird.f32 %v2080
    %vm2087 = vmor %vm2085, %vm2086
    %v2088 = vsel %vm2087, %v2080, %v2084
    %v2089 = vand.u32 2147483647, %v2065
    %vm2090 = vcmp.eq.f32.partialorder %v2089, 8.507059e+37
    %v2091 = vand.u32 %v2065, 2147483648
    %v2092 = vor.u32 1.1754944e-38, %v2091
    %v2093 = vsel %vm2090, %v2092, %v2088
    %v2095 = vperm.slane %v2017, 0
    %v2097 = vmul.f32 %v2095, %v2028
    %v2098 = vmul.f32 %v2095, %v2029
    %v2099 = vmul.f32 %v2097, %v2079
    %v2100 = vmul.f32 %v2098, %v2093
    %v2102 = vperm.slane %v2019, 0
    %v2104 = vadd.f32 %v2099, %v2102
    %v2105 = vadd.f32 %v2100, %v2102
    %s2106 = scalar_lea.vmem %s6, 32
    %v2107 = vld [vmem:[%s2106] sm:$0xff]
    %v2108 = vld [vmem:[%s2106 + $0x8] sm:$0xff]
    %v2109 = vld [vmem:[%s2106 + $0x10] sm:$0xff]
    %v2110 = vld [vmem:[%s2106 + $0x18] sm:$0xff]
    %s2111 = scalar_lea.vmem [#allocation10], 1
    %v2112 = vld [vmem:[%s2111] sm:$0x1]
    %v2114 = vperm.slane %v2112, 0
    %v2117 = vsel %vm152, %v2104, 0
    %v2120 = vsel %vm152, %v2105, 0
    %2122 = vmatpush.msra.mxu0 0.0
    %2123 = vmatpush.msra.mxu0 0.0
    %2124 = vmatpush.msra.mxu0 0.0
    %2125 = vmatpush.msra.mxu0 0.0
    %2126 = vmatpush.msra.mxu0 0.0
    %2127 = vmatpush.msra.mxu0 0.0
    %2128 = vmatpush.msra.mxu0 0.0
    %2129 = vmatpush.msra.mxu0 0.0
    %2130 = vmatpush.msra.mxu0 0.0
    %2131 = vmatpush.msra.mxu0 0.0
    %2132 = vmatpush.msra.mxu0 0.0
    %2133 = vmatpush.msra.mxu0 0.0
    %2134 = vmatpush.msra.mxu0 %v2110
    %2135 = vmatpush.msra.mxu0 %v2109
    %2136 = vmatpush.msra.mxu0 %v2108
    %2137 = vmatpush.msra.mxu0 %v2107
    %2138 = vmatmul.f32.gmra.mxu0 %v2117
    %v2139 = vpop.f32.mrf.mxu0
    %v2140 = vadd.f32 %v2114, %v2139
    %2141 = vmatmul.f32.gmra.mxu0 %v2120
    %v2142 = vpop.f32.mrf.mxu0
    %v2143 = vadd.f32 %v2114, %v2142
    %2144 = vdwg.mxu0
    %v2145 = vmax.f32 %v2140, 0.0
    %v2146 = vmax.f32 %v2143, 0.0
    %s2147 = scalar_lea.vmem %s8, 64
    %v2148 = vld [vmem:[%s2147] sm:$0xff]
    %v2149 = vld [vmem:[%s2147 + $0x8] sm:$0xff]
    %v2150 = vld [vmem:[%s2147 + $0x10] sm:$0xff]
    %v2151 = vld [vmem:[%s2147 + $0x18] sm:$0xff]
    %v2152 = vld [vmem:[%s2147 + $0x20] sm:$0xff]
    %v2153 = vld [vmem:[%s2147 + $0x28] sm:$0xff]
    %v2154 = vld [vmem:[%s2147 + $0x30] sm:$0xff]
    %v2155 = vld [vmem:[%s2147 + $0x38] sm:$0xff]
    %v2157 = vsel %vm1138, %v2145, 0
    %v2160 = vsel %vm1138, %v2146, 0
    %2162 = vmatpush.msra.mxu0 0.0
    %2163 = vmatpush.msra.mxu0 0.0
    %2164 = vmatpush.msra.mxu0 0.0
    %2165 = vmatpush.msra.mxu0 0.0
    %2166 = vmatpush.msra.mxu0 0.0
    %2167 = vmatpush.msra.mxu0 0.0
    %2168 = vmatpush.msra.mxu0 0.0
    %2169 = vmatpush.msra.mxu0 0.0
    %2170 = vmatpush.msra.mxu0 %v2155
    %2171 = vmatpush.msra.mxu0 %v2154
    %2172 = vmatpush.msra.mxu0 %v2153
    %2173 = vmatpush.msra.mxu0 %v2152
    %2174 = vmatpush.msra.mxu0 %v2151
    %2175 = vmatpush.msra.mxu0 %v2150
    %2176 = vmatpush.msra.mxu0 %v2149
    %2177 = vmatpush.msra.mxu0 %v2148
    %2178 = vmatmul.f32.gmra.mxu0 %v2157
    %v2179 = vpop.f32.mrf.mxu0
    %v2180 = vadd.f32 0.0, %v2179
    %2181 = vmatmul.f32.gmra.mxu0 %v2160
    %v2182 = vpop.f32.mrf.mxu0
    %v2183 = vadd.f32 0.0, %v2182
    %2184 = vdwg.mxu0
    %v2185 = vadd.f32 %v2014, %v2180
    %v2186 = vadd.f32 %v2015, %v2183
    %s2187 = scalar_lea.vmem [#allocation11], 1
    %v2188 = vld [vmem:[%s2187] sm:$0x1]
    %v2190 = vperm.slane %v2188, 0
    %v2192 = vadd.f32 %v2185, %v2190
    %v2193 = vadd.f32 %v2186, %v2190
    %v2194 = vld [vmem:[%s12] sm:$0x1]
    %v2195 = vld [vmem:[%s13] sm:$0x1]
    %v2196 = vsel %vm152, %v2192, 0.0
    %2197 = vadd.xlane.f32.xlu0 %v2196
    %v2198 = vpop.xlane.xlu0 %2197
    %v2199 = vsel %vm152, %v2193, 0.0
    %2200 = vadd.xlane.f32.xlu0 %v2199
    %v2201 = vpop.xlane.xlu0 %2200
    %v2202 = vmul.f32 %v2198, %v165
    %v2203 = vmul.f32 %v2201, %v165
    %v2204 = vsub.f32 %v2192, %v2202
    %v2205 = vsub.f32 %v2193, %v2203
    %v2206 = vmul.f32 %v2204, %v2204
    %v2207 = vmul.f32 %v2205, %v2205
    %v2208 = vsel %vm152, %v2206, 0.0
    %2209 = vadd.xlane.f32.xlu0 %v2208
    %v2210 = vpop.xlane.xlu0 %2209
    %v2211 = vsel %vm152, %v2207, 0.0
    %2212 = vadd.xlane.f32.xlu0 %v2211
    %v2213 = vpop.xlane.xlu0 %2212
    %v2214 = vmul.f32 %v2210, 0.032258064
    %v2215 = vmul.f32 %v2213, 0.032258064
    %v2216 = vrsqrt.pop %v2214
    %v2217 = vmul.f32 %v2216, %v2214
    %v2218 = vmul.f32 %v2217, %v2216
    %v2219 = vmul.f32 0.5, %v2218
    %v2220 = vsub.f32 1.5, %v2219
    %v2221 = vmul.f32 %v2216, %v2220
    %v2222 = vmul.f32 %v2214, %v2221
    %vm2223 = vcmp.eq.f32.partialorder %v2214, inf
    %v2224 = vsel %vm2223, %v2214, %v2222
    %vm2225 = vcmp.eq.f32.partialorder %v2214, 0.0
    %v2226 = vand.u32 %v2214, 2147483648
    %v2227 = vsel %vm2225, %v2226, %v2224
    %v2228 = vrsqrt.pop %v2215
    %v2229 = vmul.f32 %v2228, %v2215
    %v2230 = vmul.f32 %v2229, %v2228
    %v2231 = vmul.f32 0.5, %v2230
    %v2232 = vsub.f32 1.5, %v2231
    %v2233 = vmul.f32 %v2228, %v2232
    %v2234 = vmul.f32 %v2215, %v2233
    %vm2235 = vcmp.eq.f32.partialorder %v2215, inf
    %v2236 = vsel %vm2235, %v2215, %v2234
    %vm2237 = vcmp.eq.f32.partialorder %v2215, 0.0
    %v2238 = vand.u32 %v2215, 2147483648
    %v2239 = vsel %vm2237, %v2238, %v2236
    %v2240 = vadd.f32 %v2227, 1e-06
    %v2241 = vadd.f32 %v2239, 1e-06
    %v2242 = vrcp.pop %v2240
    %v2243 = vmul.f32 %v2240, %v2242
    %v2244 = vsub.f32 1.0, %v2243
    %v2245 = vmul.f32 %v2242, %v2244
    %v2246 = vadd.f32 %v2242, %v2245
    %vm2247 = vweird.f32 %v2240
    %vm2248 = vweird.f32 %v2242
    %vm2249 = vmor %vm2247, %vm2248
    %v2250 = vsel %vm2249, %v2242, %v2246
    %v2251 = vand.u32 2147483647, %v2240
    %vm2252 = vcmp.eq.f32.partialorder %v2251, 8.507059e+37
    %v2253 = vand.u32 %v2240, 2147483648
    %v2254 = vor.u32 1.1754944e-38, %v2253
    %v2255 = vsel %vm2252, %v2254, %v2250
    %v2256 = vrcp.pop %v2241
    %v2257 = vmul.f32 %v2241, %v2256
    %v2258 = vsub.f32 1.0, %v2257
    %v2259 = vmul.f32 %v2256, %v2258
    %v2260 = vadd.f32 %v2256, %v2259
    %vm2261 = vweird.f32 %v2241
    %vm2262 = vweird.f32 %v2256
    %vm2263 = vmor %vm2261, %vm2262
    %v2264 = vsel %vm2263, %v2256, %v2260
    %v2265 = vand.u32 2147483647, %v2241
    %vm2266 = vcmp.eq.f32.partialorder %v2265, 8.507059e+37
    %v2267 = vand.u32 %v2241, 2147483648
    %v2268 = vor.u32 1.1754944e-38, %v2267
    %v2269 = vsel %vm2266, %v2268, %v2264
    %v2271 = vperm.slane %v2194, 0
    %v2273 = vmul.f32 %v2271, %v2204
    %v2274 = vmul.f32 %v2271, %v2205
    %v2275 = vmul.f32 %v2273, %v2255
    %v2276 = vmul.f32 %v2274, %v2269
    %v2278 = vperm.slane %v2195, 0
    %v2280 = vadd.f32 %v2275, %v2278
    %v2281 = vadd.f32 %v2276, %v2278
    %v2284 = vrot.slane %v2281, 7
    %vm2285 = vcmask 1041409
    %v2286 = vsel %vm2285, %v2284, %v2280
    %v2288 = vrot.slane %v2280, 1
    %v2289 = vsel %vm2285, %v2281, %v2288
    %2290 = vrot.lane.b32.xlu0 %v2289, 32
    %v2291 = vpop.permute.xlu0 %2290
    %v2293 = vrot.slane %v2280, 2
    %v2294 = vrot.slane %v2281, 1
    %v2295 = vsel %vm2285, %v2294, %v2293
    %2296 = vrot.lane.b32.xlu0 %v2295, 64
    %v2297 = vpop.permute.xlu0 %2296
    %v2299 = vrot.slane %v2280, 3
    %v2300 = vrot.slane %v2281, 2
    %v2301 = vsel %vm2285, %v2300, %v2299
    %2302 = vrot.lane.b32.xlu0 %v2301, 96
    %v2303 = vpop.permute.xlu0 %2302
    %v2305 = vrot.slane %v2280, 4
    %v2306 = vrot.slane %v2281, 3
    %v2307 = vsel %vm2285, %v2306, %v2305
    %v2309 = vrot.slane %v2280, 5
    %v2310 = vrot.slane %v2281, 4
    %v2311 = vsel %vm2285, %v2310, %v2309
    %2312 = vrot.lane.b32.xlu0 %v2311, 32
    %v2313 = vpop.permute.xlu0 %2312
    %v2315 = vrot.slane %v2280, 6
    %v2316 = vrot.slane %v2281, 5
    %v2317 = vsel %vm2285, %v2316, %v2315
    %2318 = vrot.lane.b32.xlu0 %v2317, 64
    %v2319 = vpop.permute.xlu0 %2318
    %v2321 = vrot.slane %v2280, 7
    %v2322 = vrot.slane %v2281, 6
    %v2323 = vsel %vm2285, %v2322, %v2321
    %2324 = vrot.lane.b32.xlu0 %v2323, 96
    %v2325 = vpop.permute.xlu0 %2324
    %v2327 = vsel %vm152, %v2286, %v2291
    %v2328 = vsel %vm1138, %v2327, %v2297
    %vm2329 = vcmask 785408
    %v2330 = vsel %vm2329, %v2328, %v2303
    %v2331 = vsel %vm152, %v2307, %v2313
    %v2332 = vsel %vm1138, %v2331, %v2319
    %v2333 = vsel %vm2329, %v2332, %v2325
    %v2336 = vrot.slane %v2333, 6
    %vm2337 = vcmask 1041408
    %v2338 = vsel %vm2337, %v2330, %v2336
    %2340 = vst [vmem:[#allocation13] sm:$0xf] %v2338
    // Predicated region
    $region82: #{tpu_custom_call.1} parent=1 // pred_check
      _
    $region83: #{tpu_custom_call.1} parent=1 // pred_check_branch
      %2342 = sbr.rel (0) target = $region85
    $region84: #{tpu_custom_call.1} parent=1 // pred_region
      %2344 = vsyncadd [#allocation4], 0
      %s2346 = sshll.u32 [#allocation13], 4
      %s2347 = int_to_ptr.vmem [resolvable:$true] %s2346
      %s2348 = sshll.u32 %s14, 4
      %s2349 = int_to_ptr.hbm [resolvable:$true] %s2348
      %2351 = dma.vmem_to_hbm [thread:$0]  %s2347, 64, %s2349, [#allocation4]
    $region85: #{tpu_custom_call.1} parent=1 // pred_fallthru
      _
    // Predicated region
    $region86: #{tpu_custom_call.1} parent=1 // pred_check
      _
    $region87: #{tpu_custom_call.1} parent=1 // pred_check_branch
      %2353 = sbr.rel (0) target = $region89
    $region88: #{tpu_custom_call.1} parent=1 // pred_region
      %2355 = dma.done [#allocation4], 64
    $region89: #{tpu_custom_call.1} parent=1 // pred_fallthru
      _
    %2356 = vsyncpa [#allocation3], 1
    %2357 = vsyncpa [#allocation6], 1
    %2358 = vsyncpa [#allocation9], 1
    %2359 = vsyncpa [#allocation12], 1
    %2360 = vsyncpa [#allocation4], 1

</llo_original>
